<compile_context>
chip_gen: v6e
topology: v6e:2x2x1
jax: 0.10.0
libtpu: 0.0.40
codegen_flags: <defaults>
</compile_context>

<pallas_src>
import jax
import jax.numpy as jnp
from jax import lax
from jax.experimental import pallas as pl
from jax.experimental.pallas import tpu as pltpu


# dtype used for MXU matmul operands and the streamed gi tensor (accumulation f32).
MATMUL_DTYPE = jnp.bfloat16


def _sigmoid(x):
    # One EUP push (tanh) instead of exp + reciprocal; identical formula in kernel
    # and reference so the check stays apples-to-apples.
    return 0.5 * jnp.tanh(0.5 * x) + 0.5


def _vmem_budget_bytes():
    """VMEM budget (and vmem_limit) derived from the actual chip, with headroom."""
    cap = 128 * 1024 * 1024
    try:
        cap = int(pltpu.get_tpu_info().vmem_capacity_bytes)
    except Exception:
        pass
    # ~48 MiB on v7x (64 MiB VMEM), ~96 MiB on v5e/v6e (128 MiB VMEM).
    return min(cap * 3 // 4, 100 * 1024 * 1024)


def _auto_b_blk(B):
    """Batch-block size: fill the MXU M dimension; keep >=2 blocks when B is large
    enough that each half still fills the MXU (v7x 2-TensorCore split)."""
    if B >= 512 and B % 256 == 0:
        return 256
    for cand in (256, 128, 64, 32, 24, 16, 8):
        if cand <= B and B % cand == 0:
            return cand
    return B  # small / awkward B: single block equal to the full batch dim


def _pick_t_blk(T, b_blk, H, budget_bytes, requested=None):
    """Time-block size: big enough to amortize grid overhead, small enough to fit
    the VMEM budget, and (when possible) dividing T so no trailing slice is needed."""
    def blk_bytes(tb):
        gi = tb * b_blk * 3 * H * 2          # bf16 gi block
        out = b_blk * tb * H * 4             # f32 out block
        return 2 * (gi + out)                # double-buffered by the pipeline

    cap = int(requested) if requested else 32
    while cap > 8 and blk_bytes(cap) > budget_bytes * 6 // 10:
        cap -= 8
    cap = max(cap, 1)
    if T <= cap:
        return T, T                          # whole time axis in one block
    for tb in range(cap - cap % 8, 7, -8):   # multiples of 8, largest first
        if T % tb == 0:
            return tb, T                     # divides T: no padding, no final slice
    tb = max(8, cap - cap % 8)
    return tb, pl.cdiv(T, tb) * tb           # fall back to padding (masked in-kernel)


# --------------------------------------------------------------------------
# Hoisted input projection (one big bf16 MXU matmul, outside the serial loop).
#   gi[t] = x[t] @ W_ih + b_ih + [b_hr, b_hz, 0]      (r/z hidden biases folded in)
#   b_hn stays separate (must be inside r * (h @ W_hn + b_hn)).
# --------------------------------------------------------------------------
def gru_precompute(x_tbe, w_ih, w_hh, b_ih, b_hh, matmul_dtype=MATMUL_DTYPE):
    T, B, E = x_tbe.shape
    H = w_hh.shape[0]
    gi = jnp.dot(x_tbe.reshape(T * B, E).astype(matmul_dtype),
                 w_ih.astype(matmul_dtype),
                 preferred_element_type=jnp.float32)             # (T*B, 3H) f32 acc
    bias = b_ih + jnp.concatenate(
        [b_hh[:, :2 * H], jnp.zeros((1, H), b_hh.dtype)], axis=1)  # fold b_hr, b_hz
    gi = (gi + bias).reshape(T, B, 3 * H).astype(matmul_dtype)     # bf16 HBM stream
    w_hh_c = w_hh.astype(matmul_dtype)
    return gi, w_hh_c[:, :2 * H], w_hh_c[:, 2 * H:], b_hh[:, 2 * H:]


# --------------------------------------------------------------------------
# Pallas kernel: one (b_blk batch rows, t_blk timesteps) block per grid step.
# gi is read time-major (dense per-step loads); the output is written directly in
# batch-major (B, T, H) layout so no XLA transpose pass is needed afterwards.
# --------------------------------------------------------------------------
def _gru_rec_kernel(len_ref, gi_ref, whh_rz_ref, whh_n_ref, bhn_ref,
                    out_ref, hT_ref, h_ref):
    tb = pl.program_id(1)                    # time-block index (serial axis)

    @pl.when(tb == 0)
    def _init():                             # new batch block -> reset carried h
        h_ref[...] = jnp.zeros_like(h_ref)

    whh_rz = whh_rz_ref[...]                 # (H, 2H) bf16, resident
    whh_n = whh_n_ref[...]                   # (H,  H) bf16, resident
    lens = len_ref[...]                      # (b_blk, 1) int32
    H = whh_n.shape[0]
    t_blk = gi_ref.shape[0]
    b_blk = lens.shape[0]
    t0 = tb * t_blk
    bhn = jnp.broadcast_to(bhn_ref[...], (b_blk, H))   # hoisted: one sublane bcast

    h = h_ref[...]                           # (b_blk, H) f32 carried state
    # Fully unrolled static time loop: every Ref slice below has static indices.
    for i in range(t_blk):
        gi = gi_ref[i]                       # (b_blk, 3H) bf16, dense contiguous load
        h_mm = h.astype(whh_rz.dtype)
        # Split matmul so the r/z sigmoid (EUP) overlaps the n-gate MXU push.
        gh_rz = jnp.dot(h_mm, whh_rz, preferred_element_type=jnp.float32)
        gh_n = jnp.dot(h_mm, whh_n, preferred_element_type=jnp.float32)
        # PyTorch gate order: r, z, n -- slices are 128-lane aligned (H % 128 == 0).
        r = _sigmoid(gi[:, 0:H].astype(jnp.float32) + gh_rz[:, 0:H])
        z = _sigmoid(gi[:, H:2 * H].astype(jnp.float32) + gh_rz[:, H:2 * H])
        n = jnp.tanh(gi[:, 2 * H:].astype(jnp.float32) + r * (gh_n + bhn))
        h_new = n + z * (h - n)              # == (1-z)*n + z*h, one fewer vmul
        valid = (t0 + i) < lens              # (b_blk, 1) bool
        out_ref[:, i, :] = jnp.where(valid, h_new, 0.0).astype(out_ref.dtype)
        h = jnp.where(valid, h_new, h)       # frozen h at padded steps
    h_ref[...] = h

    @pl.when(tb == pl.num_programs(1) - 1)   # single final-state store per batch blk
    def _finalize():
        hT_ref[...] = h_ref[...].astype(hT_ref.dtype)


def gru_recurrence_pallas(gi_tbg, lens_b, whh_rz, whh_n, bhn, *,
                          t_blk=None, b_blk=None):
    """gi_tbg: (T,B,3H) bf16 precomputed input projections; lens_b: (B,) int32;
    whh_rz: (H,2H) bf16; whh_n: (H,H) bf16; bhn: (1,H) f32.
    Returns (out (B,T,H) f32 batch-major, h_T (B,H) f32)."""
    T, B, G = gi_tbg.shape
    H = whh_n.shape[0]
    assert G == 3 * H

    if b_blk is None or B % b_blk != 0:
        b_blk = _auto_b_blk(B)               # divisor search, never a silent collapse
    budget = _vmem_budget_bytes()
    t_blk, T_pad = _pick_t_blk(T, b_blk, H, budget, t_blk)
    if T_pad != T:                           # padded steps are masked out in-kernel
        gi_tbg = jnp.pad(gi_tbg, ((0, T_pad - T), (0, 0), (0, 0)))
    lens2 = lens_b.reshape(B, 1).astype(jnp.int32)

    # TODO(synk): at very large H, single-buffer the constant weight specs
    #             (pipeline_mode=pl.Buffered(1)) to halve their VMEM footprint.
    out, hT = pl.pallas_call(
        _gru_rec_kernel,
        grid=(B // b_blk, T_pad // t_blk),
        in_specs=[
            pl.BlockSpec((b_blk, 1), lambda bi, tb: (bi, 0)),             # lengths
            pl.BlockSpec((t_blk, b_blk, 3 * H), lambda bi, tb: (tb, bi, 0)),  # gi
            pl.BlockSpec((H, 2 * H), lambda bi, tb: (0, 0)),              # W_hh[:,:2H]
            pl.BlockSpec((H, H), lambda bi, tb: (0, 0)),                  # W_hh[:,2H:]
            pl.BlockSpec((1, H), lambda bi, tb: (0, 0)),                  # b_hn
        ],
        out_specs=[
            pl.BlockSpec((b_blk, t_blk, H), lambda bi, tb: (bi, tb, 0)),  # batch-major
            pl.BlockSpec((b_blk, H), lambda bi, tb: (bi, 0)),
        ],
        out_shape=(
            jax.ShapeDtypeStruct((B, T_pad, H), jnp.float32),
            jax.ShapeDtypeStruct((B, H), jnp.float32),
        ),
        scratch_shapes=[pltpu.VMEM((b_blk, H), jnp.float32)],
        compiler_params=pltpu.CompilerParams(
            dimension_semantics=("parallel", "arbitrary"),   # batch || , time serial
            vmem_limit_bytes=budget,
        ),
    )(lens2, gi_tbg, whh_rz, whh_n, bhn)
    if T_pad != T:
        out = out[:, :T]   # only reached when no t_blk divides T
    return out, hT


# --------------------------------------------------------------------------
# Pure-JAX reference for the recurrence (identical math, incl. bf16 gi / matmuls)
# --------------------------------------------------------------------------
def gru_recurrence_ref(gi_tbg, lens_b, whh_rz, whh_n, bhn, **_):
    T, B, _g = gi_tbg.shape
    H = whh_n.shape[0]
    bhn_b = jnp.broadcast_to(bhn, (B, H))

    def step(h, inp):
        gi, t = inp
        h_mm = h.astype(whh_rz.dtype)
        gh_rz = jnp.dot(h_mm, whh_rz, preferred_element_type=jnp.float32)
        gh_n = jnp.dot(h_mm, whh_n, preferred_element_type=jnp.float32)
        gi = gi.astype(jnp.float32)
        r = _sigmoid(gi[:, :H] + gh_rz[:, :H])
        z = _sigmoid(gi[:, H:2 * H] + gh_rz[:, H:])
        n = jnp.tanh(gi[:, 2 * H:] + r * (gh_n + bhn_b))
        h_new = n + z * (h - n)
        valid = (t < lens_b)[:, None]
        return jnp.where(valid, h_new, h), jnp.where(valid, h_new, 0.0)

    h0 = jnp.zeros((B, H), jnp.float32)
    hT, outs = lax.scan(step, h0, (gi_tbg, jnp.arange(T, dtype=jnp.int32)))
    return jnp.transpose(outs, (1, 0, 2)), hT      # (B, T, H), (B, H)


# --------------------------------------------------------------------------
# EncoderRNN forward (glue in plain JAX, GRU recurrences in Pallas)
# --------------------------------------------------------------------------
def encoder_rnn_forward(params, inputs, inputs_len, inputs_eos_indices,
                        use_pallas=True):
    rec = gru_recurrence_pallas if use_pallas else gru_recurrence_ref

    # Embedding lookup directly in time-major (gi stream layout); dropout (p=0 /
    # eval) is identity.  NOTE: word_output time dim is T (== max(inputs_len) here),
    # matching pad_packed_sequence when the longest sequence fills the tensor.
    x_tbe = params["emb"][inputs.T]                              # (T, B, E)
    B = inputs.shape[0]

    # ---- word-level GRU (packed semantics via lengths) ----
    gi_w, whh_rz_w, whh_n_w, bhn_w = gru_precompute(
        x_tbe, params["w_wih"], params["w_whh"], params["w_bih"], params["w_bhh"])
    word_output, w_hT = rec(gi_w, inputs_len.astype(jnp.int32),
                            whh_rz_w, whh_n_w, bhn_w)            # (B,T,H), (B,H)
    word_state = w_hT[None]                                      # (1, B, H)

    # ---- EOS gather, directly in batch-major (no transpose of the big tensor) ----
    sent_x = jnp.take_along_axis(word_output,
                                 inputs_eos_indices[:, :, None], axis=1)  # (B,S,H)
    S = sent_x.shape[1]
    sent_x_t = jnp.transpose(sent_x, (1, 0, 2))                  # (S,B,H): S is tiny

    # ---- sentence-level GRU (full length S for every batch row) ----
    gi_s, whh_rz_s, whh_n_s, bhn_s = gru_precompute(
        sent_x_t, params["s_wih"], params["s_whh"], params["s_bih"], params["s_bhh"])
    s_len = jnp.full((B,), S, dtype=jnp.int32)
    sent_output, s_hT = rec(gi_s, s_len, whh_rz_s, whh_n_s, bhn_s)  # (B,S,H), (B,H)
    sent_state = s_hT[None]                                      # (1, B, H)

    return word_output, word_state, sent_output, sent_state


# --------------------------------------------------------------------------
def init_params(key, vocab, emb_size, hidden):
    ks = jax.random.split(key, 9)
    bound = 1.0 / jnp.sqrt(hidden)

    def uni(k, shape):
        return jax.random.uniform(k, shape, jnp.float32, -bound, bound)

    return {
        "emb":   jax.random.normal(ks[0], (vocab, emb_size), jnp.float32) * 0.1,
        # word GRU (stored transposed: (in, 3H), PyTorch gate order r,z,n)
        "w_wih": uni(ks[1], (emb_size, 3 * hidden)),
        "w_whh": uni(ks[2], (hidden, 3 * hidden)),
        "w_bih": uni(ks[3], (1, 3 * hidden)),
        "w_bhh": uni(ks[4], (1, 3 * hidden)),
        # sentence GRU
        "s_wih": uni(ks[5], (hidden, 3 * hidden)),
        "s_whh": uni(ks[6], (hidden, 3 * hidden)),
        "s_bih": uni(ks[7], (1, 3 * hidden)),
        "s_bhh": uni(ks[8], (1, 3 * hidden)),
    }


if __name__ == "__main__":
    # vreg-aligned demo sizes: B multiple of 8 (sublanes), H multiple of 128 (lanes).
    VOCAB, B, T, E, H, S = 100, 16, 12, 64, 128, 3

    key = jax.random.PRNGKey(0)
    kp, ki = jax.random.split(key)
    params = init_params(kp, VOCAB, E, H)

    inputs = jax.random.randint(ki, (B, T), 0, VOCAB, dtype=jnp.int32)
    # lengths sorted descending (pack_padded_sequence requirement), max == T
    lens_list = [12, 12, 11, 10, 10, 9, 8, 8, 7, 6, 6, 5, 4, 4, 3, 3]
    inputs_len = jnp.array(lens_list, dtype=jnp.int32)
    # S valid EOS positions per row (strictly inside each row's valid region)
    inputs_eos_indices = jnp.array(
        [[0, L // 2, L - 1] for L in lens_list], dtype=jnp.int32)

    fwd_pallas = jax.jit(
        lambda p, i, l, e: encoder_rnn_forward(p, i, l, e, use_pallas=True))
    fwd_ref = jax.jit(
        lambda p, i, l, e: encoder_rnn_forward(p, i, l, e, use_pallas=False))

    outs = jax.block_until_ready(
        fwd_pallas(params, inputs, inputs_len, inputs_eos_indices))
    refs = jax.block_until_ready(
        fwd_ref(params, inputs, inputs_len, inputs_eos_indices))

    names = ["word_output", "word_state", "sent_output", "sent_state"]
    for name, a, b in zip(names, outs, refs):
        assert a.shape == b.shape, (name, a.shape, b.shape)
        # both paths run the identical bf16 gi / bf16 MXU recurrence
        assert jnp.allclose(a, b, rtol=5e-3, atol=2e-3), (
            name, float(jnp.max(jnp.abs(a - b))))

    print("KERNEL_OK")
</pallas_src>

<mosaic_0001>
module attributes {stable_mosaic.version = 11 : i64} {
  func.func @_gru_rec_kernel(%arg0: i32, %arg1: i32, %arg2: memref<16x1xi32, #tpu.memory_space<vmem>>, %arg3: memref<12x16x384xbf16, #tpu.memory_space<vmem>>, %arg4: memref<128x256xbf16, #tpu.memory_space<vmem>>, %arg5: memref<128x128xbf16, #tpu.memory_space<vmem>>, %arg6: memref<1x128xf32, #tpu.memory_space<vmem>>, %arg7: memref<16x12x128xf32, #tpu.memory_space<vmem>>, %arg8: memref<16x128xf32, #tpu.memory_space<vmem>>, %arg9: memref<16x128xf32, #tpu.memory_space<vmem>>) attributes {dimension_semantics = [#tpu.dimension_semantics<parallel>, #tpu.dimension_semantics<arbitrary>], iteration_bounds = array<i64: 1, 1>, scalar_prefetch = 0 : i64, scratch_operands = 1 : i64, tpu.core_type = #tpu.core_type<tc>, window_params = [{transform_indices = @transform_0, window_bounds = array<i64: 16, 1>}, {transform_indices = @transform_1, window_bounds = array<i64: 12, 16, 384>}, {pipeline_mode = #tpu.pipeline_mode<synchronous>, transform_indices = @transform_2, window_bounds = array<i64: 128, 256>}, {pipeline_mode = #tpu.pipeline_mode<synchronous>, transform_indices = @transform_3, window_bounds = array<i64: 128, 128>}, {pipeline_mode = #tpu.pipeline_mode<synchronous>, transform_indices = @transform_4, window_bounds = array<i64: 1, 128>}, {transform_indices = @transform_5, window_bounds = array<i64: 16, 12, 128>}, {transform_indices = @transform_6, window_bounds = array<i64: 16, 128>}]} {
    %c0_i32 = arith.constant 0 : i32
    %0 = arith.cmpi eq, %arg1, %c0_i32 : i32
    %1 = arith.extui %0 : i1 to i32
    %c0_i32_0 = arith.constant 0 : i32
    %2 = arith.cmpi ne, %1, %c0_i32_0 : i32
    scf.if %2 {
      %cst_183 = arith.constant 0.000000e+00 : f32
      %603 = vector.broadcast %cst_183 : f32 to vector<16x128xf32>
      %c0_184 = arith.constant 0 : index
      %c0_185 = arith.constant 0 : index
      %604 = vector.load %arg9[%c0_184, %c0_185] : memref<16x128xf32, #tpu.memory_space<vmem>>, vector<16x128xf32>
      tpu.vector_store %arg9[%c0_184, %c0_185], %603 {strides = array<i32>} : memref<16x128xf32, #tpu.memory_space<vmem>>, vector<16x128xf32>,
    } else {
    }
    %c0 = arith.constant 0 : index
    %c0_1 = arith.constant 0 : index
    %3 = vector.load %arg4[%c0, %c0_1] : memref<128x256xbf16, #tpu.memory_space<vmem>>, vector<128x256xbf16>
    %c0_2 = arith.constant 0 : index
    %c0_3 = arith.constant 0 : index
    %4 = vector.load %arg5[%c0_2, %c0_3] : memref<128x128xbf16, #tpu.memory_space<vmem>>, vector<128x128xbf16>
    %c0_4 = arith.constant 0 : index
    %c0_5 = arith.constant 0 : index
    %5 = vector.load %arg2[%c0_4, %c0_5] : memref<16x1xi32, #tpu.memory_space<vmem>>, vector<16x1xi32>
    %c12_i32 = arith.constant 12 : i32
    %6 = arith.muli %arg1, %c12_i32 : i32
    %c0_6 = arith.constant 0 : index
    %c0_7 = arith.constant 0 : index
    %7 = vector.load %arg6[%c0_6, %c0_7] : memref<1x128xf32, #tpu.memory_space<vmem>>, vector<1x128xf32>
    %8 = vector.shape_cast %7 : vector<1x128xf32> to vector<1x128xf32>
    %9 = vector.broadcast %8 : vector<1x128xf32> to vector<16x128xf32>
    %c0_8 = arith.constant 0 : index
    %c0_9 = arith.constant 0 : index
    %10 = vector.load %arg9[%c0_8, %c0_9] : memref<16x128xf32, #tpu.memory_space<vmem>>, vector<16x128xf32>
    %c0_10 = arith.constant 0 : index
    %c0_11 = arith.constant 0 : index
    %c0_12 = arith.constant 0 : index
    %11 = vector.load %arg3[%c0_10, %c0_11, %c0_12] : memref<12x16x384xbf16, #tpu.memory_space<vmem>>, vector<1x16x384xbf16>
    %12 = vector.shape_cast %11 : vector<1x16x384xbf16> to vector<16x384xbf16>
    %13 = arith.truncf %10 : vector<16x128xf32> to vector<16x128xbf16>
    %cst = arith.constant dense<0.000000e+00> : vector<16x256xf32>
    %14 = tpu.matmul %13, %3, %cst {dimension_numbers = #tpu.dot_dimension_numbers<[1], [0], [0], [1], [0, 0, 1, 1], [], []>} : vector<16x128xbf16>, vector<128x256xbf16>, vector<16x256xf32> -> vector<16x256xf32>
    %cst_13 = arith.constant dense<0.000000e+00> : vector<16x128xf32>
    %15 = tpu.matmul %13, %4, %cst_13 {dimension_numbers = #tpu.dot_dimension_numbers<[1], [0], [0], [1], [0, 0, 1, 1], [], []>} : vector<16x128xbf16>, vector<128x128xbf16>, vector<16x128xf32> -> vector<16x128xf32>
    %16 = vector.extract_strided_slice %12 {offsets = [0, 0], sizes = [16, 128], strides = [1, 1]} : vector<16x384xbf16> to vector<16x128xbf16>
    %17 = arith.extf %16 : vector<16x128xbf16> to vector<16x128xf32>
    %18 = vector.extract_strided_slice %14 {offsets = [0, 0], sizes = [16, 128], strides = [1, 1]} : vector<16x256xf32> to vector<16x128xf32>
    %19 = arith.addf %17, %18 : vector<16x128xf32>
    %cst_14 = arith.constant 5.000000e-01 : f32
    %20 = vector.broadcast %cst_14 : f32 to vector<16x128xf32>
    %21 = arith.mulf %20, %19 : vector<16x128xf32>
    %22 = math.tanh %21 : vector<16x128xf32>
    %cst_15 = arith.constant 5.000000e-01 : f32
    %23 = vector.broadcast %cst_15 : f32 to vector<16x128xf32>
    %24 = arith.mulf %23, %22 : vector<16x128xf32>
    %cst_16 = arith.constant 5.000000e-01 : f32
    %25 = vector.broadcast %cst_16 : f32 to vector<16x128xf32>
    %26 = arith.addf %24, %25 : vector<16x128xf32>
    %27 = vector.extract_strided_slice %12 {offsets = [0, 128], sizes = [16, 128], strides = [1, 1]} : vector<16x384xbf16> to vector<16x128xbf16>
    %28 = arith.extf %27 : vector<16x128xbf16> to vector<16x128xf32>
    %29 = vector.extract_strided_slice %14 {offsets = [0, 128], sizes = [16, 128], strides = [1, 1]} : vector<16x256xf32> to vector<16x128xf32>
    %30 = arith.addf %28, %29 : vector<16x128xf32>
    %cst_17 = arith.constant 5.000000e-01 : f32
    %31 = vector.broadcast %cst_17 : f32 to vector<16x128xf32>
    %32 = arith.mulf %31, %30 : vector<16x128xf32>
    %33 = math.tanh %32 : vector<16x128xf32>
    %cst_18 = arith.constant 5.000000e-01 : f32
    %34 = vector.broadcast %cst_18 : f32 to vector<16x128xf32>
    %35 = arith.mulf %34, %33 : vector<16x128xf32>
    %cst_19 = arith.constant 5.000000e-01 : f32
    %36 = vector.broadcast %cst_19 : f32 to vector<16x128xf32>
    %37 = arith.addf %35, %36 : vector<16x128xf32>
    %38 = vector.extract_strided_slice %12 {offsets = [0, 256], sizes = [16, 128], strides = [1, 1]} : vector<16x384xbf16> to vector<16x128xbf16>
    %39 = arith.extf %38 : vector<16x128xbf16> to vector<16x128xf32>
    %40 = arith.addf %15, %9 : vector<16x128xf32>
    %41 = arith.mulf %26, %40 : vector<16x128xf32>
    %42 = arith.addf %39, %41 : vector<16x128xf32>
    %43 = math.tanh %42 : vector<16x128xf32>
    %44 = arith.subf %10, %43 : vector<16x128xf32>
    %45 = arith.mulf %37, %44 : vector<16x128xf32>
    %46 = arith.addf %43, %45 : vector<16x128xf32>
    %c0_i32_20 = arith.constant 0 : i32
    %47 = arith.addi %6, %c0_i32_20 : i32
    %48 = vector.broadcast %47 : i32 to vector<16x1xi32>
    %49 = arith.cmpi slt, %48, %5 : vector<16x1xi32>
    %cst_21 = arith.constant 0.000000e+00 : f32
    %50 = vector.shape_cast %49 : vector<16x1xi1> to vector<16x1xi1>
    %51 = vector.broadcast %50 : vector<16x1xi1> to vector<16x128xi1>
    %52 = vector.broadcast %cst_21 : f32 to vector<16x128xf32>
    %53 = arith.select %51, %46, %52 : vector<16x128xi1>, vector<16x128xf32>
    %c0_22 = arith.constant 0 : index
    %c0_23 = arith.constant 0 : index
    %c0_24 = arith.constant 0 : index
    %54 = vector.load %arg7[%c0_22, %c0_23, %c0_24] : memref<16x12x128xf32, #tpu.memory_space<vmem>>, vector<16x1x128xf32>
    %55 = vector.shape_cast %54 : vector<16x1x128xf32> to vector<16x128xf32>
    %56 = vector.shape_cast %53 : vector<16x128xf32> to vector<16x1x128xf32>
    tpu.vector_store %arg7[%c0_22, %c0_23, %c0_24], %56 {strides = array<i32>} : memref<16x12x128xf32, #tpu.memory_space<vmem>>, vector<16x1x128xf32>,
    %57 = vector.shape_cast %49 : vector<16x1xi1> to vector<16x1xi1>
    %58 = vector.broadcast %57 : vector<16x1xi1> to vector<16x128xi1>
    %59 = arith.select %58, %46, %10 : vector<16x128xi1>, vector<16x128xf32>
    %c1 = arith.constant 1 : index
    %c0_25 = arith.constant 0 : index
    %c0_26 = arith.constant 0 : index
    %60 = vector.load %arg3[%c1, %c0_25, %c0_26] : memref<12x16x384xbf16, #tpu.memory_space<vmem>>, vector<1x16x384xbf16>
    %61 = vector.shape_cast %60 : vector<1x16x384xbf16> to vector<16x384xbf16>
    %62 = arith.truncf %59 : vector<16x128xf32> to vector<16x128xbf16>
    %cst_27 = arith.constant dense<0.000000e+00> : vector<16x256xf32>
    %63 = tpu.matmul %62, %3, %cst_27 {dimension_numbers = #tpu.dot_dimension_numbers<[1], [0], [0], [1], [0, 0, 1, 1], [], []>} : vector<16x128xbf16>, vector<128x256xbf16>, vector<16x256xf32> -> vector<16x256xf32>
    %cst_28 = arith.constant dense<0.000000e+00> : vector<16x128xf32>
    %64 = tpu.matmul %62, %4, %cst_28 {dimension_numbers = #tpu.dot_dimension_numbers<[1], [0], [0], [1], [0, 0, 1, 1], [], []>} : vector<16x128xbf16>, vector<128x128xbf16>, vector<16x128xf32> -> vector<16x128xf32>
    %65 = vector.extract_strided_slice %61 {offsets = [0, 0], sizes = [16, 128], strides = [1, 1]} : vector<16x384xbf16> to vector<16x128xbf16>
    %66 = arith.extf %65 : vector<16x128xbf16> to vector<16x128xf32>
    %67 = vector.extract_strided_slice %63 {offsets = [0, 0], sizes = [16, 128], strides = [1, 1]} : vector<16x256xf32> to vector<16x128xf32>
    %68 = arith.addf %66, %67 : vector<16x128xf32>
    %cst_29 = arith.constant 5.000000e-01 : f32
    %69 = vector.broadcast %cst_29 : f32 to vector<16x128xf32>
    %70 = arith.mulf %69, %68 : vector<16x128xf32>
    %71 = math.tanh %70 : vector<16x128xf32>
    %cst_30 = arith.constant 5.000000e-01 : f32
    %72 = vector.broadcast %cst_30 : f32 to vector<16x128xf32>
    %73 = arith.mulf %72, %71 : vector<16x128xf32>
    %cst_31 = arith.constant 5.000000e-01 : f32
    %74 = vector.broadcast %cst_31 : f32 to vector<16x128xf32>
    %75 = arith.addf %73, %74 : vector<16x128xf32>
    %76 = vector.extract_strided_slice %61 {offsets = [0, 128], sizes = [16, 128], strides = [1, 1]} : vector<16x384xbf16> to vector<16x128xbf16>
    %77 = arith.extf %76 : vector<16x128xbf16> to vector<16x128xf32>
    %78 = vector.extract_strided_slice %63 {offsets = [0, 128], sizes = [16, 128], strides = [1, 1]} : vector<16x256xf32> to vector<16x128xf32>
    %79 = arith.addf %77, %78 : vector<16x128xf32>
    %cst_32 = arith.constant 5.000000e-01 : f32
    %80 = vector.broadcast %cst_32 : f32 to vector<16x128xf32>
    %81 = arith.mulf %80, %79 : vector<16x128xf32>
    %82 = math.tanh %81 : vector<16x128xf32>
    %cst_33 = arith.constant 5.000000e-01 : f32
    %83 = vector.broadcast %cst_33 : f32 to vector<16x128xf32>
    %84 = arith.mulf %83, %82 : vector<16x128xf32>
    %cst_34 = arith.constant 5.000000e-01 : f32
    %85 = vector.broadcast %cst_34 : f32 to vector<16x128xf32>
    %86 = arith.addf %84, %85 : vector<16x128xf32>
    %87 = vector.extract_strided_slice %61 {offsets = [0, 256], sizes = [16, 128], strides = [1, 1]} : vector<16x384xbf16> to vector<16x128xbf16>
    %88 = arith.extf %87 : vector<16x128xbf16> to vector<16x128xf32>
    %89 = arith.addf %64, %9 : vector<16x128xf32>
    %90 = arith.mulf %75, %89 : vector<16x128xf32>
    %91 = arith.addf %88, %90 : vector<16x128xf32>
    %92 = math.tanh %91 : vector<16x128xf32>
    %93 = arith.subf %59, %92 : vector<16x128xf32>
    %94 = arith.mulf %86, %93 : vector<16x128xf32>
    %95 = arith.addf %92, %94 : vector<16x128xf32>
    %c1_i32 = arith.constant 1 : i32
    %96 = arith.addi %6, %c1_i32 : i32
    %97 = vector.broadcast %96 : i32 to vector<16x1xi32>
    %98 = arith.cmpi slt, %97, %5 : vector<16x1xi32>
    %cst_35 = arith.constant 0.000000e+00 : f32
    %99 = vector.shape_cast %98 : vector<16x1xi1> to vector<16x1xi1>
    %100 = vector.broadcast %99 : vector<16x1xi1> to vector<16x128xi1>
    %101 = vector.broadcast %cst_35 : f32 to vector<16x128xf32>
    %102 = arith.select %100, %95, %101 : vector<16x128xi1>, vector<16x128xf32>
    %c0_36 = arith.constant 0 : index
    %c1_37 = arith.constant 1 : index
    %c0_38 = arith.constant 0 : index
    %103 = vector.load %arg7[%c0_36, %c1_37, %c0_38] : memref<16x12x128xf32, #tpu.memory_space<vmem>>, vector<16x1x128xf32>
    %104 = vector.shape_cast %103 : vector<16x1x128xf32> to vector<16x128xf32>
    %105 = vector.shape_cast %102 : vector<16x128xf32> to vector<16x1x128xf32>
    tpu.vector_store %arg7[%c0_36, %c1_37, %c0_38], %105 {strides = array<i32>} : memref<16x12x128xf32, #tpu.memory_space<vmem>>, vector<16x1x128xf32>,
    %106 = vector.shape_cast %98 : vector<16x1xi1> to vector<16x1xi1>
    %107 = vector.broadcast %106 : vector<16x1xi1> to vector<16x128xi1>
    %108 = arith.select %107, %95, %59 : vector<16x128xi1>, vector<16x128xf32>
    %c2 = arith.constant 2 : index
    %c0_39 = arith.constant 0 : index
    %c0_40 = arith.constant 0 : index
    %109 = vector.load %arg3[%c2, %c0_39, %c0_40] : memref<12x16x384xbf16, #tpu.memory_space<vmem>>, vector<1x16x384xbf16>
    %110 = vector.shape_cast %109 : vector<1x16x384xbf16> to vector<16x384xbf16>
    %111 = arith.truncf %108 : vector<16x128xf32> to vector<16x128xbf16>
    %cst_41 = arith.constant dense<0.000000e+00> : vector<16x256xf32>
    %112 = tpu.matmul %111, %3, %cst_41 {dimension_numbers = #tpu.dot_dimension_numbers<[1], [0], [0], [1], [0, 0, 1, 1], [], []>} : vector<16x128xbf16>, vector<128x256xbf16>, vector<16x256xf32> -> vector<16x256xf32>
    %cst_42 = arith.constant dense<0.000000e+00> : vector<16x128xf32>
    %113 = tpu.matmul %111, %4, %cst_42 {dimension_numbers = #tpu.dot_dimension_numbers<[1], [0], [0], [1], [0, 0, 1, 1], [], []>} : vector<16x128xbf16>, vector<128x128xbf16>, vector<16x128xf32> -> vector<16x128xf32>
    %114 = vector.extract_strided_slice %110 {offsets = [0, 0], sizes = [16, 128], strides = [1, 1]} : vector<16x384xbf16> to vector<16x128xbf16>
    %115 = arith.extf %114 : vector<16x128xbf16> to vector<16x128xf32>
    %116 = vector.extract_strided_slice %112 {offsets = [0, 0], sizes = [16, 128], strides = [1, 1]} : vector<16x256xf32> to vector<16x128xf32>
    %117 = arith.addf %115, %116 : vector<16x128xf32>
    %cst_43 = arith.constant 5.000000e-01 : f32
    %118 = vector.broadcast %cst_43 : f32 to vector<16x128xf32>
    %119 = arith.mulf %118, %117 : vector<16x128xf32>
    %120 = math.tanh %119 : vector<16x128xf32>
    %cst_44 = arith.constant 5.000000e-01 : f32
    %121 = vector.broadcast %cst_44 : f32 to vector<16x128xf32>
    %122 = arith.mulf %121, %120 : vector<16x128xf32>
    %cst_45 = arith.constant 5.000000e-01 : f32
    %123 = vector.broadcast %cst_45 : f32 to vector<16x128xf32>
    %124 = arith.addf %122, %123 : vector<16x128xf32>
    %125 = vector.extract_strided_slice %110 {offsets = [0, 128], sizes = [16, 128], strides = [1, 1]} : vector<16x384xbf16> to vector<16x128xbf16>
    %126 = arith.extf %125 : vector<16x128xbf16> to vector<16x128xf32>
    %127 = vector.extract_strided_slice %112 {offsets = [0, 128], sizes = [16, 128], strides = [1, 1]} : vector<16x256xf32> to vector<16x128xf32>
    %128 = arith.addf %126, %127 : vector<16x128xf32>
    %cst_46 = arith.constant 5.000000e-01 : f32
    %129 = vector.broadcast %cst_46 : f32 to vector<16x128xf32>
    %130 = arith.mulf %129, %128 : vector<16x128xf32>
    %131 = math.tanh %130 : vector<16x128xf32>
    %cst_47 = arith.constant 5.000000e-01 : f32
    %132 = vector.broadcast %cst_47 : f32 to vector<16x128xf32>
    %133 = arith.mulf %132, %131 : vector<16x128xf32>
    %cst_48 = arith.constant 5.000000e-01 : f32
    %134 = vector.broadcast %cst_48 : f32 to vector<16x128xf32>
    %135 = arith.addf %133, %134 : vector<16x128xf32>
    %136 = vector.extract_strided_slice %110 {offsets = [0, 256], sizes = [16, 128], strides = [1, 1]} : vector<16x384xbf16> to vector<16x128xbf16>
    %137 = arith.extf %136 : vector<16x128xbf16> to vector<16x128xf32>
    %138 = arith.addf %113, %9 : vector<16x128xf32>
    %139 = arith.mulf %124, %138 : vector<16x128xf32>
    %140 = arith.addf %137, %139 : vector<16x128xf32>
    %141 = math.tanh %140 : vector<16x128xf32>
    %142 = arith.subf %108, %141 : vector<16x128xf32>
    %143 = arith.mulf %135, %142 : vector<16x128xf32>
    %144 = arith.addf %141, %143 : vector<16x128xf32>
    %c2_i32 = arith.constant 2 : i32
    %145 = arith.addi %6, %c2_i32 : i32
    %146 = vector.broadcast %145 : i32 to vector<16x1xi32>
    %147 = arith.cmpi slt, %146, %5 : vector<16x1xi32>
    %cst_49 = arith.constant 0.000000e+00 : f32
    %148 = vector.shape_cast %147 : vector<16x1xi1> to vector<16x1xi1>
    %149 = vector.broadcast %148 : vector<16x1xi1> to vector<16x128xi1>
    %150 = vector.broadcast %cst_49 : f32 to vector<16x128xf32>
    %151 = arith.select %149, %144, %150 : vector<16x128xi1>, vector<16x128xf32>
    %c0_50 = arith.constant 0 : index
    %c2_51 = arith.constant 2 : index
    %c0_52 = arith.constant 0 : index
    %152 = vector.load %arg7[%c0_50, %c2_51, %c0_52] : memref<16x12x128xf32, #tpu.memory_space<vmem>>, vector<16x1x128xf32>
    %153 = vector.shape_cast %152 : vector<16x1x128xf32> to vector<16x128xf32>
    %154 = vector.shape_cast %151 : vector<16x128xf32> to vector<16x1x128xf32>
    tpu.vector_store %arg7[%c0_50, %c2_51, %c0_52], %154 {strides = array<i32>} : memref<16x12x128xf32, #tpu.memory_space<vmem>>, vector<16x1x128xf32>,
    %155 = vector.shape_cast %147 : vector<16x1xi1> to vector<16x1xi1>
    %156 = vector.broadcast %155 : vector<16x1xi1> to vector<16x128xi1>
    %157 = arith.select %156, %144, %108 : vector<16x128xi1>, vector<16x128xf32>
    %c3 = arith.constant 3 : index
    %c0_53 = arith.constant 0 : index
    %c0_54 = arith.constant 0 : index
    %158 = vector.load %arg3[%c3, %c0_53, %c0_54] : memref<12x16x384xbf16, #tpu.memory_space<vmem>>, vector<1x16x384xbf16>
    %159 = vector.shape_cast %158 : vector<1x16x384xbf16> to vector<16x384xbf16>
    %160 = arith.truncf %157 : vector<16x128xf32> to vector<16x128xbf16>
    %cst_55 = arith.constant dense<0.000000e+00> : vector<16x256xf32>
    %161 = tpu.matmul %160, %3, %cst_55 {dimension_numbers = #tpu.dot_dimension_numbers<[1], [0], [0], [1], [0, 0, 1, 1], [], []>} : vector<16x128xbf16>, vector<128x256xbf16>, vector<16x256xf32> -> vector<16x256xf32>
    %cst_56 = arith.constant dense<0.000000e+00> : vector<16x128xf32>
    %162 = tpu.matmul %160, %4, %cst_56 {dimension_numbers = #tpu.dot_dimension_numbers<[1], [0], [0], [1], [0, 0, 1, 1], [], []>} : vector<16x128xbf16>, vector<128x128xbf16>, vector<16x128xf32> -> vector<16x128xf32>
    %163 = vector.extract_strided_slice %159 {offsets = [0, 0], sizes = [16, 128], strides = [1, 1]} : vector<16x384xbf16> to vector<16x128xbf16>
    %164 = arith.extf %163 : vector<16x128xbf16> to vector<16x128xf32>
    %165 = vector.extract_strided_slice %161 {offsets = [0, 0], sizes = [16, 128], strides = [1, 1]} : vector<16x256xf32> to vector<16x128xf32>
    %166 = arith.addf %164, %165 : vector<16x128xf32>
    %cst_57 = arith.constant 5.000000e-01 : f32
    %167 = vector.broadcast %cst_57 : f32 to vector<16x128xf32>
    %168 = arith.mulf %167, %166 : vector<16x128xf32>
    %169 = math.tanh %168 : vector<16x128xf32>
    %cst_58 = arith.constant 5.000000e-01 : f32
    %170 = vector.broadcast %cst_58 : f32 to vector<16x128xf32>
    %171 = arith.mulf %170, %169 : vector<16x128xf32>
    %cst_59 = arith.constant 5.000000e-01 : f32
    %172 = vector.broadcast %cst_59 : f32 to vector<16x128xf32>
    %173 = arith.addf %171, %172 : vector<16x128xf32>
    %174 = vector.extract_strided_slice %159 {offsets = [0, 128], sizes = [16, 128], strides = [1, 1]} : vector<16x384xbf16> to vector<16x128xbf16>
    %175 = arith.extf %174 : vector<16x128xbf16> to vector<16x128xf32>
    %176 = vector.extract_strided_slice %161 {offsets = [0, 128], sizes = [16, 128], strides = [1, 1]} : vector<16x256xf32> to vector<16x128xf32>
    %177 = arith.addf %175, %176 : vector<16x128xf32>
    %cst_60 = arith.constant 5.000000e-01 : f32
    %178 = vector.broadcast %cst_60 : f32 to vector<16x128xf32>
    %179 = arith.mulf %178, %177 : vector<16x128xf32>
    %180 = math.tanh %179 : vector<16x128xf32>
    %cst_61 = arith.constant 5.000000e-01 : f32
    %181 = vector.broadcast %cst_61 : f32 to vector<16x128xf32>
    %182 = arith.mulf %181, %180 : vector<16x128xf32>
    %cst_62 = arith.constant 5.000000e-01 : f32
    %183 = vector.broadcast %cst_62 : f32 to vector<16x128xf32>
    %184 = arith.addf %182, %183 : vector<16x128xf32>
    %185 = vector.extract_strided_slice %159 {offsets = [0, 256], sizes = [16, 128], strides = [1, 1]} : vector<16x384xbf16> to vector<16x128xbf16>
    %186 = arith.extf %185 : vector<16x128xbf16> to vector<16x128xf32>
    %187 = arith.addf %162, %9 : vector<16x128xf32>
    %188 = arith.mulf %173, %187 : vector<16x128xf32>
    %189 = arith.addf %186, %188 : vector<16x128xf32>
    %190 = math.tanh %189 : vector<16x128xf32>
    %191 = arith.subf %157, %190 : vector<16x128xf32>
    %192 = arith.mulf %184, %191 : vector<16x128xf32>
    %193 = arith.addf %190, %192 : vector<16x128xf32>
    %c3_i32 = arith.constant 3 : i32
    %194 = arith.addi %6, %c3_i32 : i32
    %195 = vector.broadcast %194 : i32 to vector<16x1xi32>
    %196 = arith.cmpi slt, %195, %5 : vector<16x1xi32>
    %cst_63 = arith.constant 0.000000e+00 : f32
    %197 = vector.shape_cast %196 : vector<16x1xi1> to vector<16x1xi1>
    %198 = vector.broadcast %197 : vector<16x1xi1> to vector<16x128xi1>
    %199 = vector.broadcast %cst_63 : f32 to vector<16x128xf32>
    %200 = arith.select %198, %193, %199 : vector<16x128xi1>, vector<16x128xf32>
    %c0_64 = arith.constant 0 : index
    %c3_65 = arith.constant 3 : index
    %c0_66 = arith.constant 0 : index
    %201 = vector.load %arg7[%c0_64, %c3_65, %c0_66] : memref<16x12x128xf32, #tpu.memory_space<vmem>>, vector<16x1x128xf32>
    %202 = vector.shape_cast %201 : vector<16x1x128xf32> to vector<16x128xf32>
    %203 = vector.shape_cast %200 : vector<16x128xf32> to vector<16x1x128xf32>
    tpu.vector_store %arg7[%c0_64, %c3_65, %c0_66], %203 {strides = array<i32>} : memref<16x12x128xf32, #tpu.memory_space<vmem>>, vector<16x1x128xf32>,
    %204 = vector.shape_cast %196 : vector<16x1xi1> to vector<16x1xi1>
    %205 = vector.broadcast %204 : vector<16x1xi1> to vector<16x128xi1>
    %206 = arith.select %205, %193, %157 : vector<16x128xi1>, vector<16x128xf32>
    %c4 = arith.constant 4 : index
    %c0_67 = arith.constant 0 : index
    %c0_68 = arith.constant 0 : index
    %207 = vector.load %arg3[%c4, %c0_67, %c0_68] : memref<12x16x384xbf16, #tpu.memory_space<vmem>>, vector<1x16x384xbf16>
    %208 = vector.shape_cast %207 : vector<1x16x384xbf16> to vector<16x384xbf16>
    %209 = arith.truncf %206 : vector<16x128xf32> to vector<16x128xbf16>
    %cst_69 = arith.constant dense<0.000000e+00> : vector<16x256xf32>
    %210 = tpu.matmul %209, %3, %cst_69 {dimension_numbers = #tpu.dot_dimension_numbers<[1], [0], [0], [1], [0, 0, 1, 1], [], []>} : vector<16x128xbf16>, vector<128x256xbf16>, vector<16x256xf32> -> vector<16x256xf32>
    %cst_70 = arith.constant dense<0.000000e+00> : vector<16x128xf32>
    %211 = tpu.matmul %209, %4, %cst_70 {dimension_numbers = #tpu.dot_dimension_numbers<[1], [0], [0], [1], [0, 0, 1, 1], [], []>} : vector<16x128xbf16>, vector<128x128xbf16>, vector<16x128xf32> -> vector<16x128xf32>
    %212 = vector.extract_strided_slice %208 {offsets = [0, 0], sizes = [16, 128], strides = [1, 1]} : vector<16x384xbf16> to vector<16x128xbf16>
    %213 = arith.extf %212 : vector<16x128xbf16> to vector<16x128xf32>
    %214 = vector.extract_strided_slice %210 {offsets = [0, 0], sizes = [16, 128], strides = [1, 1]} : vector<16x256xf32> to vector<16x128xf32>
    %215 = arith.addf %213, %214 : vector<16x128xf32>
    %cst_71 = arith.constant 5.000000e-01 : f32
    %216 = vector.broadcast %cst_71 : f32 to vector<16x128xf32>
    %217 = arith.mulf %216, %215 : vector<16x128xf32>
    %218 = math.tanh %217 : vector<16x128xf32>
    %cst_72 = arith.constant 5.000000e-01 : f32
    %219 = vector.broadcast %cst_72 : f32 to vector<16x128xf32>
    %220 = arith.mulf %219, %218 : vector<16x128xf32>
    %cst_73 = arith.constant 5.000000e-01 : f32
    %221 = vector.broadcast %cst_73 : f32 to vector<16x128xf32>
    %222 = arith.addf %220, %221 : vector<16x128xf32>
    %223 = vector.extract_strided_slice %208 {offsets = [0, 128], sizes = [16, 128], strides = [1, 1]} : vector<16x384xbf16> to vector<16x128xbf16>
    %224 = arith.extf %223 : vector<16x128xbf16> to vector<16x128xf32>
    %225 = vector.extract_strided_slice %210 {offsets = [0, 128], sizes = [16, 128], strides = [1, 1]} : vector<16x256xf32> to vector<16x128xf32>
    %226 = arith.addf %224, %225 : vector<16x128xf32>
    %cst_74 = arith.constant 5.000000e-01 : f32
    %227 = vector.broadcast %cst_74 : f32 to vector<16x128xf32>
    %228 = arith.mulf %227, %226 : vector<16x128xf32>
    %229 = math.tanh %228 : vector<16x128xf32>
    %cst_75 = arith.constant 5.000000e-01 : f32
    %230 = vector.broadcast %cst_75 : f32 to vector<16x128xf32>
    %231 = arith.mulf %230, %229 : vector<16x128xf32>
    %cst_76 = arith.constant 5.000000e-01 : f32
    %232 = vector.broadcast %cst_76 : f32 to vector<16x128xf32>
    %233 = arith.addf %231, %232 : vector<16x128xf32>
    %234 = vector.extract_strided_slice %208 {offsets = [0, 256], sizes = [16, 128], strides = [1, 1]} : vector<16x384xbf16> to vector<16x128xbf16>
    %235 = arith.extf %234 : vector<16x128xbf16> to vector<16x128xf32>
    %236 = arith.addf %211, %9 : vector<16x128xf32>
    %237 = arith.mulf %222, %236 : vector<16x128xf32>
    %238 = arith.addf %235, %237 : vector<16x128xf32>
    %239 = math.tanh %238 : vector<16x128xf32>
    %240 = arith.subf %206, %239 : vector<16x128xf32>
    %241 = arith.mulf %233, %240 : vector<16x128xf32>
    %242 = arith.addf %239, %241 : vector<16x128xf32>
    %c4_i32 = arith.constant 4 : i32
    %243 = arith.addi %6, %c4_i32 : i32
    %244 = vector.broadcast %243 : i32 to vector<16x1xi32>
    %245 = arith.cmpi slt, %244, %5 : vector<16x1xi32>
    %cst_77 = arith.constant 0.000000e+00 : f32
    %246 = vector.shape_cast %245 : vector<16x1xi1> to vector<16x1xi1>
    %247 = vector.broadcast %246 : vector<16x1xi1> to vector<16x128xi1>
    %248 = vector.broadcast %cst_77 : f32 to vector<16x128xf32>
    %249 = arith.select %247, %242, %248 : vector<16x128xi1>, vector<16x128xf32>
    %c0_78 = arith.constant 0 : index
    %c4_79 = arith.constant 4 : index
    %c0_80 = arith.constant 0 : index
    %250 = vector.load %arg7[%c0_78, %c4_79, %c0_80] : memref<16x12x128xf32, #tpu.memory_space<vmem>>, vector<16x1x128xf32>
    %251 = vector.shape_cast %250 : vector<16x1x128xf32> to vector<16x128xf32>
    %252 = vector.shape_cast %249 : vector<16x128xf32> to vector<16x1x128xf32>
    tpu.vector_store %arg7[%c0_78, %c4_79, %c0_80], %252 {strides = array<i32>} : memref<16x12x128xf32, #tpu.memory_space<vmem>>, vector<16x1x128xf32>,
    %253 = vector.shape_cast %245 : vector<16x1xi1> to vector<16x1xi1>
    %254 = vector.broadcast %253 : vector<16x1xi1> to vector<16x128xi1>
    %255 = arith.select %254, %242, %206 : vector<16x128xi1>, vector<16x128xf32>
    %c5 = arith.constant 5 : index
    %c0_81 = arith.constant 0 : index
    %c0_82 = arith.constant 0 : index
    %256 = vector.load %arg3[%c5, %c0_81, %c0_82] : memref<12x16x384xbf16, #tpu.memory_space<vmem>>, vector<1x16x384xbf16>
    %257 = vector.shape_cast %256 : vector<1x16x384xbf16> to vector<16x384xbf16>
    %258 = arith.truncf %255 : vector<16x128xf32> to vector<16x128xbf16>
    %cst_83 = arith.constant dense<0.000000e+00> : vector<16x256xf32>
    %259 = tpu.matmul %258, %3, %cst_83 {dimension_numbers = #tpu.dot_dimension_numbers<[1], [0], [0], [1], [0, 0, 1, 1], [], []>} : vector<16x128xbf16>, vector<128x256xbf16>, vector<16x256xf32> -> vector<16x256xf32>
    %cst_84 = arith.constant dense<0.000000e+00> : vector<16x128xf32>
    %260 = tpu.matmul %258, %4, %cst_84 {dimension_numbers = #tpu.dot_dimension_numbers<[1], [0], [0], [1], [0, 0, 1, 1], [], []>} : vector<16x128xbf16>, vector<128x128xbf16>, vector<16x128xf32> -> vector<16x128xf32>
    %261 = vector.extract_strided_slice %257 {offsets = [0, 0], sizes = [16, 128], strides = [1, 1]} : vector<16x384xbf16> to vector<16x128xbf16>
    %262 = arith.extf %261 : vector<16x128xbf16> to vector<16x128xf32>
    %263 = vector.extract_strided_slice %259 {offsets = [0, 0], sizes = [16, 128], strides = [1, 1]} : vector<16x256xf32> to vector<16x128xf32>
    %264 = arith.addf %262, %263 : vector<16x128xf32>
    %cst_85 = arith.constant 5.000000e-01 : f32
    %265 = vector.broadcast %cst_85 : f32 to vector<16x128xf32>
    %266 = arith.mulf %265, %264 : vector<16x128xf32>
    %267 = math.tanh %266 : vector<16x128xf32>
    %cst_86 = arith.constant 5.000000e-01 : f32
    %268 = vector.broadcast %cst_86 : f32 to vector<16x128xf32>
    %269 = arith.mulf %268, %267 : vector<16x128xf32>
    %cst_87 = arith.constant 5.000000e-01 : f32
    %270 = vector.broadcast %cst_87 : f32 to vector<16x128xf32>
    %271 = arith.addf %269, %270 : vector<16x128xf32>
    %272 = vector.extract_strided_slice %257 {offsets = [0, 128], sizes = [16, 128], strides = [1, 1]} : vector<16x384xbf16> to vector<16x128xbf16>
    %273 = arith.extf %272 : vector<16x128xbf16> to vector<16x128xf32>
    %274 = vector.extract_strided_slice %259 {offsets = [0, 128], sizes = [16, 128], strides = [1, 1]} : vector<16x256xf32> to vector<16x128xf32>
    %275 = arith.addf %273, %274 : vector<16x128xf32>
    %cst_88 = arith.constant 5.000000e-01 : f32
    %276 = vector.broadcast %cst_88 : f32 to vector<16x128xf32>
    %277 = arith.mulf %276, %275 : vector<16x128xf32>
    %278 = math.tanh %277 : vector<16x128xf32>
    %cst_89 = arith.constant 5.000000e-01 : f32
    %279 = vector.broadcast %cst_89 : f32 to vector<16x128xf32>
    %280 = arith.mulf %279, %278 : vector<16x128xf32>
    %cst_90 = arith.constant 5.000000e-01 : f32
    %281 = vector.broadcast %cst_90 : f32 to vector<16x128xf32>
    %282 = arith.addf %280, %281 : vector<16x128xf32>
    %283 = vector.extract_strided_slice %257 {offsets = [0, 256], sizes = [16, 128], strides = [1, 1]} : vector<16x384xbf16> to vector<16x128xbf16>
    %284 = arith.extf %283 : vector<16x128xbf16> to vector<16x128xf32>
    %285 = arith.addf %260, %9 : vector<16x128xf32>
    %286 = arith.mulf %271, %285 : vector<16x128xf32>
    %287 = arith.addf %284, %286 : vector<16x128xf32>
    %288 = math.tanh %287 : vector<16x128xf32>
    %289 = arith.subf %255, %288 : vector<16x128xf32>
    %290 = arith.mulf %282, %289 : vector<16x128xf32>
    %291 = arith.addf %288, %290 : vector<16x128xf32>
    %c5_i32 = arith.constant 5 : i32
    %292 = arith.addi %6, %c5_i32 : i32
    %293 = vector.broadcast %292 : i32 to vector<16x1xi32>
    %294 = arith.cmpi slt, %293, %5 : vector<16x1xi32>
    %cst_91 = arith.constant 0.000000e+00 : f32
    %295 = vector.shape_cast %294 : vector<16x1xi1> to vector<16x1xi1>
    %296 = vector.broadcast %295 : vector<16x1xi1> to vector<16x128xi1>
    %297 = vector.broadcast %cst_91 : f32 to vector<16x128xf32>
    %298 = arith.select %296, %291, %297 : vector<16x128xi1>, vector<16x128xf32>
    %c0_92 = arith.constant 0 : index
    %c5_93 = arith.constant 5 : index
    %c0_94 = arith.constant 0 : index
    %299 = vector.load %arg7[%c0_92, %c5_93, %c0_94] : memref<16x12x128xf32, #tpu.memory_space<vmem>>, vector<16x1x128xf32>
    %300 = vector.shape_cast %299 : vector<16x1x128xf32> to vector<16x128xf32>
    %301 = vector.shape_cast %298 : vector<16x128xf32> to vector<16x1x128xf32>
    tpu.vector_store %arg7[%c0_92, %c5_93, %c0_94], %301 {strides = array<i32>} : memref<16x12x128xf32, #tpu.memory_space<vmem>>, vector<16x1x128xf32>,
    %302 = vector.shape_cast %294 : vector<16x1xi1> to vector<16x1xi1>
    %303 = vector.broadcast %302 : vector<16x1xi1> to vector<16x128xi1>
    %304 = arith.select %303, %291, %255 : vector<16x128xi1>, vector<16x128xf32>
    %c6 = arith.constant 6 : index
    %c0_95 = arith.constant 0 : index
    %c0_96 = arith.constant 0 : index
    %305 = vector.load %arg3[%c6, %c0_95, %c0_96] : memref<12x16x384xbf16, #tpu.memory_space<vmem>>, vector<1x16x384xbf16>
    %306 = vector.shape_cast %305 : vector<1x16x384xbf16> to vector<16x384xbf16>
    %307 = arith.truncf %304 : vector<16x128xf32> to vector<16x128xbf16>
    %cst_97 = arith.constant dense<0.000000e+00> : vector<16x256xf32>
    %308 = tpu.matmul %307, %3, %cst_97 {dimension_numbers = #tpu.dot_dimension_numbers<[1], [0], [0], [1], [0, 0, 1, 1], [], []>} : vector<16x128xbf16>, vector<128x256xbf16>, vector<16x256xf32> -> vector<16x256xf32>
    %cst_98 = arith.constant dense<0.000000e+00> : vector<16x128xf32>
    %309 = tpu.matmul %307, %4, %cst_98 {dimension_numbers = #tpu.dot_dimension_numbers<[1], [0], [0], [1], [0, 0, 1, 1], [], []>} : vector<16x128xbf16>, vector<128x128xbf16>, vector<16x128xf32> -> vector<16x128xf32>
    %310 = vector.extract_strided_slice %306 {offsets = [0, 0], sizes = [16, 128], strides = [1, 1]} : vector<16x384xbf16> to vector<16x128xbf16>
    %311 = arith.extf %310 : vector<16x128xbf16> to vector<16x128xf32>
    %312 = vector.extract_strided_slice %308 {offsets = [0, 0], sizes = [16, 128], strides = [1, 1]} : vector<16x256xf32> to vector<16x128xf32>
    %313 = arith.addf %311, %312 : vector<16x128xf32>
    %cst_99 = arith.constant 5.000000e-01 : f32
    %314 = vector.broadcast %cst_99 : f32 to vector<16x128xf32>
    %315 = arith.mulf %314, %313 : vector<16x128xf32>
    %316 = math.tanh %315 : vector<16x128xf32>
    %cst_100 = arith.constant 5.000000e-01 : f32
    %317 = vector.broadcast %cst_100 : f32 to vector<16x128xf32>
    %318 = arith.mulf %317, %316 : vector<16x128xf32>
    %cst_101 = arith.constant 5.000000e-01 : f32
    %319 = vector.broadcast %cst_101 : f32 to vector<16x128xf32>
    %320 = arith.addf %318, %319 : vector<16x128xf32>
    %321 = vector.extract_strided_slice %306 {offsets = [0, 128], sizes = [16, 128], strides = [1, 1]} : vector<16x384xbf16> to vector<16x128xbf16>
    %322 = arith.extf %321 : vector<16x128xbf16> to vector<16x128xf32>
    %323 = vector.extract_strided_slice %308 {offsets = [0, 128], sizes = [16, 128], strides = [1, 1]} : vector<16x256xf32> to vector<16x128xf32>
    %324 = arith.addf %322, %323 : vector<16x128xf32>
    %cst_102 = arith.constant 5.000000e-01 : f32
    %325 = vector.broadcast %cst_102 : f32 to vector<16x128xf32>
    %326 = arith.mulf %325, %324 : vector<16x128xf32>
    %327 = math.tanh %326 : vector<16x128xf32>
    %cst_103 = arith.constant 5.000000e-01 : f32
    %328 = vector.broadcast %cst_103 : f32 to vector<16x128xf32>
    %329 = arith.mulf %328, %327 : vector<16x128xf32>
    %cst_104 = arith.constant 5.000000e-01 : f32
    %330 = vector.broadcast %cst_104 : f32 to vector<16x128xf32>
    %331 = arith.addf %329, %330 : vector<16x128xf32>
    %332 = vector.extract_strided_slice %306 {offsets = [0, 256], sizes = [16, 128], strides = [1, 1]} : vector<16x384xbf16> to vector<16x128xbf16>
    %333 = arith.extf %332 : vector<16x128xbf16> to vector<16x128xf32>
    %334 = arith.addf %309, %9 : vector<16x128xf32>
    %335 = arith.mulf %320, %334 : vector<16x128xf32>
    %336 = arith.addf %333, %335 : vector<16x128xf32>
    %337 = math.tanh %336 : vector<16x128xf32>
    %338 = arith.subf %304, %337 : vector<16x128xf32>
    %339 = arith.mulf %331, %338 : vector<16x128xf32>
    %340 = arith.addf %337, %339 : vector<16x128xf32>
    %c6_i32 = arith.constant 6 : i32
    %341 = arith.addi %6, %c6_i32 : i32
    %342 = vector.broadcast %341 : i32 to vector<16x1xi32>
    %343 = arith.cmpi slt, %342, %5 : vector<16x1xi32>
    %cst_105 = arith.constant 0.000000e+00 : f32
    %344 = vector.shape_cast %343 : vector<16x1xi1> to vector<16x1xi1>
    %345 = vector.broadcast %344 : vector<16x1xi1> to vector<16x128xi1>
    %346 = vector.broadcast %cst_105 : f32 to vector<16x128xf32>
    %347 = arith.select %345, %340, %346 : vector<16x128xi1>, vector<16x128xf32>
    %c0_106 = arith.constant 0 : index
    %c6_107 = arith.constant 6 : index
    %c0_108 = arith.constant 0 : index
    %348 = vector.load %arg7[%c0_106, %c6_107, %c0_108] : memref<16x12x128xf32, #tpu.memory_space<vmem>>, vector<16x1x128xf32>
    %349 = vector.shape_cast %348 : vector<16x1x128xf32> to vector<16x128xf32>
    %350 = vector.shape_cast %347 : vector<16x128xf32> to vector<16x1x128xf32>
    tpu.vector_store %arg7[%c0_106, %c6_107, %c0_108], %350 {strides = array<i32>} : memref<16x12x128xf32, #tpu.memory_space<vmem>>, vector<16x1x128xf32>,
    %351 = vector.shape_cast %343 : vector<16x1xi1> to vector<16x1xi1>
    %352 = vector.broadcast %351 : vector<16x1xi1> to vector<16x128xi1>
    %353 = arith.select %352, %340, %304 : vector<16x128xi1>, vector<16x128xf32>
    %c7 = arith.constant 7 : index
    %c0_109 = arith.constant 0 : index
    %c0_110 = arith.constant 0 : index
    %354 = vector.load %arg3[%c7, %c0_109, %c0_110] : memref<12x16x384xbf16, #tpu.memory_space<vmem>>, vector<1x16x384xbf16>
    %355 = vector.shape_cast %354 : vector<1x16x384xbf16> to vector<16x384xbf16>
    %356 = arith.truncf %353 : vector<16x128xf32> to vector<16x128xbf16>
    %cst_111 = arith.constant dense<0.000000e+00> : vector<16x256xf32>
    %357 = tpu.matmul %356, %3, %cst_111 {dimension_numbers = #tpu.dot_dimension_numbers<[1], [0], [0], [1], [0, 0, 1, 1], [], []>} : vector<16x128xbf16>, vector<128x256xbf16>, vector<16x256xf32> -> vector<16x256xf32>
    %cst_112 = arith.constant dense<0.000000e+00> : vector<16x128xf32>
    %358 = tpu.matmul %356, %4, %cst_112 {dimension_numbers = #tpu.dot_dimension_numbers<[1], [0], [0], [1], [0, 0, 1, 1], [], []>} : vector<16x128xbf16>, vector<128x128xbf16>, vector<16x128xf32> -> vector<16x128xf32>
    %359 = vector.extract_strided_slice %355 {offsets = [0, 0], sizes = [16, 128], strides = [1, 1]} : vector<16x384xbf16> to vector<16x128xbf16>
    %360 = arith.extf %359 : vector<16x128xbf16> to vector<16x128xf32>
    %361 = vector.extract_strided_slice %357 {offsets = [0, 0], sizes = [16, 128], strides = [1, 1]} : vector<16x256xf32> to vector<16x128xf32>
    %362 = arith.addf %360, %361 : vector<16x128xf32>
    %cst_113 = arith.constant 5.000000e-01 : f32
    %363 = vector.broadcast %cst_113 : f32 to vector<16x128xf32>
    %364 = arith.mulf %363, %362 : vector<16x128xf32>
    %365 = math.tanh %364 : vector<16x128xf32>
    %cst_114 = arith.constant 5.000000e-01 : f32
    %366 = vector.broadcast %cst_114 : f32 to vector<16x128xf32>
    %367 = arith.mulf %366, %365 : vector<16x128xf32>
    %cst_115 = arith.constant 5.000000e-01 : f32
    %368 = vector.broadcast %cst_115 : f32 to vector<16x128xf32>
    %369 = arith.addf %367, %368 : vector<16x128xf32>
    %370 = vector.extract_strided_slice %355 {offsets = [0, 128], sizes = [16, 128], strides = [1, 1]} : vector<16x384xbf16> to vector<16x128xbf16>
    %371 = arith.extf %370 : vector<16x128xbf16> to vector<16x128xf32>
    %372 = vector.extract_strided_slice %357 {offsets = [0, 128], sizes = [16, 128], strides = [1, 1]} : vector<16x256xf32> to vector<16x128xf32>
    %373 = arith.addf %371, %372 : vector<16x128xf32>
    %cst_116 = arith.constant 5.000000e-01 : f32
    %374 = vector.broadcast %cst_116 : f32 to vector<16x128xf32>
    %375 = arith.mulf %374, %373 : vector<16x128xf32>
    %376 = math.tanh %375 : vector<16x128xf32>
    %cst_117 = arith.constant 5.000000e-01 : f32
    %377 = vector.broadcast %cst_117 : f32 to vector<16x128xf32>
    %378 = arith.mulf %377, %376 : vector<16x128xf32>
    %cst_118 = arith.constant 5.000000e-01 : f32
    %379 = vector.broadcast %cst_118 : f32 to vector<16x128xf32>
    %380 = arith.addf %378, %379 : vector<16x128xf32>
    %381 = vector.extract_strided_slice %355 {offsets = [0, 256], sizes = [16, 128], strides = [1, 1]} : vector<16x384xbf16> to vector<16x128xbf16>
    %382 = arith.extf %381 : vector<16x128xbf16> to vector<16x128xf32>
    %383 = arith.addf %358, %9 : vector<16x128xf32>
    %384 = arith.mulf %369, %383 : vector<16x128xf32>
    %385 = arith.addf %382, %384 : vector<16x128xf32>
    %386 = math.tanh %385 : vector<16x128xf32>
    %387 = arith.subf %353, %386 : vector<16x128xf32>
    %388 = arith.mulf %380, %387 : vector<16x128xf32>
    %389 = arith.addf %386, %388 : vector<16x128xf32>
    %c7_i32 = arith.constant 7 : i32
    %390 = arith.addi %6, %c7_i32 : i32
    %391 = vector.broadcast %390 : i32 to vector<16x1xi32>
    %392 = arith.cmpi slt, %391, %5 : vector<16x1xi32>
    %cst_119 = arith.constant 0.000000e+00 : f32
    %393 = vector.shape_cast %392 : vector<16x1xi1> to vector<16x1xi1>
    %394 = vector.broadcast %393 : vector<16x1xi1> to vector<16x128xi1>
    %395 = vector.broadcast %cst_119 : f32 to vector<16x128xf32>
    %396 = arith.select %394, %389, %395 : vector<16x128xi1>, vector<16x128xf32>
    %c0_120 = arith.constant 0 : index
    %c7_121 = arith.constant 7 : index
    %c0_122 = arith.constant 0 : index
    %397 = vector.load %arg7[%c0_120, %c7_121, %c0_122] : memref<16x12x128xf32, #tpu.memory_space<vmem>>, vector<16x1x128xf32>
    %398 = vector.shape_cast %397 : vector<16x1x128xf32> to vector<16x128xf32>
    %399 = vector.shape_cast %396 : vector<16x128xf32> to vector<16x1x128xf32>
    tpu.vector_store %arg7[%c0_120, %c7_121, %c0_122], %399 {strides = array<i32>} : memref<16x12x128xf32, #tpu.memory_space<vmem>>, vector<16x1x128xf32>,
    %400 = vector.shape_cast %392 : vector<16x1xi1> to vector<16x1xi1>
    %401 = vector.broadcast %400 : vector<16x1xi1> to vector<16x128xi1>
    %402 = arith.select %401, %389, %353 : vector<16x128xi1>, vector<16x128xf32>
    %c8 = arith.constant 8 : index
    %c0_123 = arith.constant 0 : index
    %c0_124 = arith.constant 0 : index
    %403 = vector.load %arg3[%c8, %c0_123, %c0_124] : memref<12x16x384xbf16, #tpu.memory_space<vmem>>, vector<1x16x384xbf16>
    %404 = vector.shape_cast %403 : vector<1x16x384xbf16> to vector<16x384xbf16>
    %405 = arith.truncf %402 : vector<16x128xf32> to vector<16x128xbf16>
    %cst_125 = arith.constant dense<0.000000e+00> : vector<16x256xf32>
    %406 = tpu.matmul %405, %3, %cst_125 {dimension_numbers = #tpu.dot_dimension_numbers<[1], [0], [0], [1], [0, 0, 1, 1], [], []>} : vector<16x128xbf16>, vector<128x256xbf16>, vector<16x256xf32> -> vector<16x256xf32>
    %cst_126 = arith.constant dense<0.000000e+00> : vector<16x128xf32>
    %407 = tpu.matmul %405, %4, %cst_126 {dimension_numbers = #tpu.dot_dimension_numbers<[1], [0], [0], [1], [0, 0, 1, 1], [], []>} : vector<16x128xbf16>, vector<128x128xbf16>, vector<16x128xf32> -> vector<16x128xf32>
    %408 = vector.extract_strided_slice %404 {offsets = [0, 0], sizes = [16, 128], strides = [1, 1]} : vector<16x384xbf16> to vector<16x128xbf16>
    %409 = arith.extf %408 : vector<16x128xbf16> to vector<16x128xf32>
    %410 = vector.extract_strided_slice %406 {offsets = [0, 0], sizes = [16, 128], strides = [1, 1]} : vector<16x256xf32> to vector<16x128xf32>
    %411 = arith.addf %409, %410 : vector<16x128xf32>
    %cst_127 = arith.constant 5.000000e-01 : f32
    %412 = vector.broadcast %cst_127 : f32 to vector<16x128xf32>
    %413 = arith.mulf %412, %411 : vector<16x128xf32>
    %414 = math.tanh %413 : vector<16x128xf32>
    %cst_128 = arith.constant 5.000000e-01 : f32
    %415 = vector.broadcast %cst_128 : f32 to vector<16x128xf32>
    %416 = arith.mulf %415, %414 : vector<16x128xf32>
    %cst_129 = arith.constant 5.000000e-01 : f32
    %417 = vector.broadcast %cst_129 : f32 to vector<16x128xf32>
    %418 = arith.addf %416, %417 : vector<16x128xf32>
    %419 = vector.extract_strided_slice %404 {offsets = [0, 128], sizes = [16, 128], strides = [1, 1]} : vector<16x384xbf16> to vector<16x128xbf16>
    %420 = arith.extf %419 : vector<16x128xbf16> to vector<16x128xf32>
    %421 = vector.extract_strided_slice %406 {offsets = [0, 128], sizes = [16, 128], strides = [1, 1]} : vector<16x256xf32> to vector<16x128xf32>
    %422 = arith.addf %420, %421 : vector<16x128xf32>
    %cst_130 = arith.constant 5.000000e-01 : f32
    %423 = vector.broadcast %cst_130 : f32 to vector<16x128xf32>
    %424 = arith.mulf %423, %422 : vector<16x128xf32>
    %425 = math.tanh %424 : vector<16x128xf32>
    %cst_131 = arith.constant 5.000000e-01 : f32
    %426 = vector.broadcast %cst_131 : f32 to vector<16x128xf32>
    %427 = arith.mulf %426, %425 : vector<16x128xf32>
    %cst_132 = arith.constant 5.000000e-01 : f32
    %428 = vector.broadcast %cst_132 : f32 to vector<16x128xf32>
    %429 = arith.addf %427, %428 : vector<16x128xf32>
    %430 = vector.extract_strided_slice %404 {offsets = [0, 256], sizes = [16, 128], strides = [1, 1]} : vector<16x384xbf16> to vector<16x128xbf16>
    %431 = arith.extf %430 : vector<16x128xbf16> to vector<16x128xf32>
    %432 = arith.addf %407, %9 : vector<16x128xf32>
    %433 = arith.mulf %418, %432 : vector<16x128xf32>
    %434 = arith.addf %431, %433 : vector<16x128xf32>
    %435 = math.tanh %434 : vector<16x128xf32>
    %436 = arith.subf %402, %435 : vector<16x128xf32>
    %437 = arith.mulf %429, %436 : vector<16x128xf32>
    %438 = arith.addf %435, %437 : vector<16x128xf32>
    %c8_i32 = arith.constant 8 : i32
    %439 = arith.addi %6, %c8_i32 : i32
    %440 = vector.broadcast %439 : i32 to vector<16x1xi32>
    %441 = arith.cmpi slt, %440, %5 : vector<16x1xi32>
    %cst_133 = arith.constant 0.000000e+00 : f32
    %442 = vector.shape_cast %441 : vector<16x1xi1> to vector<16x1xi1>
    %443 = vector.broadcast %442 : vector<16x1xi1> to vector<16x128xi1>
    %444 = vector.broadcast %cst_133 : f32 to vector<16x128xf32>
    %445 = arith.select %443, %438, %444 : vector<16x128xi1>, vector<16x128xf32>
    %c0_134 = arith.constant 0 : index
    %c8_135 = arith.constant 8 : index
    %c0_136 = arith.constant 0 : index
    %446 = vector.load %arg7[%c0_134, %c8_135, %c0_136] : memref<16x12x128xf32, #tpu.memory_space<vmem>>, vector<16x1x128xf32>
    %447 = vector.shape_cast %446 : vector<16x1x128xf32> to vector<16x128xf32>
    %448 = vector.shape_cast %445 : vector<16x128xf32> to vector<16x1x128xf32>
    tpu.vector_store %arg7[%c0_134, %c8_135, %c0_136], %448 {strides = array<i32>} : memref<16x12x128xf32, #tpu.memory_space<vmem>>, vector<16x1x128xf32>,
    %449 = vector.shape_cast %441 : vector<16x1xi1> to vector<16x1xi1>
    %450 = vector.broadcast %449 : vector<16x1xi1> to vector<16x128xi1>
    %451 = arith.select %450, %438, %402 : vector<16x128xi1>, vector<16x128xf32>
    %c9 = arith.constant 9 : index
    %c0_137 = arith.constant 0 : index
    %c0_138 = arith.constant 0 : index
    %452 = vector.load %arg3[%c9, %c0_137, %c0_138] : memref<12x16x384xbf16, #tpu.memory_space<vmem>>, vector<1x16x384xbf16>
    %453 = vector.shape_cast %452 : vector<1x16x384xbf16> to vector<16x384xbf16>
    %454 = arith.truncf %451 : vector<16x128xf32> to vector<16x128xbf16>
    %cst_139 = arith.constant dense<0.000000e+00> : vector<16x256xf32>
    %455 = tpu.matmul %454, %3, %cst_139 {dimension_numbers = #tpu.dot_dimension_numbers<[1], [0], [0], [1], [0, 0, 1, 1], [], []>} : vector<16x128xbf16>, vector<128x256xbf16>, vector<16x256xf32> -> vector<16x256xf32>
    %cst_140 = arith.constant dense<0.000000e+00> : vector<16x128xf32>
    %456 = tpu.matmul %454, %4, %cst_140 {dimension_numbers = #tpu.dot_dimension_numbers<[1], [0], [0], [1], [0, 0, 1, 1], [], []>} : vector<16x128xbf16>, vector<128x128xbf16>, vector<16x128xf32> -> vector<16x128xf32>
    %457 = vector.extract_strided_slice %453 {offsets = [0, 0], sizes = [16, 128], strides = [1, 1]} : vector<16x384xbf16> to vector<16x128xbf16>
    %458 = arith.extf %457 : vector<16x128xbf16> to vector<16x128xf32>
    %459 = vector.extract_strided_slice %455 {offsets = [0, 0], sizes = [16, 128], strides = [1, 1]} : vector<16x256xf32> to vector<16x128xf32>
    %460 = arith.addf %458, %459 : vector<16x128xf32>
    %cst_141 = arith.constant 5.000000e-01 : f32
    %461 = vector.broadcast %cst_141 : f32 to vector<16x128xf32>
    %462 = arith.mulf %461, %460 : vector<16x128xf32>
    %463 = math.tanh %462 : vector<16x128xf32>
    %cst_142 = arith.constant 5.000000e-01 : f32
    %464 = vector.broadcast %cst_142 : f32 to vector<16x128xf32>
    %465 = arith.mulf %464, %463 : vector<16x128xf32>
    %cst_143 = arith.constant 5.000000e-01 : f32
    %466 = vector.broadcast %cst_143 : f32 to vector<16x128xf32>
    %467 = arith.addf %465, %466 : vector<16x128xf32>
    %468 = vector.extract_strided_slice %453 {offsets = [0, 128], sizes = [16, 128], strides = [1, 1]} : vector<16x384xbf16> to vector<16x128xbf16>
    %469 = arith.extf %468 : vector<16x128xbf16> to vector<16x128xf32>
    %470 = vector.extract_strided_slice %455 {offsets = [0, 128], sizes = [16, 128], strides = [1, 1]} : vector<16x256xf32> to vector<16x128xf32>
    %471 = arith.addf %469, %470 : vector<16x128xf32>
    %cst_144 = arith.constant 5.000000e-01 : f32
    %472 = vector.broadcast %cst_144 : f32 to vector<16x128xf32>
    %473 = arith.mulf %472, %471 : vector<16x128xf32>
    %474 = math.tanh %473 : vector<16x128xf32>
    %cst_145 = arith.constant 5.000000e-01 : f32
    %475 = vector.broadcast %cst_145 : f32 to vector<16x128xf32>
    %476 = arith.mulf %475, %474 : vector<16x128xf32>
    %cst_146 = arith.constant 5.000000e-01 : f32
    %477 = vector.broadcast %cst_146 : f32 to vector<16x128xf32>
    %478 = arith.addf %476, %477 : vector<16x128xf32>
    %479 = vector.extract_strided_slice %453 {offsets = [0, 256], sizes = [16, 128], strides = [1, 1]} : vector<16x384xbf16> to vector<16x128xbf16>
    %480 = arith.extf %479 : vector<16x128xbf16> to vector<16x128xf32>
    %481 = arith.addf %456, %9 : vector<16x128xf32>
    %482 = arith.mulf %467, %481 : vector<16x128xf32>
    %483 = arith.addf %480, %482 : vector<16x128xf32>
    %484 = math.tanh %483 : vector<16x128xf32>
    %485 = arith.subf %451, %484 : vector<16x128xf32>
    %486 = arith.mulf %478, %485 : vector<16x128xf32>
    %487 = arith.addf %484, %486 : vector<16x128xf32>
    %c9_i32 = arith.constant 9 : i32
    %488 = arith.addi %6, %c9_i32 : i32
    %489 = vector.broadcast %488 : i32 to vector<16x1xi32>
    %490 = arith.cmpi slt, %489, %5 : vector<16x1xi32>
    %cst_147 = arith.constant 0.000000e+00 : f32
    %491 = vector.shape_cast %490 : vector<16x1xi1> to vector<16x1xi1>
    %492 = vector.broadcast %491 : vector<16x1xi1> to vector<16x128xi1>
    %493 = vector.broadcast %cst_147 : f32 to vector<16x128xf32>
    %494 = arith.select %492, %487, %493 : vector<16x128xi1>, vector<16x128xf32>
    %c0_148 = arith.constant 0 : index
    %c9_149 = arith.constant 9 : index
    %c0_150 = arith.constant 0 : index
    %495 = vector.load %arg7[%c0_148, %c9_149, %c0_150] : memref<16x12x128xf32, #tpu.memory_space<vmem>>, vector<16x1x128xf32>
    %496 = vector.shape_cast %495 : vector<16x1x128xf32> to vector<16x128xf32>
    %497 = vector.shape_cast %494 : vector<16x128xf32> to vector<16x1x128xf32>
    tpu.vector_store %arg7[%c0_148, %c9_149, %c0_150], %497 {strides = array<i32>} : memref<16x12x128xf32, #tpu.memory_space<vmem>>, vector<16x1x128xf32>,
    %498 = vector.shape_cast %490 : vector<16x1xi1> to vector<16x1xi1>
    %499 = vector.broadcast %498 : vector<16x1xi1> to vector<16x128xi1>
    %500 = arith.select %499, %487, %451 : vector<16x128xi1>, vector<16x128xf32>
    %c10 = arith.constant 10 : index
    %c0_151 = arith.constant 0 : index
    %c0_152 = arith.constant 0 : index
    %501 = vector.load %arg3[%c10, %c0_151, %c0_152] : memref<12x16x384xbf16, #tpu.memory_space<vmem>>, vector<1x16x384xbf16>
    %502 = vector.shape_cast %501 : vector<1x16x384xbf16> to vector<16x384xbf16>
    %503 = arith.truncf %500 : vector<16x128xf32> to vector<16x128xbf16>
    %cst_153 = arith.constant dense<0.000000e+00> : vector<16x256xf32>
    %504 = tpu.matmul %503, %3, %cst_153 {dimension_numbers = #tpu.dot_dimension_numbers<[1], [0], [0], [1], [0, 0, 1, 1], [], []>} : vector<16x128xbf16>, vector<128x256xbf16>, vector<16x256xf32> -> vector<16x256xf32>
    %cst_154 = arith.constant dense<0.000000e+00> : vector<16x128xf32>
    %505 = tpu.matmul %503, %4, %cst_154 {dimension_numbers = #tpu.dot_dimension_numbers<[1], [0], [0], [1], [0, 0, 1, 1], [], []>} : vector<16x128xbf16>, vector<128x128xbf16>, vector<16x128xf32> -> vector<16x128xf32>
    %506 = vector.extract_strided_slice %502 {offsets = [0, 0], sizes = [16, 128], strides = [1, 1]} : vector<16x384xbf16> to vector<16x128xbf16>
    %507 = arith.extf %506 : vector<16x128xbf16> to vector<16x128xf32>
    %508 = vector.extract_strided_slice %504 {offsets = [0, 0], sizes = [16, 128], strides = [1, 1]} : vector<16x256xf32> to vector<16x128xf32>
    %509 = arith.addf %507, %508 : vector<16x128xf32>
    %cst_155 = arith.constant 5.000000e-01 : f32
    %510 = vector.broadcast %cst_155 : f32 to vector<16x128xf32>
    %511 = arith.mulf %510, %509 : vector<16x128xf32>
    %512 = math.tanh %511 : vector<16x128xf32>
    %cst_156 = arith.constant 5.000000e-01 : f32
    %513 = vector.broadcast %cst_156 : f32 to vector<16x128xf32>
    %514 = arith.mulf %513, %512 : vector<16x128xf32>
    %cst_157 = arith.constant 5.000000e-01 : f32
    %515 = vector.broadcast %cst_157 : f32 to vector<16x128xf32>
    %516 = arith.addf %514, %515 : vector<16x128xf32>
    %517 = vector.extract_strided_slice %502 {offsets = [0, 128], sizes = [16, 128], strides = [1, 1]} : vector<16x384xbf16> to vector<16x128xbf16>
    %518 = arith.extf %517 : vector<16x128xbf16> to vector<16x128xf32>
    %519 = vector.extract_strided_slice %504 {offsets = [0, 128], sizes = [16, 128], strides = [1, 1]} : vector<16x256xf32> to vector<16x128xf32>
    %520 = arith.addf %518, %519 : vector<16x128xf32>
    %cst_158 = arith.constant 5.000000e-01 : f32
    %521 = vector.broadcast %cst_158 : f32 to vector<16x128xf32>
    %522 = arith.mulf %521, %520 : vector<16x128xf32>
    %523 = math.tanh %522 : vector<16x128xf32>
    %cst_159 = arith.constant 5.000000e-01 : f32
    %524 = vector.broadcast %cst_159 : f32 to vector<16x128xf32>
    %525 = arith.mulf %524, %523 : vector<16x128xf32>
    %cst_160 = arith.constant 5.000000e-01 : f32
    %526 = vector.broadcast %cst_160 : f32 to vector<16x128xf32>
    %527 = arith.addf %525, %526 : vector<16x128xf32>
    %528 = vector.extract_strided_slice %502 {offsets = [0, 256], sizes = [16, 128], strides = [1, 1]} : vector<16x384xbf16> to vector<16x128xbf16>
    %529 = arith.extf %528 : vector<16x128xbf16> to vector<16x128xf32>
    %530 = arith.addf %505, %9 : vector<16x128xf32>
    %531 = arith.mulf %516, %530 : vector<16x128xf32>
    %532 = arith.addf %529, %531 : vector<16x128xf32>
    %533 = math.tanh %532 : vector<16x128xf32>
    %534 = arith.subf %500, %533 : vector<16x128xf32>
    %535 = arith.mulf %527, %534 : vector<16x128xf32>
    %536 = arith.addf %533, %535 : vector<16x128xf32>
    %c10_i32 = arith.constant 10 : i32
    %537 = arith.addi %6, %c10_i32 : i32
    %538 = vector.broadcast %537 : i32 to vector<16x1xi32>
    %539 = arith.cmpi slt, %538, %5 : vector<16x1xi32>
    %cst_161 = arith.constant 0.000000e+00 : f32
    %540 = vector.shape_cast %539 : vector<16x1xi1> to vector<16x1xi1>
    %541 = vector.broadcast %540 : vector<16x1xi1> to vector<16x128xi1>
    %542 = vector.broadcast %cst_161 : f32 to vector<16x128xf32>
    %543 = arith.select %541, %536, %542 : vector<16x128xi1>, vector<16x128xf32>
    %c0_162 = arith.constant 0 : index
    %c10_163 = arith.constant 10 : index
    %c0_164 = arith.constant 0 : index
    %544 = vector.load %arg7[%c0_162, %c10_163, %c0_164] : memref<16x12x128xf32, #tpu.memory_space<vmem>>, vector<16x1x128xf32>
    %545 = vector.shape_cast %544 : vector<16x1x128xf32> to vector<16x128xf32>
    %546 = vector.shape_cast %543 : vector<16x128xf32> to vector<16x1x128xf32>
    tpu.vector_store %arg7[%c0_162, %c10_163, %c0_164], %546 {strides = array<i32>} : memref<16x12x128xf32, #tpu.memory_space<vmem>>, vector<16x1x128xf32>,
    %547 = vector.shape_cast %539 : vector<16x1xi1> to vector<16x1xi1>
    %548 = vector.broadcast %547 : vector<16x1xi1> to vector<16x128xi1>
    %549 = arith.select %548, %536, %500 : vector<16x128xi1>, vector<16x128xf32>
    %c11 = arith.constant 11 : index
    %c0_165 = arith.constant 0 : index
    %c0_166 = arith.constant 0 : index
    %550 = vector.load %arg3[%c11, %c0_165, %c0_166] : memref<12x16x384xbf16, #tpu.memory_space<vmem>>, vector<1x16x384xbf16>
    %551 = vector.shape_cast %550 : vector<1x16x384xbf16> to vector<16x384xbf16>
    %552 = arith.truncf %549 : vector<16x128xf32> to vector<16x128xbf16>
    %cst_167 = arith.constant dense<0.000000e+00> : vector<16x256xf32>
    %553 = tpu.matmul %552, %3, %cst_167 {dimension_numbers = #tpu.dot_dimension_numbers<[1], [0], [0], [1], [0, 0, 1, 1], [], []>} : vector<16x128xbf16>, vector<128x256xbf16>, vector<16x256xf32> -> vector<16x256xf32>
    %cst_168 = arith.constant dense<0.000000e+00> : vector<16x128xf32>
    %554 = tpu.matmul %552, %4, %cst_168 {dimension_numbers = #tpu.dot_dimension_numbers<[1], [0], [0], [1], [0, 0, 1, 1], [], []>} : vector<16x128xbf16>, vector<128x128xbf16>, vector<16x128xf32> -> vector<16x128xf32>
    %555 = vector.extract_strided_slice %551 {offsets = [0, 0], sizes = [16, 128], strides = [1, 1]} : vector<16x384xbf16> to vector<16x128xbf16>
    %556 = arith.extf %555 : vector<16x128xbf16> to vector<16x128xf32>
    %557 = vector.extract_strided_slice %553 {offsets = [0, 0], sizes = [16, 128], strides = [1, 1]} : vector<16x256xf32> to vector<16x128xf32>
    %558 = arith.addf %556, %557 : vector<16x128xf32>
    %cst_169 = arith.constant 5.000000e-01 : f32
    %559 = vector.broadcast %cst_169 : f32 to vector<16x128xf32>
    %560 = arith.mulf %559, %558 : vector<16x128xf32>
    %561 = math.tanh %560 : vector<16x128xf32>
    %cst_170 = arith.constant 5.000000e-01 : f32
    %562 = vector.broadcast %cst_170 : f32 to vector<16x128xf32>
    %563 = arith.mulf %562, %561 : vector<16x128xf32>
    %cst_171 = arith.constant 5.000000e-01 : f32
    %564 = vector.broadcast %cst_171 : f32 to vector<16x128xf32>
    %565 = arith.addf %563, %564 : vector<16x128xf32>
    %566 = vector.extract_strided_slice %551 {offsets = [0, 128], sizes = [16, 128], strides = [1, 1]} : vector<16x384xbf16> to vector<16x128xbf16>
    %567 = arith.extf %566 : vector<16x128xbf16> to vector<16x128xf32>
    %568 = vector.extract_strided_slice %553 {offsets = [0, 128], sizes = [16, 128], strides = [1, 1]} : vector<16x256xf32> to vector<16x128xf32>
    %569 = arith.addf %567, %568 : vector<16x128xf32>
    %cst_172 = arith.constant 5.000000e-01 : f32
    %570 = vector.broadcast %cst_172 : f32 to vector<16x128xf32>
    %571 = arith.mulf %570, %569 : vector<16x128xf32>
    %572 = math.tanh %571 : vector<16x128xf32>
    %cst_173 = arith.constant 5.000000e-01 : f32
    %573 = vector.broadcast %cst_173 : f32 to vector<16x128xf32>
    %574 = arith.mulf %573, %572 : vector<16x128xf32>
    %cst_174 = arith.constant 5.000000e-01 : f32
    %575 = vector.broadcast %cst_174 : f32 to vector<16x128xf32>
    %576 = arith.addf %574, %575 : vector<16x128xf32>
    %577 = vector.extract_strided_slice %551 {offsets = [0, 256], sizes = [16, 128], strides = [1, 1]} : vector<16x384xbf16> to vector<16x128xbf16>
    %578 = arith.extf %577 : vector<16x128xbf16> to vector<16x128xf32>
    %579 = arith.addf %554, %9 : vector<16x128xf32>
    %580 = arith.mulf %565, %579 : vector<16x128xf32>
    %581 = arith.addf %578, %580 : vector<16x128xf32>
    %582 = math.tanh %581 : vector<16x128xf32>
    %583 = arith.subf %549, %582 : vector<16x128xf32>
    %584 = arith.mulf %576, %583 : vector<16x128xf32>
    %585 = arith.addf %582, %584 : vector<16x128xf32>
    %c11_i32 = arith.constant 11 : i32
    %586 = arith.addi %6, %c11_i32 : i32
    %587 = vector.broadcast %586 : i32 to vector<16x1xi32>
    %588 = arith.cmpi slt, %587, %5 : vector<16x1xi32>
    %cst_175 = arith.constant 0.000000e+00 : f32
    %589 = vector.shape_cast %588 : vector<16x1xi1> to vector<16x1xi1>
    %590 = vector.broadcast %589 : vector<16x1xi1> to vector<16x128xi1>
    %591 = vector.broadcast %cst_175 : f32 to vector<16x128xf32>
    %592 = arith.select %590, %585, %591 : vector<16x128xi1>, vector<16x128xf32>
    %c0_176 = arith.constant 0 : index
    %c11_177 = arith.constant 11 : index
    %c0_178 = arith.constant 0 : index
    %593 = vector.load %arg7[%c0_176, %c11_177, %c0_178] : memref<16x12x128xf32, #tpu.memory_space<vmem>>, vector<16x1x128xf32>
    %594 = vector.shape_cast %593 : vector<16x1x128xf32> to vector<16x128xf32>
    %595 = vector.shape_cast %592 : vector<16x128xf32> to vector<16x1x128xf32>
    tpu.vector_store %arg7[%c0_176, %c11_177, %c0_178], %595 {strides = array<i32>} : memref<16x12x128xf32, #tpu.memory_space<vmem>>, vector<16x1x128xf32>,
    %596 = vector.shape_cast %588 : vector<16x1xi1> to vector<16x1xi1>
    %597 = vector.broadcast %596 : vector<16x1xi1> to vector<16x128xi1>
    %598 = arith.select %597, %585, %549 : vector<16x128xi1>, vector<16x128xf32>
    %c0_179 = arith.constant 0 : index
    %c0_180 = arith.constant 0 : index
    %599 = vector.load %arg9[%c0_179, %c0_180] : memref<16x128xf32, #tpu.memory_space<vmem>>, vector<16x128xf32>
    tpu.vector_store %arg9[%c0_179, %c0_180], %598 {strides = array<i32>} : memref<16x128xf32, #tpu.memory_space<vmem>>, vector<16x128xf32>,
    %c0_i32_181 = arith.constant 0 : i32
    %600 = arith.cmpi eq, %arg1, %c0_i32_181 : i32
    %601 = arith.extui %600 : i1 to i32
    %c0_i32_182 = arith.constant 0 : i32
    %602 = arith.cmpi ne, %601, %c0_i32_182 : i32
    scf.if %602 {
      %c0_183 = arith.constant 0 : index
      %c0_184 = arith.constant 0 : index
      %603 = vector.load %arg9[%c0_183, %c0_184] : memref<16x128xf32, #tpu.memory_space<vmem>>, vector<16x128xf32>
      %c0_185 = arith.constant 0 : index
      %c0_186 = arith.constant 0 : index
      %604 = vector.load %arg8[%c0_185, %c0_186] : memref<16x128xf32, #tpu.memory_space<vmem>>, vector<16x128xf32>
      tpu.vector_store %arg8[%c0_185, %c0_186], %603 {strides = array<i32>} : memref<16x128xf32, #tpu.memory_space<vmem>>, vector<16x128xf32>,
    } else {
    }
    return
  }
  func.func @transform_0(%arg0: i32, %arg1: i32) -> (i32, i32) {
    %c0_i32 = arith.constant 0 : i32
    %c0_i32_0 = arith.constant 0 : i32
    return %arg0, %c0_i32 : i32, i32
  }
  func.func @transform_1(%arg0: i32, %arg1: i32) -> (i32, i32, i32) {
    %c0_i32 = arith.constant 0 : i32
    %c0_i32_0 = arith.constant 0 : i32
    return %arg1, %arg0, %c0_i32 : i32, i32, i32
  }
  func.func @transform_2(%arg0: i32, %arg1: i32) -> (i32, i32) {
    %c0_i32 = arith.constant 0 : i32
    %c0_i32_0 = arith.constant 0 : i32
    %c0_i32_1 = arith.constant 0 : i32
    return %c0_i32, %c0_i32_0 : i32, i32
  }
  func.func @transform_3(%arg0: i32, %arg1: i32) -> (i32, i32) {
    %c0_i32 = arith.constant 0 : i32
    %c0_i32_0 = arith.constant 0 : i32
    %c0_i32_1 = arith.constant 0 : i32
    return %c0_i32, %c0_i32_0 : i32, i32
  }
  func.func @transform_4(%arg0: i32, %arg1: i32) -> (i32, i32) {
    %c0_i32 = arith.constant 0 : i32
    %c0_i32_0 = arith.constant 0 : i32
    %c0_i32_1 = arith.constant 0 : i32
    return %c0_i32, %c0_i32_0 : i32, i32
  }
  func.func @transform_5(%arg0: i32, %arg1: i32) -> (i32, i32, i32) {
    %c0_i32 = arith.constant 0 : i32
    %c0_i32_0 = arith.constant 0 : i32
    return %arg0, %arg1, %c0_i32 : i32, i32, i32
  }
  func.func @transform_6(%arg0: i32, %arg1: i32) -> (i32, i32) {
    %c0_i32 = arith.constant 0 : i32
    %c0_i32_0 = arith.constant 0 : i32
    return %arg0, %c0_i32 : i32, i32
  }
}

module attributes {stable_mosaic.version = 11 : i64} {
  func.func @_gru_rec_kernel(%arg0: i32, %arg1: i32, %arg2: memref<16x1xi32, #tpu.memory_space<vmem>>, %arg3: memref<3x16x384xbf16, #tpu.memory_space<vmem>>, %arg4: memref<128x256xbf16, #tpu.memory_space<vmem>>, %arg5: memref<128x128xbf16, #tpu.memory_space<vmem>>, %arg6: memref<1x128xf32, #tpu.memory_space<vmem>>, %arg7: memref<16x3x128xf32, #tpu.memory_space<vmem>>, %arg8: memref<16x128xf32, #tpu.memory_space<vmem>>, %arg9: memref<16x128xf32, #tpu.memory_space<vmem>>) attributes {dimension_semantics = [#tpu.dimension_semantics<parallel>, #tpu.dimension_semantics<arbitrary>], iteration_bounds = array<i64: 1, 1>, scalar_prefetch = 0 : i64, scratch_operands = 1 : i64, tpu.core_type = #tpu.core_type<tc>, window_params = [{transform_indices = @transform_0, window_bounds = array<i64: 16, 1>}, {transform_indices = @transform_1, window_bounds = array<i64: 3, 16, 384>}, {pipeline_mode = #tpu.pipeline_mode<synchronous>, transform_indices = @transform_2, window_bounds = array<i64: 128, 256>}, {pipeline_mode = #tpu.pipeline_mode<synchronous>, transform_indices = @transform_3, window_bounds = array<i64: 128, 128>}, {pipeline_mode = #tpu.pipeline_mode<synchronous>, transform_indices = @transform_4, window_bounds = array<i64: 1, 128>}, {transform_indices = @transform_5, window_bounds = array<i64: 16, 3, 128>}, {transform_indices = @transform_6, window_bounds = array<i64: 16, 128>}]} {
    %c0_i32 = arith.constant 0 : i32
    %0 = arith.cmpi eq, %arg1, %c0_i32 : i32
    %1 = arith.extui %0 : i1 to i32
    %c0_i32_0 = arith.constant 0 : i32
    %2 = arith.cmpi ne, %1, %c0_i32_0 : i32
    scf.if %2 {
      %cst_57 = arith.constant 0.000000e+00 : f32
      %162 = vector.broadcast %cst_57 : f32 to vector<16x128xf32>
      %c0_58 = arith.constant 0 : index
      %c0_59 = arith.constant 0 : index
      %163 = vector.load %arg9[%c0_58, %c0_59] : memref<16x128xf32, #tpu.memory_space<vmem>>, vector<16x128xf32>
      tpu.vector_store %arg9[%c0_58, %c0_59], %162 {strides = array<i32>} : memref<16x128xf32, #tpu.memory_space<vmem>>, vector<16x128xf32>,
    } else {
    }
    %c0 = arith.constant 0 : index
    %c0_1 = arith.constant 0 : index
    %3 = vector.load %arg4[%c0, %c0_1] : memref<128x256xbf16, #tpu.memory_space<vmem>>, vector<128x256xbf16>
    %c0_2 = arith.constant 0 : index
    %c0_3 = arith.constant 0 : index
    %4 = vector.load %arg5[%c0_2, %c0_3] : memref<128x128xbf16, #tpu.memory_space<vmem>>, vector<128x128xbf16>
    %c0_4 = arith.constant 0 : index
    %c0_5 = arith.constant 0 : index
    %5 = vector.load %arg2[%c0_4, %c0_5] : memref<16x1xi32, #tpu.memory_space<vmem>>, vector<16x1xi32>
    %c3_i32 = arith.constant 3 : i32
    %6 = arith.muli %arg1, %c3_i32 : i32
    %c0_6 = arith.constant 0 : index
    %c0_7 = arith.constant 0 : index
    %7 = vector.load %arg6[%c0_6, %c0_7] : memref<1x128xf32, #tpu.memory_space<vmem>>, vector<1x128xf32>
    %8 = vector.shape_cast %7 : vector<1x128xf32> to vector<1x128xf32>
    %9 = vector.broadcast %8 : vector<1x128xf32> to vector<16x128xf32>
    %c0_8 = arith.constant 0 : index
    %c0_9 = arith.constant 0 : index
    %10 = vector.load %arg9[%c0_8, %c0_9] : memref<16x128xf32, #tpu.memory_space<vmem>>, vector<16x128xf32>
    %c0_10 = arith.constant 0 : index
    %c0_11 = arith.constant 0 : index
    %c0_12 = arith.constant 0 : index
    %11 = vector.load %arg3[%c0_10, %c0_11, %c0_12] : memref<3x16x384xbf16, #tpu.memory_space<vmem>>, vector<1x16x384xbf16>
    %12 = vector.shape_cast %11 : vector<1x16x384xbf16> to vector<16x384xbf16>
    %13 = arith.truncf %10 : vector<16x128xf32> to vector<16x128xbf16>
    %cst = arith.constant dense<0.000000e+00> : vector<16x256xf32>
    %14 = tpu.matmul %13, %3, %cst {dimension_numbers = #tpu.dot_dimension_numbers<[1], [0], [0], [1], [0, 0, 1, 1], [], []>} : vector<16x128xbf16>, vector<128x256xbf16>, vector<16x256xf32> -> vector<16x256xf32>
    %cst_13 = arith.constant dense<0.000000e+00> : vector<16x128xf32>
    %15 = tpu.matmul %13, %4, %cst_13 {dimension_numbers = #tpu.dot_dimension_numbers<[1], [0], [0], [1], [0, 0, 1, 1], [], []>} : vector<16x128xbf16>, vector<128x128xbf16>, vector<16x128xf32> -> vector<16x128xf32>
    %16 = vector.extract_strided_slice %12 {offsets = [0, 0], sizes = [16, 128], strides = [1, 1]} : vector<16x384xbf16> to vector<16x128xbf16>
    %17 = arith.extf %16 : vector<16x128xbf16> to vector<16x128xf32>
    %18 = vector.extract_strided_slice %14 {offsets = [0, 0], sizes = [16, 128], strides = [1, 1]} : vector<16x256xf32> to vector<16x128xf32>
    %19 = arith.addf %17, %18 : vector<16x128xf32>
    %cst_14 = arith.constant 5.000000e-01 : f32
    %20 = vector.broadcast %cst_14 : f32 to vector<16x128xf32>
    %21 = arith.mulf %20, %19 : vector<16x128xf32>
    %22 = math.tanh %21 : vector<16x128xf32>
    %cst_15 = arith.constant 5.000000e-01 : f32
    %23 = vector.broadcast %cst_15 : f32 to vector<16x128xf32>
    %24 = arith.mulf %23, %22 : vector<16x128xf32>
    %cst_16 = arith.constant 5.000000e-01 : f32
    %25 = vector.broadcast %cst_16 : f32 to vector<16x128xf32>
    %26 = arith.addf %24, %25 : vector<16x128xf32>
    %27 = vector.extract_strided_slice %12 {offsets = [0, 128], sizes = [16, 128], strides = [1, 1]} : vector<16x384xbf16> to vector<16x128xbf16>
    %28 = arith.extf %27 : vector<16x128xbf16> to vector<16x128xf32>
    %29 = vector.extract_strided_slice %14 {offsets = [0, 128], sizes = [16, 128], strides = [1, 1]} : vector<16x256xf32> to vector<16x128xf32>
    %30 = arith.addf %28, %29 : vector<16x128xf32>
    %cst_17 = arith.constant 5.000000e-01 : f32
    %31 = vector.broadcast %cst_17 : f32 to vector<16x128xf32>
    %32 = arith.mulf %31, %30 : vector<16x128xf32>
    %33 = math.tanh %32 : vector<16x128xf32>
    %cst_18 = arith.constant 5.000000e-01 : f32
    %34 = vector.broadcast %cst_18 : f32 to vector<16x128xf32>
    %35 = arith.mulf %34, %33 : vector<16x128xf32>
    %cst_19 = arith.constant 5.000000e-01 : f32
    %36 = vector.broadcast %cst_19 : f32 to vector<16x128xf32>
    %37 = arith.addf %35, %36 : vector<16x128xf32>
    %38 = vector.extract_strided_slice %12 {offsets = [0, 256], sizes = [16, 128], strides = [1, 1]} : vector<16x384xbf16> to vector<16x128xbf16>
    %39 = arith.extf %38 : vector<16x128xbf16> to vector<16x128xf32>
    %40 = arith.addf %15, %9 : vector<16x128xf32>
    %41 = arith.mulf %26, %40 : vector<16x128xf32>
    %42 = arith.addf %39, %41 : vector<16x128xf32>
    %43 = math.tanh %42 : vector<16x128xf32>
    %44 = arith.subf %10, %43 : vector<16x128xf32>
    %45 = arith.mulf %37, %44 : vector<16x128xf32>
    %46 = arith.addf %43, %45 : vector<16x128xf32>
    %c0_i32_20 = arith.constant 0 : i32
    %47 = arith.addi %6, %c0_i32_20 : i32
    %48 = vector.broadcast %47 : i32 to vector<16x1xi32>
    %49 = arith.cmpi slt, %48, %5 : vector<16x1xi32>
    %cst_21 = arith.constant 0.000000e+00 : f32
    %50 = vector.shape_cast %49 : vector<16x1xi1> to vector<16x1xi1>
    %51 = vector.broadcast %50 : vector<16x1xi1> to vector<16x128xi1>
    %52 = vector.broadcast %cst_21 : f32 to vector<16x128xf32>
    %53 = arith.select %51, %46, %52 : vector<16x128xi1>, vector<16x128xf32>
    %c0_22 = arith.constant 0 : index
    %c0_23 = arith.constant 0 : index
    %c0_24 = arith.constant 0 : index
    %54 = vector.load %arg7[%c0_22, %c0_23, %c0_24] : memref<16x3x128xf32, #tpu.memory_space<vmem>>, vector<16x1x128xf32>
    %55 = vector.shape_cast %54 : vector<16x1x128xf32> to vector<16x128xf32>
    %56 = vector.shape_cast %53 : vector<16x128xf32> to vector<16x1x128xf32>
    tpu.vector_store %arg7[%c0_22, %c0_23, %c0_24], %56 {strides = array<i32>} : memref<16x3x128xf32, #tpu.memory_space<vmem>>, vector<16x1x128xf32>,
    %57 = vector.shape_cast %49 : vector<16x1xi1> to vector<16x1xi1>
    %58 = vector.broadcast %57 : vector<16x1xi1> to vector<16x128xi1>
    %59 = arith.select %58, %46, %10 : vector<16x128xi1>, vector<16x128xf32>
    %c1 = arith.constant 1 : index
    %c0_25 = arith.constant 0 : index
    %c0_26 = arith.constant 0 : index
    %60 = vector.load %arg3[%c1, %c0_25, %c0_26] : memref<3x16x384xbf16, #tpu.memory_space<vmem>>, vector<1x16x384xbf16>
    %61 = vector.shape_cast %60 : vector<1x16x384xbf16> to vector<16x384xbf16>
    %62 = arith.truncf %59 : vector<16x128xf32> to vector<16x128xbf16>
    %cst_27 = arith.constant dense<0.000000e+00> : vector<16x256xf32>
    %63 = tpu.matmul %62, %3, %cst_27 {dimension_numbers = #tpu.dot_dimension_numbers<[1], [0], [0], [1], [0, 0, 1, 1], [], []>} : vector<16x128xbf16>, vector<128x256xbf16>, vector<16x256xf32> -> vector<16x256xf32>
    %cst_28 = arith.constant dense<0.000000e+00> : vector<16x128xf32>
    %64 = tpu.matmul %62, %4, %cst_28 {dimension_numbers = #tpu.dot_dimension_numbers<[1], [0], [0], [1], [0, 0, 1, 1], [], []>} : vector<16x128xbf16>, vector<128x128xbf16>, vector<16x128xf32> -> vector<16x128xf32>
    %65 = vector.extract_strided_slice %61 {offsets = [0, 0], sizes = [16, 128], strides = [1, 1]} : vector<16x384xbf16> to vector<16x128xbf16>
    %66 = arith.extf %65 : vector<16x128xbf16> to vector<16x128xf32>
    %67 = vector.extract_strided_slice %63 {offsets = [0, 0], sizes = [16, 128], strides = [1, 1]} : vector<16x256xf32> to vector<16x128xf32>
    %68 = arith.addf %66, %67 : vector<16x128xf32>
    %cst_29 = arith.constant 5.000000e-01 : f32
    %69 = vector.broadcast %cst_29 : f32 to vector<16x128xf32>
    %70 = arith.mulf %69, %68 : vector<16x128xf32>
    %71 = math.tanh %70 : vector<16x128xf32>
    %cst_30 = arith.constant 5.000000e-01 : f32
    %72 = vector.broadcast %cst_30 : f32 to vector<16x128xf32>
    %73 = arith.mulf %72, %71 : vector<16x128xf32>
    %cst_31 = arith.constant 5.000000e-01 : f32
    %74 = vector.broadcast %cst_31 : f32 to vector<16x128xf32>
    %75 = arith.addf %73, %74 : vector<16x128xf32>
    %76 = vector.extract_strided_slice %61 {offsets = [0, 128], sizes = [16, 128], strides = [1, 1]} : vector<16x384xbf16> to vector<16x128xbf16>
    %77 = arith.extf %76 : vector<16x128xbf16> to vector<16x128xf32>
    %78 = vector.extract_strided_slice %63 {offsets = [0, 128], sizes = [16, 128], strides = [1, 1]} : vector<16x256xf32> to vector<16x128xf32>
    %79 = arith.addf %77, %78 : vector<16x128xf32>
    %cst_32 = arith.constant 5.000000e-01 : f32
    %80 = vector.broadcast %cst_32 : f32 to vector<16x128xf32>
    %81 = arith.mulf %80, %79 : vector<16x128xf32>
    %82 = math.tanh %81 : vector<16x128xf32>
    %cst_33 = arith.constant 5.000000e-01 : f32
    %83 = vector.broadcast %cst_33 : f32 to vector<16x128xf32>
    %84 = arith.mulf %83, %82 : vector<16x128xf32>
    %cst_34 = arith.constant 5.000000e-01 : f32
    %85 = vector.broadcast %cst_34 : f32 to vector<16x128xf32>
    %86 = arith.addf %84, %85 : vector<16x128xf32>
    %87 = vector.extract_strided_slice %61 {offsets = [0, 256], sizes = [16, 128], strides = [1, 1]} : vector<16x384xbf16> to vector<16x128xbf16>
    %88 = arith.extf %87 : vector<16x128xbf16> to vector<16x128xf32>
    %89 = arith.addf %64, %9 : vector<16x128xf32>
    %90 = arith.mulf %75, %89 : vector<16x128xf32>
    %91 = arith.addf %88, %90 : vector<16x128xf32>
    %92 = math.tanh %91 : vector<16x128xf32>
    %93 = arith.subf %59, %92 : vector<16x128xf32>
    %94 = arith.mulf %86, %93 : vector<16x128xf32>
    %95 = arith.addf %92, %94 : vector<16x128xf32>
    %c1_i32 = arith.constant 1 : i32
    %96 = arith.addi %6, %c1_i32 : i32
    %97 = vector.broadcast %96 : i32 to vector<16x1xi32>
    %98 = arith.cmpi slt, %97, %5 : vector<16x1xi32>
    %cst_35 = arith.constant 0.000000e+00 : f32
    %99 = vector.shape_cast %98 : vector<16x1xi1> to vector<16x1xi1>
    %100 = vector.broadcast %99 : vector<16x1xi1> to vector<16x128xi1>
    %101 = vector.broadcast %cst_35 : f32 to vector<16x128xf32>
    %102 = arith.select %100, %95, %101 : vector<16x128xi1>, vector<16x128xf32>
    %c0_36 = arith.constant 0 : index
    %c1_37 = arith.constant 1 : index
    %c0_38 = arith.constant 0 : index
    %103 = vector.load %arg7[%c0_36, %c1_37, %c0_38] : memref<16x3x128xf32, #tpu.memory_space<vmem>>, vector<16x1x128xf32>
    %104 = vector.shape_cast %103 : vector<16x1x128xf32> to vector<16x128xf32>
    %105 = vector.shape_cast %102 : vector<16x128xf32> to vector<16x1x128xf32>
    tpu.vector_store %arg7[%c0_36, %c1_37, %c0_38], %105 {strides = array<i32>} : memref<16x3x128xf32, #tpu.memory_space<vmem>>, vector<16x1x128xf32>,
    %106 = vector.shape_cast %98 : vector<16x1xi1> to vector<16x1xi1>
    %107 = vector.broadcast %106 : vector<16x1xi1> to vector<16x128xi1>
    %108 = arith.select %107, %95, %59 : vector<16x128xi1>, vector<16x128xf32>
    %c2 = arith.constant 2 : index
    %c0_39 = arith.constant 0 : index
    %c0_40 = arith.constant 0 : index
    %109 = vector.load %arg3[%c2, %c0_39, %c0_40] : memref<3x16x384xbf16, #tpu.memory_space<vmem>>, vector<1x16x384xbf16>
    %110 = vector.shape_cast %109 : vector<1x16x384xbf16> to vector<16x384xbf16>
    %111 = arith.truncf %108 : vector<16x128xf32> to vector<16x128xbf16>
    %cst_41 = arith.constant dense<0.000000e+00> : vector<16x256xf32>
    %112 = tpu.matmul %111, %3, %cst_41 {dimension_numbers = #tpu.dot_dimension_numbers<[1], [0], [0], [1], [0, 0, 1, 1], [], []>} : vector<16x128xbf16>, vector<128x256xbf16>, vector<16x256xf32> -> vector<16x256xf32>
    %cst_42 = arith.constant dense<0.000000e+00> : vector<16x128xf32>
    %113 = tpu.matmul %111, %4, %cst_42 {dimension_numbers = #tpu.dot_dimension_numbers<[1], [0], [0], [1], [0, 0, 1, 1], [], []>} : vector<16x128xbf16>, vector<128x128xbf16>, vector<16x128xf32> -> vector<16x128xf32>
    %114 = vector.extract_strided_slice %110 {offsets = [0, 0], sizes = [16, 128], strides = [1, 1]} : vector<16x384xbf16> to vector<16x128xbf16>
    %115 = arith.extf %114 : vector<16x128xbf16> to vector<16x128xf32>
    %116 = vector.extract_strided_slice %112 {offsets = [0, 0], sizes = [16, 128], strides = [1, 1]} : vector<16x256xf32> to vector<16x128xf32>
    %117 = arith.addf %115, %116 : vector<16x128xf32>
    %cst_43 = arith.constant 5.000000e-01 : f32
    %118 = vector.broadcast %cst_43 : f32 to vector<16x128xf32>
    %119 = arith.mulf %118, %117 : vector<16x128xf32>
    %120 = math.tanh %119 : vector<16x128xf32>
    %cst_44 = arith.constant 5.000000e-01 : f32
    %121 = vector.broadcast %cst_44 : f32 to vector<16x128xf32>
    %122 = arith.mulf %121, %120 : vector<16x128xf32>
    %cst_45 = arith.constant 5.000000e-01 : f32
    %123 = vector.broadcast %cst_45 : f32 to vector<16x128xf32>
    %124 = arith.addf %122, %123 : vector<16x128xf32>
    %125 = vector.extract_strided_slice %110 {offsets = [0, 128], sizes = [16, 128], strides = [1, 1]} : vector<16x384xbf16> to vector<16x128xbf16>
    %126 = arith.extf %125 : vector<16x128xbf16> to vector<16x128xf32>
    %127 = vector.extract_strided_slice %112 {offsets = [0, 128], sizes = [16, 128], strides = [1, 1]} : vector<16x256xf32> to vector<16x128xf32>
    %128 = arith.addf %126, %127 : vector<16x128xf32>
    %cst_46 = arith.constant 5.000000e-01 : f32
    %129 = vector.broadcast %cst_46 : f32 to vector<16x128xf32>
    %130 = arith.mulf %129, %128 : vector<16x128xf32>
    %131 = math.tanh %130 : vector<16x128xf32>
    %cst_47 = arith.constant 5.000000e-01 : f32
    %132 = vector.broadcast %cst_47 : f32 to vector<16x128xf32>
    %133 = arith.mulf %132, %131 : vector<16x128xf32>
    %cst_48 = arith.constant 5.000000e-01 : f32
    %134 = vector.broadcast %cst_48 : f32 to vector<16x128xf32>
    %135 = arith.addf %133, %134 : vector<16x128xf32>
    %136 = vector.extract_strided_slice %110 {offsets = [0, 256], sizes = [16, 128], strides = [1, 1]} : vector<16x384xbf16> to vector<16x128xbf16>
    %137 = arith.extf %136 : vector<16x128xbf16> to vector<16x128xf32>
    %138 = arith.addf %113, %9 : vector<16x128xf32>
    %139 = arith.mulf %124, %138 : vector<16x128xf32>
    %140 = arith.addf %137, %139 : vector<16x128xf32>
    %141 = math.tanh %140 : vector<16x128xf32>
    %142 = arith.subf %108, %141 : vector<16x128xf32>
    %143 = arith.mulf %135, %142 : vector<16x128xf32>
    %144 = arith.addf %141, %143 : vector<16x128xf32>
    %c2_i32 = arith.constant 2 : i32
    %145 = arith.addi %6, %c2_i32 : i32
    %146 = vector.broadcast %145 : i32 to vector<16x1xi32>
    %147 = arith.cmpi slt, %146, %5 : vector<16x1xi32>
    %cst_49 = arith.constant 0.000000e+00 : f32
    %148 = vector.shape_cast %147 : vector<16x1xi1> to vector<16x1xi1>
    %149 = vector.broadcast %148 : vector<16x1xi1> to vector<16x128xi1>
    %150 = vector.broadcast %cst_49 : f32 to vector<16x128xf32>
    %151 = arith.select %149, %144, %150 : vector<16x128xi1>, vector<16x128xf32>
    %c0_50 = arith.constant 0 : index
    %c2_51 = arith.constant 2 : index
    %c0_52 = arith.constant 0 : index
    %152 = vector.load %arg7[%c0_50, %c2_51, %c0_52] : memref<16x3x128xf32, #tpu.memory_space<vmem>>, vector<16x1x128xf32>
    %153 = vector.shape_cast %152 : vector<16x1x128xf32> to vector<16x128xf32>
    %154 = vector.shape_cast %151 : vector<16x128xf32> to vector<16x1x128xf32>
    tpu.vector_store %arg7[%c0_50, %c2_51, %c0_52], %154 {strides = array<i32>} : memref<16x3x128xf32, #tpu.memory_space<vmem>>, vector<16x1x128xf32>,
    %155 = vector.shape_cast %147 : vector<16x1xi1> to vector<16x1xi1>
    %156 = vector.broadcast %155 : vector<16x1xi1> to vector<16x128xi1>
    %157 = arith.select %156, %144, %108 : vector<16x128xi1>, vector<16x128xf32>
    %c0_53 = arith.constant 0 : index
    %c0_54 = arith.constant 0 : index
    %158 = vector.load %arg9[%c0_53, %c0_54] : memref<16x128xf32, #tpu.memory_space<vmem>>, vector<16x128xf32>
    tpu.vector_store %arg9[%c0_53, %c0_54], %157 {strides = array<i32>} : memref<16x128xf32, #tpu.memory_space<vmem>>, vector<16x128xf32>,
    %c0_i32_55 = arith.constant 0 : i32
    %159 = arith.cmpi eq, %arg1, %c0_i32_55 : i32
    %160 = arith.extui %159 : i1 to i32
    %c0_i32_56 = arith.constant 0 : i32
    %161 = arith.cmpi ne, %160, %c0_i32_56 : i32
    scf.if %161 {
      %c0_57 = arith.constant 0 : index
      %c0_58 = arith.constant 0 : index
      %162 = vector.load %arg9[%c0_57, %c0_58] : memref<16x128xf32, #tpu.memory_space<vmem>>, vector<16x128xf32>
      %c0_59 = arith.constant 0 : index
      %c0_60 = arith.constant 0 : index
      %163 = vector.load %arg8[%c0_59, %c0_60] : memref<16x128xf32, #tpu.memory_space<vmem>>, vector<16x128xf32>
      tpu.vector_store %arg8[%c0_59, %c0_60], %162 {strides = array<i32>} : memref<16x128xf32, #tpu.memory_space<vmem>>, vector<16x128xf32>,
    } else {
    }
    return
  }
  func.func @transform_0(%arg0: i32, %arg1: i32) -> (i32, i32) {
    %c0_i32 = arith.constant 0 : i32
    %c0_i32_0 = arith.constant 0 : i32
    return %arg0, %c0_i32 : i32, i32
  }
  func.func @transform_1(%arg0: i32, %arg1: i32) -> (i32, i32, i32) {
    %c0_i32 = arith.constant 0 : i32
    %c0_i32_0 = arith.constant 0 : i32
    return %arg1, %arg0, %c0_i32 : i32, i32, i32
  }
  func.func @transform_2(%arg0: i32, %arg1: i32) -> (i32, i32) {
    %c0_i32 = arith.constant 0 : i32
    %c0_i32_0 = arith.constant 0 : i32
    %c0_i32_1 = arith.constant 0 : i32
    return %c0_i32, %c0_i32_0 : i32, i32
  }
  func.func @transform_3(%arg0: i32, %arg1: i32) -> (i32, i32) {
    %c0_i32 = arith.constant 0 : i32
    %c0_i32_0 = arith.constant 0 : i32
    %c0_i32_1 = arith.constant 0 : i32
    return %c0_i32, %c0_i32_0 : i32, i32
  }
  func.func @transform_4(%arg0: i32, %arg1: i32) -> (i32, i32) {
    %c0_i32 = arith.constant 0 : i32
    %c0_i32_0 = arith.constant 0 : i32
    %c0_i32_1 = arith.constant 0 : i32
    return %c0_i32, %c0_i32_0 : i32, i32
  }
  func.func @transform_5(%arg0: i32, %arg1: i32) -> (i32, i32, i32) {
    %c0_i32 = arith.constant 0 : i32
    %c0_i32_0 = arith.constant 0 : i32
    return %arg0, %arg1, %c0_i32 : i32, i32, i32
  }
  func.func @transform_6(%arg0: i32, %arg1: i32) -> (i32, i32) {
    %c0_i32 = arith.constant 0 : i32
    %c0_i32_0 = arith.constant 0 : i32
    return %arg0, %c0_i32 : i32, i32
  }
}

</mosaic_0001>

<llo_original>
// kernel: _lambda_.3
$region0: #{_lambda_.3}
  #allocation0 [shape = 'u32[]', space=smem, size = 0x4, offset = 0x4, fixed_abs, tag = 'smem constant byte address 0x4 - core index']
  #allocation1 [shape = 'u32[144,128]{1,0:T(1,128)}', space=vmem, size = 0x12000, scoped, tag = 'internal scratch']
  #allocation2 [shape = 'f32[16,128]{1,0:T(8,128)}', space=vmem, size = 0x2000, scoped, tag = 'scratch operand']
  %s0 = inlined_call_operand.vmem [shape: s32[16,1], index: 0, kind: input, shape index: {}]
  %s1 = inlined_call_operand.vmem [shape: bf16[3,16,384], index: 1, kind: input, shape index: {}]
  %s2 = inlined_call_operand.vmem [shape: bf16[128,256], index: 2, kind: input, shape index: {}]
  %s3 = inlined_call_operand.vmem [shape: bf16[128,128], index: 3, kind: input, shape index: {}]
  %s4 = inlined_call_operand.vmem [shape: f32[1,128], index: 4, kind: input, shape index: {}]
  %s5 = inlined_call_operand.vmem [shape: f32[16,3,128], index: 5, kind: output, shape index: {0}]
  %s6 = inlined_call_operand.hbm [shape: f32[16,128], index: 6, kind: output, shape index: {1}]
  %7 = xla_tuple %s5, %s6
  %s8 = sld [smem:[#allocation0]]
  $region46: #{_lambda_.3} parent=0
    _
  %s10 = ssub.s32 1, %s8
  %s11 = scalar_select 0, %s10, %s8
  $region1: #{_lambda_.3} parent=0
    #allocation3 [shape = 'u8[8192]{0}', space=vmem, size = 0x2000, scoped, tag = 'output window, operand 1, single buffered']
    #allocation4 [shape = 's32[1]{0}', space=sflag, size = 0x4, scoped, tag = 'scoped memory for _lambda_.3']
    %12 = vsyncpa [#allocation4], 0
    // Predicated region
    $region2: #{_lambda_.3} parent=1 // pred_check
      _
    $region3: #{_lambda_.3} parent=1 // pred_check_branch
      %14 = sbr.rel (0) target = $region5
    $region4: #{_lambda_.3} parent=1 // pred_region
      _
    $region5: #{_lambda_.3} parent=1 // pred_fallthru
      _
    // Predicated region
    $region6: #{_lambda_.3} parent=1 // pred_check
      _
    $region7: #{_lambda_.3} parent=1 // pred_check_branch
      %16 = sbr.rel (0) target = $region9
    $region8: #{_lambda_.3} parent=1 // pred_region
      _
    $region9: #{_lambda_.3} parent=1 // pred_fallthru
      _
    // Predicated region
    $region10: #{_lambda_.3} parent=1 // pred_check
      _
    $region11: #{_lambda_.3} parent=1 // pred_check_branch
      %18 = sbr.rel (0) target = $region13
    $region12: #{_lambda_.3} parent=1 // pred_region
      _
    $region13: #{_lambda_.3} parent=1 // pred_fallthru
      _
    // Predicated region
    $region14: #{_lambda_.3} parent=1 // pred_check
      _
    $region15: #{_lambda_.3} parent=1 // pred_check_branch
      %20 = sbr.rel (0) target = $region17
    $region16: #{_lambda_.3} parent=1 // pred_region
      _
    $region17: #{_lambda_.3} parent=1 // pred_fallthru
      _
    // Predicated region
    $region18: #{_lambda_.3} parent=1 // pred_check
      _
    $region19: #{_lambda_.3} parent=1 // pred_check_branch
      %22 = sbr.rel (0) target = $region21
    $region20: #{_lambda_.3} parent=1 // pred_region
      _
    $region21: #{_lambda_.3} parent=1 // pred_fallthru
      _
    %p24 = scmp.eq.s32.totalorder 0, 0
    // Predicated region
    $region22: #{_lambda_.3} parent=1 // pred_check
      %p25 = pneg %p24
    $region23: #{_lambda_.3} parent=1 // pred_check_branch
      %27 = sbr.rel (%p25) target = $region25
    $region24: #{_lambda_.3} parent=1 // pred_region
      %28 = vst [vmem:[#allocation2] sm:$0xff] 0.0
      %29 = vst [vmem:[#allocation2 + $0x8] sm:$0xff] 0.0
    $region25: #{_lambda_.3} parent=1 // pred_fallthru
      _
    %v30 = vld [vmem:[%s2] sm:$0xff]
    %v31 = vld [vmem:[%s2 + $0x8] sm:$0xff]
    %v32 = vld [vmem:[%s2 + $0x10] sm:$0xff]
    %v33 = vld [vmem:[%s2 + $0x18] sm:$0xff]
    %v34 = vld [vmem:[%s2 + $0x20] sm:$0xff]
    %v35 = vld [vmem:[%s2 + $0x28] sm:$0xff]
    %v36 = vld [vmem:[%s2 + $0x30] sm:$0xff]
    %v37 = vld [vmem:[%s2 + $0x38] sm:$0xff]
    %v38 = vld [vmem:[%s2 + $0x40] sm:$0xff]
    %v39 = vld [vmem:[%s2 + $0x48] sm:$0xff]
    %v40 = vld [vmem:[%s2 + $0x50] sm:$0xff]
    %v41 = vld [vmem:[%s2 + $0x58] sm:$0xff]
    %v42 = vld [vmem:[%s2 + $0x60] sm:$0xff]
    %v43 = vld [vmem:[%s2 + $0x68] sm:$0xff]
    %v44 = vld [vmem:[%s2 + $0x70] sm:$0xff]
    %v45 = vld [vmem:[%s2 + $0x78] sm:$0xff]
    %v46 = vld [vmem:[%s3] sm:$0xf]
    %v47 = vld [vmem:[%s3 + $0x4] sm:$0xf]
    %v48 = vld [vmem:[%s3 + $0x8] sm:$0xf]
    %v49 = vld [vmem:[%s3 + $0xc] sm:$0xf]
    %v50 = vld [vmem:[%s3 + $0x10] sm:$0xf]
    %v51 = vld [vmem:[%s3 + $0x14] sm:$0xf]
    %v52 = vld [vmem:[%s3 + $0x18] sm:$0xf]
    %v53 = vld [vmem:[%s3 + $0x1c] sm:$0xf]
    %v54 = vld [vmem:[%s3 + $0x20] sm:$0xf]
    %v55 = vld [vmem:[%s3 + $0x24] sm:$0xf]
    %v56 = vld [vmem:[%s3 + $0x28] sm:$0xf]
    %v57 = vld [vmem:[%s3 + $0x2c] sm:$0xf]
    %v58 = vld [vmem:[%s3 + $0x30] sm:$0xf]
    %v59 = vld [vmem:[%s3 + $0x34] sm:$0xf]
    %v60 = vld [vmem:[%s3 + $0x38] sm:$0xf]
    %v61 = vld [vmem:[%s3 + $0x3c] sm:$0xf]
    %v62 = vld [vmem:[%s0] sm:$0xff]
    %v63 = vld [vmem:[%s0 + $0x8] sm:$0xff]
    %s64 = smul.u32 0, 3
    %v65 = vld [vmem:[%s4] sm:$0x1]
    %v67 = vlaneseq
    %v68 = vshrl.u32 %v67, 7
    %v69 = vsub.s32 0, %v68
    %v70 = vrot.slane %v65, %v69
    %v72 = vld [vmem:[#allocation2] sm:$0xff]
    %v73 = vld [vmem:[#allocation2 + $0x8] sm:$0xff]
    %v74 = vld [vmem:[%s1] sm:$0xff]
    %v75 = vld [vmem:[%s1 + $0x8] sm:$0xf]
    %v76 = vld [vmem:[%s1 + $0xc] sm:$0xff]
    %v77 = vld [vmem:[%s1 + $0x14] sm:$0xf]
    %v78 = vpack.c.bf16 %v73, %v72
    %v95 = vunpack.c.l.b16 %v30
    %v96 = vunpack.c.h.b16 %v30
    %v97 = vunpack.c.l.b16 %v31
    %v98 = vunpack.c.h.b16 %v31
    %v99 = vunpack.c.l.b16 %v32
    %v100 = vunpack.c.h.b16 %v32
    %v101 = vunpack.c.l.b16 %v33
    %v102 = vunpack.c.h.b16 %v33
    %v103 = vunpack.c.l.b16 %v34
    %v104 = vunpack.c.h.b16 %v34
    %v105 = vunpack.c.l.b16 %v35
    %v106 = vunpack.c.h.b16 %v35
    %v107 = vunpack.c.l.b16 %v36
    %v108 = vunpack.c.h.b16 %v36
    %v109 = vunpack.c.l.b16 %v37
    %v110 = vunpack.c.h.b16 %v37
    %v111 = vunpack.c.l.b16 %v38
    %v112 = vunpack.c.h.b16 %v38
    %v113 = vunpack.c.l.b16 %v39
    %v114 = vunpack.c.h.b16 %v39
    %v115 = vunpack.c.l.b16 %v40
    %v116 = vunpack.c.h.b16 %v40
    %v117 = vunpack.c.l.b16 %v41
    %v118 = vunpack.c.h.b16 %v41
    %v119 = vunpack.c.l.b16 %v42
    %v120 = vunpack.c.h.b16 %v42
    %v121 = vunpack.c.l.b16 %v43
    %v122 = vunpack.c.h.b16 %v43
    %v123 = vunpack.c.l.b16 %v44
    %v124 = vunpack.c.h.b16 %v44
    %v125 = vunpack.c.l.b16 %v45
    %v126 = vunpack.c.h.b16 %v45
    %v127 = vpack.c.b16 %v97, %v95
    %v128 = vpack.c.b16 %v98, %v96
    %v129 = vpack.c.b16 %v101, %v99
    %v130 = vpack.c.b16 %v102, %v100
    %v131 = vpack.c.b16 %v105, %v103
    %v132 = vpack.c.b16 %v106, %v104
    %v133 = vpack.c.b16 %v109, %v107
    %v134 = vpack.c.b16 %v110, %v108
    %v135 = vpack.c.b16 %v113, %v111
    %v136 = vpack.c.b16 %v114, %v112
    %v137 = vpack.c.b16 %v117, %v115
    %v138 = vpack.c.b16 %v118, %v116
    %v139 = vpack.c.b16 %v121, %v119
    %v140 = vpack.c.b16 %v122, %v120
    %v141 = vpack.c.b16 %v125, %v123
    %v142 = vpack.c.b16 %v126, %v124
    %159 = vmatprep.subr.bf16.mxu0 %v142
    %160 = vmatpush1.bf16.msra.mxu0 %v141
    %161 = vmatprep.subr.bf16.mxu0 %v140
    %162 = vmatpush1.bf16.msra.mxu0 %v139
    %163 = vmatprep.subr.bf16.mxu0 %v138
    %164 = vmatpush1.bf16.msra.mxu0 %v137
    %165 = vmatprep.subr.bf16.mxu0 %v136
    %166 = vmatpush1.bf16.msra.mxu0 %v135
    %167 = vmatprep.subr.bf16.mxu0 %v134
    %168 = vmatpush1.bf16.msra.mxu0 %v133
    %169 = vmatprep.subr.bf16.mxu0 %v132
    %170 = vmatpush1.bf16.msra.mxu0 %v131
    %171 = vmatprep.subr.bf16.mxu0 %v130
    %172 = vmatpush1.bf16.msra.mxu0 %v129
    %173 = vmatprep.subr.bf16.mxu0 %v128
    %174 = vmatpush1.bf16.msra.mxu0 %v127
    %175 = vmatprep.subr.bf16.mxu0 0
    %176 = vmatpush2.bf16.msra.mxu0 0
    %177 = vmatprep.subr.bf16.mxu0 0
    %178 = vmatpush2.bf16.msra.mxu0 0
    %179 = vmatprep.subr.bf16.mxu0 0
    %180 = vmatpush2.bf16.msra.mxu0 0
    %181 = vmatprep.subr.bf16.mxu0 0
    %182 = vmatpush2.bf16.msra.mxu0 0
    %183 = vmatprep.subr.bf16.mxu0 0
    %184 = vmatpush2.bf16.msra.mxu0 0
    %185 = vmatprep.subr.bf16.mxu0 0
    %186 = vmatpush2.bf16.msra.mxu0 0
    %187 = vmatprep.subr.bf16.mxu0 0
    %188 = vmatpush2.bf16.msra.mxu0 0
    %189 = vmatprep.subr.bf16.mxu0 0
    %190 = vmatpush2.bf16.msra.mxu0 0
    %191 = vmatprep.mubr.bf16.mxu0 0
    %192 = vmatmul.mubr.bf16.gmra.mxu0 %v78
    %v193 = vpop.f32.mrf.mxu0
    %v194 = vadd.f32 0.0, %v193
    %v195 = vpop.f32.mrf.mxu0
    %v196 = vadd.f32 0.0, %v195
    %v197 = vpop.f32.mrf.mxu0
    %v198 = vadd.f32 0.0, %v197
    %v199 = vpop.f32.mrf.mxu0
    %v200 = vadd.f32 0.0, %v199
    %201 = vdwg.mxu0
    %v202 = vunpack.c.l.bf16 %v74
    %v203 = vunpack.c.l.bf16 %v76
    %v204 = vadd.f32 %v202, %v194
    %v205 = vadd.f32 %v203, %v198
    %v206 = vmul.f32 %v204, 0.5
    %v207 = vmul.f32 %v205, 0.5
    %v208 = vtanh.pop %v206
    %v209 = vtanh.pop %v207
    %v210 = vmul.f32 %v208, 0.5
    %v211 = vmul.f32 %v209, 0.5
    %v212 = vadd.f32 %v210, 0.5
    %v213 = vadd.f32 %v211, 0.5
    %v216 = vrot.slane %v74, 4
    %v217 = vrot.slane %v76, 4
    %v220 = vunpack.c.l.bf16 %v216
    %v221 = vunpack.c.l.bf16 %v217
    %v222 = vadd.f32 %v220, %v196
    %v223 = vadd.f32 %v221, %v200
    %v224 = vmul.f32 %v222, 0.5
    %v225 = vmul.f32 %v223, 0.5
    %v226 = vtanh.pop %v224
    %v227 = vtanh.pop %v225
    %v228 = vmul.f32 %v226, 0.5
    %v229 = vmul.f32 %v227, 0.5
    %v230 = vadd.f32 %v228, 0.5
    %v231 = vadd.f32 %v229, 0.5
    %v232 = vunpack.c.l.bf16 %v75
    %v233 = vunpack.c.l.bf16 %v77
    %v250 = vunpack.c.l.b16 %v46
    %v251 = vunpack.c.l.b16 %v47
    %v252 = vunpack.c.l.b16 %v48
    %v253 = vunpack.c.l.b16 %v49
    %v254 = vunpack.c.l.b16 %v50
    %v255 = vunpack.c.l.b16 %v51
    %v256 = vunpack.c.l.b16 %v52
    %v257 = vunpack.c.l.b16 %v53
    %v258 = vunpack.c.l.b16 %v54
    %v259 = vunpack.c.l.b16 %v55
    %v260 = vunpack.c.l.b16 %v56
    %v261 = vunpack.c.l.b16 %v57
    %v262 = vunpack.c.l.b16 %v58
    %v263 = vunpack.c.l.b16 %v59
    %v264 = vunpack.c.l.b16 %v60
    %v265 = vunpack.c.l.b16 %v61
    %v266 = vpack.c.b16 %v251, %v250
    %v267 = vpack.c.b16 %v253, %v252
    %v268 = vpack.c.b16 %v255, %v254
    %v269 = vpack.c.b16 %v257, %v256
    %v270 = vpack.c.b16 %v259, %v258
    %v271 = vpack.c.b16 %v261, %v260
    %v272 = vpack.c.b16 %v263, %v262
    %v273 = vpack.c.b16 %v265, %v264
    %282 = vmatprep.subr.bf16.mxu0 0
    %283 = vmatpush1.bf16.msra.mxu0 %v273
    %284 = vmatprep.subr.bf16.mxu0 0
    %285 = vmatpush1.bf16.msra.mxu0 %v272
    %286 = vmatprep.subr.bf16.mxu0 0
    %287 = vmatpush1.bf16.msra.mxu0 %v271
    %288 = vmatprep.subr.bf16.mxu0 0
    %289 = vmatpush1.bf16.msra.mxu0 %v270
    %290 = vmatprep.subr.bf16.mxu0 0
    %291 = vmatpush1.bf16.msra.mxu0 %v269
    %292 = vmatprep.subr.bf16.mxu0 0
    %293 = vmatpush1.bf16.msra.mxu0 %v268
    %294 = vmatprep.subr.bf16.mxu0 0
    %295 = vmatpush1.bf16.msra.mxu0 %v267
    %296 = vmatprep.subr.bf16.mxu0 0
    %297 = vmatpush1.bf16.msra.mxu0 %v266
    %298 = vmatprep.subr.bf16.mxu0 0
    %299 = vmatpush2.bf16.msra.mxu0 0
    %300 = vmatprep.subr.bf16.mxu0 0
    %301 = vmatpush2.bf16.msra.mxu0 0
    %302 = vmatprep.subr.bf16.mxu0 0
    %303 = vmatpush2.bf16.msra.mxu0 0
    %304 = vmatprep.subr.bf16.mxu0 0
    %305 = vmatpush2.bf16.msra.mxu0 0
    %306 = vmatprep.subr.bf16.mxu0 0
    %307 = vmatpush2.bf16.msra.mxu0 0
    %308 = vmatprep.subr.bf16.mxu0 0
    %309 = vmatpush2.bf16.msra.mxu0 0
    %310 = vmatprep.subr.bf16.mxu0 0
    %311 = vmatpush2.bf16.msra.mxu0 0
    %312 = vmatprep.subr.bf16.mxu0 0
    %313 = vmatpush2.bf16.msra.mxu0 0
    %314 = vmatprep.mubr.bf16.mxu0 0
    %315 = vmatmul.mubr.bf16.gmra.mxu0 %v78
    %v316 = vpop.f32.mrf.mxu0
    %v317 = vadd.f32 %v70, %v316
    %v318 = vpop.f32.mrf.mxu0
    %v319 = vpop.f32.mrf.mxu0
    %v320 = vadd.f32 %v70, %v319
    %v321 = vpop.f32.mrf.mxu0
    %322 = vdwg.mxu0
    %v323 = vmul.f32 %v212, %v317
    %v324 = vmul.f32 %v213, %v320
    %v325 = vadd.f32 %v232, %v323
    %v326 = vadd.f32 %v233, %v324
    %v327 = vtanh.pop %v325
    %v328 = vtanh.pop %v326
    %v329 = vsub.f32 %v72, %v327
    %v330 = vsub.f32 %v73, %v328
    %v331 = vmul.f32 %v230, %v329
    %v332 = vmul.f32 %v231, %v330
    %v333 = vadd.f32 %v327, %v331
    %v334 = vadd.f32 %v328, %v332
    %v335 = vstv %s64
    %vm336 = vcmp.lt.s32.totalorder %v335, %v62
    %vm337 = vcmp.lt.s32.totalorder %v335, %v63
    %v338 = vsel %vm336, 1, 0
    %v339 = vsel %vm337, 1, 0
    %340 = vset.pattern.permute.xlu0 0
    %341 = vperm.xlu0 %340, %v338
    %v342 = vpop.permute.xlu0 %341
    %343 = vset.pattern.permute.xlu0 0
    %344 = vperm.xlu0 %343, %v339
    %v345 = vpop.permute.xlu0 %344
    %vm346 = vcmp.eq.s32.totalorder %v342, 1
    %vm347 = vcmp.eq.s32.totalorder %v345, 1
    %v348 = vsel %vm346, %v333, 0.0
    %v349 = vsel %vm347, %v334, 0.0
    %v352 = vcombine.high %v348, %v348
    %v354 = vunpack.c.l.s4 1966171168
    %v355 = vunpack.c.0.s8 %v354
    %v356 = vlaneseq
    %v357 = vshrl.u32 %v356, 7
    %v358 = vsub.s32 %v355, %v357
    %v359 = vrot.slane %v348, %v358
    %v361 = vunpack.c.l.s4 1966171168
    %v362 = vunpack.c.0.s8 %v361
    %v363 = vlaneseq
    %v364 = vshrl.u32 %v363, 7
    %v365 = vsub.s32 %v362, %v364
    %v366 = vrot.slane %v352, %v365
    %v367 = vcombine.high %v359, %v359
    %v368 = vcombine.high %v366, %v366
    %v370 = vunpack.c.l.s4 1966171168
    %v371 = vunpack.c.0.s8 %v370
    %v372 = vlaneseq
    %v373 = vshrl.u32 %v372, 7
    %v374 = vsub.s32 %v371, %v373
    %v375 = vrot.slane %v359, %v374
    %v377 = vunpack.c.l.s4 1966171168
    %v378 = vunpack.c.0.s8 %v377
    %v379 = vlaneseq
    %v380 = vshrl.u32 %v379, 7
    %v381 = vsub.s32 %v378, %v380
    %v382 = vrot.slane %v366, %v381
    %v384 = vunpack.c.l.s4 1966171168
    %v385 = vunpack.c.0.s8 %v384
    %v386 = vlaneseq
    %v387 = vshrl.u32 %v386, 7
    %v388 = vsub.s32 %v385, %v387
    %v389 = vrot.slane %v367, %v388
    %v391 = vunpack.c.l.s4 1966171168
    %v392 = vunpack.c.0.s8 %v391
    %v393 = vlaneseq
    %v394 = vshrl.u32 %v393, 7
    %v395 = vsub.s32 %v392, %v394
    %v396 = vrot.slane %v368, %v395
    %v397 = vcombine.high %v375, %v375
    %v398 = vcombine.high %v382, %v382
    %v399 = vcombine.high %v389, %v389
    %v400 = vcombine.high %v396, %v396
    %v401 = vcombine.high %v349, %v349
    %v403 = vunpack.c.l.s4 1966171168
    %v404 = vunpack.c.0.s8 %v403
    %v405 = vlaneseq
    %v406 = vshrl.u32 %v405, 7
    %v407 = vsub.s32 %v404, %v406
    %v408 = vrot.slane %v349, %v407
    %v410 = vunpack.c.l.s4 1966171168
    %v411 = vunpack.c.0.s8 %v410
    %v412 = vlaneseq
    %v413 = vshrl.u32 %v412, 7
    %v414 = vsub.s32 %v411, %v413
    %v415 = vrot.slane %v401, %v414
    %v416 = vcombine.high %v408, %v408
    %v417 = vcombine.high %v415, %v415
    %v419 = vunpack.c.l.s4 1966171168
    %v420 = vunpack.c.0.s8 %v419
    %v421 = vlaneseq
    %v422 = vshrl.u32 %v421, 7
    %v423 = vsub.s32 %v420, %v422
    %v424 = vrot.slane %v408, %v423
    %v426 = vunpack.c.l.s4 1966171168
    %v427 = vunpack.c.0.s8 %v426
    %v428 = vlaneseq
    %v429 = vshrl.u32 %v428, 7
    %v430 = vsub.s32 %v427, %v429
    %v431 = vrot.slane %v415, %v430
    %v433 = vunpack.c.l.s4 1966171168
    %v434 = vunpack.c.0.s8 %v433
    %v435 = vlaneseq
    %v436 = vshrl.u32 %v435, 7
    %v437 = vsub.s32 %v434, %v436
    %v438 = vrot.slane %v416, %v437
    %v440 = vunpack.c.l.s4 1966171168
    %v441 = vunpack.c.0.s8 %v440
    %v442 = vlaneseq
    %v443 = vshrl.u32 %v442, 7
    %v444 = vsub.s32 %v441, %v443
    %v445 = vrot.slane %v417, %v444
    %v446 = vcombine.high %v424, %v424
    %v447 = vcombine.high %v431, %v431
    %v448 = vcombine.high %v438, %v438
    %v449 = vcombine.high %v445, %v445
    %466 = vst [vmem:[%s5] sm:$0x1] %v375
    %467 = vst [vmem:[%s5 + $0x4] sm:$0x1] %v389
    %468 = vst [vmem:[%s5 + $0x8] sm:$0x1] %v397
    %469 = vst [vmem:[%s5 + $0xc] sm:$0x1] %v399
    %470 = vst [vmem:[%s5 + $0x10] sm:$0x1] %v382
    %471 = vst [vmem:[%s5 + $0x14] sm:$0x1] %v396
    %472 = vst [vmem:[%s5 + $0x18] sm:$0x1] %v398
    %473 = vst [vmem:[%s5 + $0x1c] sm:$0x1] %v400
    %474 = vst [vmem:[%s5 + $0x20] sm:$0x1] %v424
    %475 = vst [vmem:[%s5 + $0x24] sm:$0x1] %v438
    %476 = vst [vmem:[%s5 + $0x28] sm:$0x1] %v446
    %477 = vst [vmem:[%s5 + $0x2c] sm:$0x1] %v448
    %478 = vst [vmem:[%s5 + $0x30] sm:$0x1] %v431
    %479 = vst [vmem:[%s5 + $0x34] sm:$0x1] %v445
    %480 = vst [vmem:[%s5 + $0x38] sm:$0x1] %v447
    %481 = vst [vmem:[%s5 + $0x3c] sm:$0x1] %v449
    %v482 = vsel %vm346, %v333, %v72
    %v483 = vsel %vm347, %v334, %v73
    %s484 = scalar_lea.vmem %s1, 24
    %v485 = vld [vmem:[%s484] sm:$0xff]
    %v486 = vld [vmem:[%s484 + $0x8] sm:$0xf]
    %v487 = vld [vmem:[%s484 + $0xc] sm:$0xff]
    %v488 = vld [vmem:[%s484 + $0x14] sm:$0xf]
    %v489 = vpack.c.bf16 %v483, %v482
    %490 = vmatprep.subr.bf16.mxu0 %v142
    %491 = vmatpush1.bf16.msra.mxu0 %v141
    %492 = vmatprep.subr.bf16.mxu0 %v140
    %493 = vmatpush1.bf16.msra.mxu0 %v139
    %494 = vmatprep.subr.bf16.mxu0 %v138
    %495 = vmatpush1.bf16.msra.mxu0 %v137
    %496 = vmatprep.subr.bf16.mxu0 %v136
    %497 = vmatpush1.bf16.msra.mxu0 %v135
    %498 = vmatprep.subr.bf16.mxu0 %v134
    %499 = vmatpush1.bf16.msra.mxu0 %v133
    %500 = vmatprep.subr.bf16.mxu0 %v132
    %501 = vmatpush1.bf16.msra.mxu0 %v131
    %502 = vmatprep.subr.bf16.mxu0 %v130
    %503 = vmatpush1.bf16.msra.mxu0 %v129
    %504 = vmatprep.subr.bf16.mxu0 %v128
    %505 = vmatpush1.bf16.msra.mxu0 %v127
    %506 = vmatprep.subr.bf16.mxu0 0
    %507 = vmatpush2.bf16.msra.mxu0 0
    %508 = vmatprep.subr.bf16.mxu0 0
    %509 = vmatpush2.bf16.msra.mxu0 0
    %510 = vmatprep.subr.bf16.mxu0 0
    %511 = vmatpush2.bf16.msra.mxu0 0
    %512 = vmatprep.subr.bf16.mxu0 0
    %513 = vmatpush2.bf16.msra.mxu0 0
    %514 = vmatprep.subr.bf16.mxu0 0
    %515 = vmatpush2.bf16.msra.mxu0 0
    %516 = vmatprep.subr.bf16.mxu0 0
    %517 = vmatpush2.bf16.msra.mxu0 0
    %518 = vmatprep.subr.bf16.mxu0 0
    %519 = vmatpush2.bf16.msra.mxu0 0
    %520 = vmatprep.subr.bf16.mxu0 0
    %521 = vmatpush2.bf16.msra.mxu0 0
    %522 = vmatprep.mubr.bf16.mxu0 0
    %523 = vmatmul.mubr.bf16.gmra.mxu0 %v489
    %v524 = vpop.f32.mrf.mxu0
    %v525 = vadd.f32 0.0, %v524
    %v526 = vpop.f32.mrf.mxu0
    %v527 = vadd.f32 0.0, %v526
    %v528 = vpop.f32.mrf.mxu0
    %v529 = vadd.f32 0.0, %v528
    %v530 = vpop.f32.mrf.mxu0
    %v531 = vadd.f32 0.0, %v530
    %532 = vdwg.mxu0
    %v533 = vunpack.c.l.bf16 %v485
    %v534 = vunpack.c.l.bf16 %v487
    %v535 = vadd.f32 %v533, %v525
    %v536 = vadd.f32 %v534, %v529
    %v537 = vmul.f32 %v535, 0.5
    %v538 = vmul.f32 %v536, 0.5
    %v539 = vtanh.pop %v537
    %v540 = vtanh.pop %v538
    %v541 = vmul.f32 %v539, 0.5
    %v542 = vmul.f32 %v540, 0.5
    %v543 = vadd.f32 %v541, 0.5
    %v544 = vadd.f32 %v542, 0.5
    %v547 = vrot.slane %v485, 4
    %v548 = vrot.slane %v487, 4
    %v551 = vunpack.c.l.bf16 %v547
    %v552 = vunpack.c.l.bf16 %v548
    %v553 = vadd.f32 %v551, %v527
    %v554 = vadd.f32 %v552, %v531
    %v555 = vmul.f32 %v553, 0.5
    %v556 = vmul.f32 %v554, 0.5
    %v557 = vtanh.pop %v555
    %v558 = vtanh.pop %v556
    %v559 = vmul.f32 %v557, 0.5
    %v560 = vmul.f32 %v558, 0.5
    %v561 = vadd.f32 %v559, 0.5
    %v562 = vadd.f32 %v560, 0.5
    %v563 = vunpack.c.l.bf16 %v486
    %v564 = vunpack.c.l.bf16 %v488
    %565 = vmatprep.subr.bf16.mxu0 0
    %566 = vmatpush1.bf16.msra.mxu0 %v273
    %567 = vmatprep.subr.bf16.mxu0 0
    %568 = vmatpush1.bf16.msra.mxu0 %v272
    %569 = vmatprep.subr.bf16.mxu0 0
    %570 = vmatpush1.bf16.msra.mxu0 %v271
    %571 = vmatprep.subr.bf16.mxu0 0
    %572 = vmatpush1.bf16.msra.mxu0 %v270
    %573 = vmatprep.subr.bf16.mxu0 0
    %574 = vmatpush1.bf16.msra.mxu0 %v269
    %575 = vmatprep.subr.bf16.mxu0 0
    %576 = vmatpush1.bf16.msra.mxu0 %v268
    %577 = vmatprep.subr.bf16.mxu0 0
    %578 = vmatpush1.bf16.msra.mxu0 %v267
    %579 = vmatprep.subr.bf16.mxu0 0
    %580 = vmatpush1.bf16.msra.mxu0 %v266
    %581 = vmatprep.subr.bf16.mxu0 0
    %582 = vmatpush2.bf16.msra.mxu0 0
    %583 = vmatprep.subr.bf16.mxu0 0
    %584 = vmatpush2.bf16.msra.mxu0 0
    %585 = vmatprep.subr.bf16.mxu0 0
    %586 = vmatpush2.bf16.msra.mxu0 0
    %587 = vmatprep.subr.bf16.mxu0 0
    %588 = vmatpush2.bf16.msra.mxu0 0
    %589 = vmatprep.subr.bf16.mxu0 0
    %590 = vmatpush2.bf16.msra.mxu0 0
    %591 = vmatprep.subr.bf16.mxu0 0
    %592 = vmatpush2.bf16.msra.mxu0 0
    %593 = vmatprep.subr.bf16.mxu0 0
    %594 = vmatpush2.bf16.msra.mxu0 0
    %595 = vmatprep.subr.bf16.mxu0 0
    %596 = vmatpush2.bf16.msra.mxu0 0
    %597 = vmatprep.mubr.bf16.mxu0 0
    %598 = vmatmul.mubr.bf16.gmra.mxu0 %v489
    %v599 = vpop.f32.mrf.mxu0
    %v600 = vadd.f32 %v70, %v599
    %v601 = vpop.f32.mrf.mxu0
    %v602 = vpop.f32.mrf.mxu0
    %v603 = vadd.f32 %v70, %v602
    %v604 = vpop.f32.mrf.mxu0
    %605 = vdwg.mxu0
    %v606 = vmul.f32 %v543, %v600
    %v607 = vmul.f32 %v544, %v603
    %v608 = vadd.f32 %v563, %v606
    %v609 = vadd.f32 %v564, %v607
    %v610 = vtanh.pop %v608
    %v611 = vtanh.pop %v609
    %v612 = vsub.f32 %v482, %v610
    %v613 = vsub.f32 %v483, %v611
    %v614 = vmul.f32 %v561, %v612
    %v615 = vmul.f32 %v562, %v613
    %v616 = vadd.f32 %v610, %v614
    %v617 = vadd.f32 %v611, %v615
    %s618 = sadd.s32 %s64, 1
    %v619 = vstv %s618
    %vm620 = vcmp.lt.s32.totalorder %v619, %v62
    %vm621 = vcmp.lt.s32.totalorder %v619, %v63
    %v622 = vsel %vm620, 1, 0
    %v623 = vsel %vm621, 1, 0
    %624 = vset.pattern.permute.xlu0 0
    %625 = vperm.xlu0 %624, %v622
    %v626 = vpop.permute.xlu0 %625
    %627 = vset.pattern.permute.xlu0 0
    %628 = vperm.xlu0 %627, %v623
    %v629 = vpop.permute.xlu0 %628
    %vm630 = vcmp.eq.s32.totalorder %v626, 1
    %vm631 = vcmp.eq.s32.totalorder %v629, 1
    %v632 = vsel %vm630, %v616, 0.0
    %v633 = vsel %vm631, %v617, 0.0
    %v636 = vcombine.high %v632, %v632
    %v638 = vunpack.c.l.s4 1966171168
    %v639 = vunpack.c.0.s8 %v638
    %v640 = vlaneseq
    %v641 = vshrl.u32 %v640, 7
    %v642 = vsub.s32 %v639, %v641
    %v643 = vrot.slane %v632, %v642
    %v645 = vunpack.c.l.s4 1966171168
    %v646 = vunpack.c.0.s8 %v645
    %v647 = vlaneseq
    %v648 = vshrl.u32 %v647, 7
    %v649 = vsub.s32 %v646, %v648
    %v650 = vrot.slane %v636, %v649
    %v651 = vcombine.high %v643, %v643
    %v652 = vcombine.high %v650, %v650
    %v654 = vunpack.c.l.s4 1966171168
    %v655 = vunpack.c.0.s8 %v654
    %v656 = vlaneseq
    %v657 = vshrl.u32 %v656, 7
    %v658 = vsub.s32 %v655, %v657
    %v659 = vrot.slane %v643, %v658
    %v661 = vunpack.c.l.s4 1966171168
    %v662 = vunpack.c.0.s8 %v661
    %v663 = vlaneseq
    %v664 = vshrl.u32 %v663, 7
    %v665 = vsub.s32 %v662, %v664
    %v666 = vrot.slane %v650, %v665
    %v668 = vunpack.c.l.s4 1966171168
    %v669 = vunpack.c.0.s8 %v668
    %v670 = vlaneseq
    %v671 = vshrl.u32 %v670, 7
    %v672 = vsub.s32 %v669, %v671
    %v673 = vrot.slane %v651, %v672
    %v675 = vunpack.c.l.s4 1966171168
    %v676 = vunpack.c.0.s8 %v675
    %v677 = vlaneseq
    %v678 = vshrl.u32 %v677, 7
    %v679 = vsub.s32 %v676, %v678
    %v680 = vrot.slane %v652, %v679
    %v681 = vcombine.high %v659, %v659
    %v682 = vcombine.high %v666, %v666
    %v683 = vcombine.high %v673, %v673
    %v684 = vcombine.high %v680, %v680
    %v685 = vcombine.high %v633, %v633
    %v687 = vunpack.c.l.s4 1966171168
    %v688 = vunpack.c.0.s8 %v687
    %v689 = vlaneseq
    %v690 = vshrl.u32 %v689, 7
    %v691 = vsub.s32 %v688, %v690
    %v692 = vrot.slane %v633, %v691
    %v694 = vunpack.c.l.s4 1966171168
    %v695 = vunpack.c.0.s8 %v694
    %v696 = vlaneseq
    %v697 = vshrl.u32 %v696, 7
    %v698 = vsub.s32 %v695, %v697
    %v699 = vrot.slane %v685, %v698
    %v700 = vcombine.high %v692, %v692
    %v701 = vcombine.high %v699, %v699
    %v703 = vunpack.c.l.s4 1966171168
    %v704 = vunpack.c.0.s8 %v703
    %v705 = vlaneseq
    %v706 = vshrl.u32 %v705, 7
    %v707 = vsub.s32 %v704, %v706
    %v708 = vrot.slane %v692, %v707
    %v710 = vunpack.c.l.s4 1966171168
    %v711 = vunpack.c.0.s8 %v710
    %v712 = vlaneseq
    %v713 = vshrl.u32 %v712, 7
    %v714 = vsub.s32 %v711, %v713
    %v715 = vrot.slane %v699, %v714
    %v717 = vunpack.c.l.s4 1966171168
    %v718 = vunpack.c.0.s8 %v717
    %v719 = vlaneseq
    %v720 = vshrl.u32 %v719, 7
    %v721 = vsub.s32 %v718, %v720
    %v722 = vrot.slane %v700, %v721
    %v724 = vunpack.c.l.s4 1966171168
    %v725 = vunpack.c.0.s8 %v724
    %v726 = vlaneseq
    %v727 = vshrl.u32 %v726, 7
    %v728 = vsub.s32 %v725, %v727
    %v729 = vrot.slane %v701, %v728
    %v730 = vcombine.high %v708, %v708
    %v731 = vcombine.high %v715, %v715
    %v732 = vcombine.high %v722, %v722
    %v733 = vcombine.high %v729, %v729
    %750 = vst [vmem:[%s5 + $0x1] sm:$0x1] %v659
    %751 = vst [vmem:[%s5 + $0x5] sm:$0x1] %v673
    %752 = vst [vmem:[%s5 + $0x9] sm:$0x1] %v681
    %753 = vst [vmem:[%s5 + $0xd] sm:$0x1] %v683
    %754 = vst [vmem:[%s5 + $0x11] sm:$0x1] %v666
    %755 = vst [vmem:[%s5 + $0x15] sm:$0x1] %v680
    %756 = vst [vmem:[%s5 + $0x19] sm:$0x1] %v682
    %757 = vst [vmem:[%s5 + $0x1d] sm:$0x1] %v684
    %758 = vst [vmem:[%s5 + $0x21] sm:$0x1] %v708
    %759 = vst [vmem:[%s5 + $0x25] sm:$0x1] %v722
    %760 = vst [vmem:[%s5 + $0x29] sm:$0x1] %v730
    %761 = vst [vmem:[%s5 + $0x2d] sm:$0x1] %v732
    %762 = vst [vmem:[%s5 + $0x31] sm:$0x1] %v715
    %763 = vst [vmem:[%s5 + $0x35] sm:$0x1] %v729
    %764 = vst [vmem:[%s5 + $0x39] sm:$0x1] %v731
    %765 = vst [vmem:[%s5 + $0x3d] sm:$0x1] %v733
    %v766 = vsel %vm630, %v616, %v482
    %v767 = vsel %vm631, %v617, %v483
    %s768 = scalar_lea.vmem %s1, 48
    %v769 = vld [vmem:[%s768] sm:$0xff]
    %v770 = vld [vmem:[%s768 + $0x8] sm:$0xf]
    %v771 = vld [vmem:[%s768 + $0xc] sm:$0xff]
    %v772 = vld [vmem:[%s768 + $0x14] sm:$0xf]
    %v773 = vpack.c.bf16 %v767, %v766
    %774 = vmatprep.subr.bf16.mxu0 %v142
    %775 = vmatpush1.bf16.msra.mxu0 %v141
    %776 = vmatprep.subr.bf16.mxu0 %v140
    %777 = vmatpush1.bf16.msra.mxu0 %v139
    %778 = vmatprep.subr.bf16.mxu0 %v138
    %779 = vmatpush1.bf16.msra.mxu0 %v137
    %780 = vmatprep.subr.bf16.mxu0 %v136
    %781 = vmatpush1.bf16.msra.mxu0 %v135
    %782 = vmatprep.subr.bf16.mxu0 %v134
    %783 = vmatpush1.bf16.msra.mxu0 %v133
    %784 = vmatprep.subr.bf16.mxu0 %v132
    %785 = vmatpush1.bf16.msra.mxu0 %v131
    %786 = vmatprep.subr.bf16.mxu0 %v130
    %787 = vmatpush1.bf16.msra.mxu0 %v129
    %788 = vmatprep.subr.bf16.mxu0 %v128
    %789 = vmatpush1.bf16.msra.mxu0 %v127
    %790 = vmatprep.subr.bf16.mxu0 0
    %791 = vmatpush2.bf16.msra.mxu0 0
    %792 = vmatprep.subr.bf16.mxu0 0
    %793 = vmatpush2.bf16.msra.mxu0 0
    %794 = vmatprep.subr.bf16.mxu0 0
    %795 = vmatpush2.bf16.msra.mxu0 0
    %796 = vmatprep.subr.bf16.mxu0 0
    %797 = vmatpush2.bf16.msra.mxu0 0
    %798 = vmatprep.subr.bf16.mxu0 0
    %799 = vmatpush2.bf16.msra.mxu0 0
    %800 = vmatprep.subr.bf16.mxu0 0
    %801 = vmatpush2.bf16.msra.mxu0 0
    %802 = vmatprep.subr.bf16.mxu0 0
    %803 = vmatpush2.bf16.msra.mxu0 0
    %804 = vmatprep.subr.bf16.mxu0 0
    %805 = vmatpush2.bf16.msra.mxu0 0
    %806 = vmatprep.mubr.bf16.mxu0 0
    %807 = vmatmul.mubr.bf16.gmra.mxu0 %v773
    %v808 = vpop.f32.mrf.mxu0
    %v809 = vadd.f32 0.0, %v808
    %v810 = vpop.f32.mrf.mxu0
    %v811 = vadd.f32 0.0, %v810
    %v812 = vpop.f32.mrf.mxu0
    %v813 = vadd.f32 0.0, %v812
    %v814 = vpop.f32.mrf.mxu0
    %v815 = vadd.f32 0.0, %v814
    %816 = vdwg.mxu0
    %v817 = vunpack.c.l.bf16 %v769
    %v818 = vunpack.c.l.bf16 %v771
    %v819 = vadd.f32 %v817, %v809
    %v820 = vadd.f32 %v818, %v813
    %v821 = vmul.f32 %v819, 0.5
    %v822 = vmul.f32 %v820, 0.5
    %v823 = vtanh.pop %v821
    %v824 = vtanh.pop %v822
    %v825 = vmul.f32 %v823, 0.5
    %v826 = vmul.f32 %v824, 0.5
    %v827 = vadd.f32 %v825, 0.5
    %v828 = vadd.f32 %v826, 0.5
    %v831 = vrot.slane %v769, 4
    %v832 = vrot.slane %v771, 4
    %v835 = vunpack.c.l.bf16 %v831
    %v836 = vunpack.c.l.bf16 %v832
    %v837 = vadd.f32 %v835, %v811
    %v838 = vadd.f32 %v836, %v815
    %v839 = vmul.f32 %v837, 0.5
    %v840 = vmul.f32 %v838, 0.5
    %v841 = vtanh.pop %v839
    %v842 = vtanh.pop %v840
    %v843 = vmul.f32 %v841, 0.5
    %v844 = vmul.f32 %v842, 0.5
    %v845 = vadd.f32 %v843, 0.5
    %v846 = vadd.f32 %v844, 0.5
    %v847 = vunpack.c.l.bf16 %v770
    %v848 = vunpack.c.l.bf16 %v772
    %849 = vmatprep.subr.bf16.mxu0 0
    %850 = vmatpush1.bf16.msra.mxu0 %v273
    %851 = vmatprep.subr.bf16.mxu0 0
    %852 = vmatpush1.bf16.msra.mxu0 %v272
    %853 = vmatprep.subr.bf16.mxu0 0
    %854 = vmatpush1.bf16.msra.mxu0 %v271
    %855 = vmatprep.subr.bf16.mxu0 0
    %856 = vmatpush1.bf16.msra.mxu0 %v270
    %857 = vmatprep.subr.bf16.mxu0 0
    %858 = vmatpush1.bf16.msra.mxu0 %v269
    %859 = vmatprep.subr.bf16.mxu0 0
    %860 = vmatpush1.bf16.msra.mxu0 %v268
    %861 = vmatprep.subr.bf16.mxu0 0
    %862 = vmatpush1.bf16.msra.mxu0 %v267
    %863 = vmatprep.subr.bf16.mxu0 0
    %864 = vmatpush1.bf16.msra.mxu0 %v266
    %865 = vmatprep.subr.bf16.mxu0 0
    %866 = vmatpush2.bf16.msra.mxu0 0
    %867 = vmatprep.subr.bf16.mxu0 0
    %868 = vmatpush2.bf16.msra.mxu0 0
    %869 = vmatprep.subr.bf16.mxu0 0
    %870 = vmatpush2.bf16.msra.mxu0 0
    %871 = vmatprep.subr.bf16.mxu0 0
    %872 = vmatpush2.bf16.msra.mxu0 0
    %873 = vmatprep.subr.bf16.mxu0 0
    %874 = vmatpush2.bf16.msra.mxu0 0
    %875 = vmatprep.subr.bf16.mxu0 0
    %876 = vmatpush2.bf16.msra.mxu0 0
    %877 = vmatprep.subr.bf16.mxu0 0
    %878 = vmatpush2.bf16.msra.mxu0 0
    %879 = vmatprep.subr.bf16.mxu0 0
    %880 = vmatpush2.bf16.msra.mxu0 0
    %881 = vmatprep.mubr.bf16.mxu0 0
    %882 = vmatmul.mubr.bf16.gmra.mxu0 %v773
    %v883 = vpop.f32.mrf.mxu0
    %v884 = vadd.f32 %v70, %v883
    %v885 = vpop.f32.mrf.mxu0
    %v886 = vpop.f32.mrf.mxu0
    %v887 = vadd.f32 %v70, %v886
    %v888 = vpop.f32.mrf.mxu0
    %889 = vdwg.mxu0
    %v890 = vmul.f32 %v827, %v884
    %v891 = vmul.f32 %v828, %v887
    %v892 = vadd.f32 %v847, %v890
    %v893 = vadd.f32 %v848, %v891
    %v894 = vtanh.pop %v892
    %v895 = vtanh.pop %v893
    %v896 = vsub.f32 %v766, %v894
    %v897 = vsub.f32 %v767, %v895
    %v898 = vmul.f32 %v845, %v896
    %v899 = vmul.f32 %v846, %v897
    %v900 = vadd.f32 %v894, %v898
    %v901 = vadd.f32 %v895, %v899
    %s902 = sadd.s32 %s64, 2
    %v903 = vstv %s902
    %vm904 = vcmp.lt.s32.totalorder %v903, %v62
    %vm905 = vcmp.lt.s32.totalorder %v903, %v63
    %v906 = vsel %vm904, 1, 0
    %v907 = vsel %vm905, 1, 0
    %908 = vset.pattern.permute.xlu0 0
    %909 = vperm.xlu0 %908, %v906
    %v910 = vpop.permute.xlu0 %909
    %911 = vset.pattern.permute.xlu0 0
    %912 = vperm.xlu0 %911, %v907
    %v913 = vpop.permute.xlu0 %912
    %vm914 = vcmp.eq.s32.totalorder %v910, 1
    %vm915 = vcmp.eq.s32.totalorder %v913, 1
    %v916 = vsel %vm914, %v900, 0.0
    %v917 = vsel %vm915, %v901, 0.0
    %v920 = vcombine.high %v916, %v916
    %v922 = vunpack.c.l.s4 1966171168
    %v923 = vunpack.c.0.s8 %v922
    %v924 = vlaneseq
    %v925 = vshrl.u32 %v924, 7
    %v926 = vsub.s32 %v923, %v925
    %v927 = vrot.slane %v916, %v926
    %v929 = vunpack.c.l.s4 1966171168
    %v930 = vunpack.c.0.s8 %v929
    %v931 = vlaneseq
    %v932 = vshrl.u32 %v931, 7
    %v933 = vsub.s32 %v930, %v932
    %v934 = vrot.slane %v920, %v933
    %v935 = vcombine.high %v927, %v927
    %v936 = vcombine.high %v934, %v934
    %v938 = vunpack.c.l.s4 1966171168
    %v939 = vunpack.c.0.s8 %v938
    %v940 = vlaneseq
    %v941 = vshrl.u32 %v940, 7
    %v942 = vsub.s32 %v939, %v941
    %v943 = vrot.slane %v927, %v942
    %v945 = vunpack.c.l.s4 1966171168
    %v946 = vunpack.c.0.s8 %v945
    %v947 = vlaneseq
    %v948 = vshrl.u32 %v947, 7
    %v949 = vsub.s32 %v946, %v948
    %v950 = vrot.slane %v934, %v949
    %v952 = vunpack.c.l.s4 1966171168
    %v953 = vunpack.c.0.s8 %v952
    %v954 = vlaneseq
    %v955 = vshrl.u32 %v954, 7
    %v956 = vsub.s32 %v953, %v955
    %v957 = vrot.slane %v935, %v956
    %v959 = vunpack.c.l.s4 1966171168
    %v960 = vunpack.c.0.s8 %v959
    %v961 = vlaneseq
    %v962 = vshrl.u32 %v961, 7
    %v963 = vsub.s32 %v960, %v962
    %v964 = vrot.slane %v936, %v963
    %v965 = vcombine.high %v943, %v943
    %v966 = vcombine.high %v950, %v950
    %v967 = vcombine.high %v957, %v957
    %v968 = vcombine.high %v964, %v964
    %v969 = vcombine.high %v917, %v917
    %v971 = vunpack.c.l.s4 1966171168
    %v972 = vunpack.c.0.s8 %v971
    %v973 = vlaneseq
    %v974 = vshrl.u32 %v973, 7
    %v975 = vsub.s32 %v972, %v974
    %v976 = vrot.slane %v917, %v975
    %v978 = vunpack.c.l.s4 1966171168
    %v979 = vunpack.c.0.s8 %v978
    %v980 = vlaneseq
    %v981 = vshrl.u32 %v980, 7
    %v982 = vsub.s32 %v979, %v981
    %v983 = vrot.slane %v969, %v982
    %v984 = vcombine.high %v976, %v976
    %v985 = vcombine.high %v983, %v983
    %v987 = vunpack.c.l.s4 1966171168
    %v988 = vunpack.c.0.s8 %v987
    %v989 = vlaneseq
    %v990 = vshrl.u32 %v989, 7
    %v991 = vsub.s32 %v988, %v990
    %v992 = vrot.slane %v976, %v991
    %v994 = vunpack.c.l.s4 1966171168
    %v995 = vunpack.c.0.s8 %v994
    %v996 = vlaneseq
    %v997 = vshrl.u32 %v996, 7
    %v998 = vsub.s32 %v995, %v997
    %v999 = vrot.slane %v983, %v998
    %v1001 = vunpack.c.l.s4 1966171168
    %v1002 = vunpack.c.0.s8 %v1001
    %v1003 = vlaneseq
    %v1004 = vshrl.u32 %v1003, 7
    %v1005 = vsub.s32 %v1002, %v1004
    %v1006 = vrot.slane %v984, %v1005
    %v1008 = vunpack.c.l.s4 1966171168
    %v1009 = vunpack.c.0.s8 %v1008
    %v1010 = vlaneseq
    %v1011 = vshrl.u32 %v1010, 7
    %v1012 = vsub.s32 %v1009, %v1011
    %v1013 = vrot.slane %v985, %v1012
    %v1014 = vcombine.high %v992, %v992
    %v1015 = vcombine.high %v999, %v999
    %v1016 = vcombine.high %v1006, %v1006
    %v1017 = vcombine.high %v1013, %v1013
    %1034 = vst [vmem:[%s5 + $0x2] sm:$0x1] %v943
    %1035 = vst [vmem:[%s5 + $0x6] sm:$0x1] %v957
    %1036 = vst [vmem:[%s5 + $0xa] sm:$0x1] %v965
    %1037 = vst [vmem:[%s5 + $0xe] sm:$0x1] %v967
    %1038 = vst [vmem:[%s5 + $0x12] sm:$0x1] %v950
    %1039 = vst [vmem:[%s5 + $0x16] sm:$0x1] %v964
    %1040 = vst [vmem:[%s5 + $0x1a] sm:$0x1] %v966
    %1041 = vst [vmem:[%s5 + $0x1e] sm:$0x1] %v968
    %1042 = vst [vmem:[%s5 + $0x22] sm:$0x1] %v992
    %1043 = vst [vmem:[%s5 + $0x26] sm:$0x1] %v1006
    %1044 = vst [vmem:[%s5 + $0x2a] sm:$0x1] %v1014
    %1045 = vst [vmem:[%s5 + $0x2e] sm:$0x1] %v1016
    %1046 = vst [vmem:[%s5 + $0x32] sm:$0x1] %v999
    %1047 = vst [vmem:[%s5 + $0x36] sm:$0x1] %v1013
    %1048 = vst [vmem:[%s5 + $0x3a] sm:$0x1] %v1015
    %1049 = vst [vmem:[%s5 + $0x3e] sm:$0x1] %v1017
    %v1050 = vsel %vm914, %v900, %v766
    %v1051 = vsel %vm915, %v901, %v767
    %1052 = vst [vmem:[#allocation2] sm:$0xff] %v1050
    %1053 = vst [vmem:[#allocation2 + $0x8] sm:$0xff] %v1051
    // Predicated region
    $region26: #{_lambda_.3} parent=1 // pred_check
      %p1054 = pneg %p24
    $region27: #{_lambda_.3} parent=1 // pred_check_branch
      %1056 = sbr.rel (%p1054) target = $region29
    $region28: #{_lambda_.3} parent=1 // pred_region
      %v1057 = vld [vmem:[#allocation2] sm:$0xff]
      %v1058 = vld [vmem:[#allocation2 + $0x8] sm:$0xff]
      %1059 = vst [vmem:[#allocation3] sm:$0xff] %v1057
      %1060 = vst [vmem:[#allocation3 + $0x8] sm:$0xff] %v1058
    $region29: #{_lambda_.3} parent=1 // pred_fallthru
      _
    // Predicated region
    $region30: #{_lambda_.3} parent=1 // pred_check
      _
    $region31: #{_lambda_.3} parent=1 // pred_check_branch
      %1062 = sbr.rel (0) target = $region33
    $region32: #{_lambda_.3} parent=1 // pred_region
      _
    $region33: #{_lambda_.3} parent=1 // pred_fallthru
      _
    // Predicated region
    $region34: #{_lambda_.3} parent=1 // pred_check
      _
    $region35: #{_lambda_.3} parent=1 // pred_check_branch
      %1064 = sbr.rel (0) target = $region37
    $region36: #{_lambda_.3} parent=1 // pred_region
      %s1066 = ssub.s32 256, 256
      %1067 = vsyncadd [#allocation4], %s1066
      %s1068 = sshll.u32 [#allocation3], 4
      %s1069 = int_to_ptr.vmem [resolvable:$true] %s1068
      %1074 = dma.vmem_to_hbm [thread:$0]  %s1069, 256, %s6, [#allocation4], 128, 128, 8
    $region37: #{_lambda_.3} parent=1 // pred_fallthru
      _
    // Predicated region
    $region38: #{_lambda_.3} parent=1 // pred_check
      _
    $region39: #{_lambda_.3} parent=1 // pred_check_branch
      %1076 = sbr.rel (0) target = $region41
    $region40: #{_lambda_.3} parent=1 // pred_region
      _
    $region41: #{_lambda_.3} parent=1 // pred_fallthru
      _
    // Predicated region
    $region42: #{_lambda_.3} parent=1 // pred_check
      _
    $region43: #{_lambda_.3} parent=1 // pred_check_branch
      %1078 = sbr.rel (0) target = $region45
    $region44: #{_lambda_.3} parent=1 // pred_region
      %1079 = dma.done [#allocation4], 256
    $region45: #{_lambda_.3} parent=1 // pred_fallthru
      _
    %1080 = vsyncpa [#allocation4], 1

// kernel: _lambda_.2
$region0: #{_lambda_.2}
  #allocation0 [shape = 'u32[]', space=smem, size = 0x4, offset = 0x4, fixed_abs, tag = 'smem constant byte address 0x4 - core index']
  #allocation1 [shape = 'u32[144,128]{1,0:T(1,128)}', space=vmem, size = 0x12000, scoped, tag = 'internal scratch']
  #allocation2 [shape = 'f32[16,128]{1,0:T(8,128)}', space=vmem, size = 0x2000, scoped, tag = 'scratch operand']
  %s0 = inlined_call_operand.vmem [shape: s32[16,1], index: 0, kind: input, shape index: {}]
  %s1 = inlined_call_operand.vmem [shape: bf16[12,16,384], index: 1, kind: input, shape index: {}]
  %s2 = inlined_call_operand.vmem [shape: bf16[128,256], index: 2, kind: input, shape index: {}]
  %s3 = inlined_call_operand.vmem [shape: bf16[128,128], index: 3, kind: input, shape index: {}]
  %s4 = inlined_call_operand.vmem [shape: f32[1,128], index: 4, kind: input, shape index: {}]
  %s5 = inlined_call_operand.vmem [shape: f32[16,12,128], index: 5, kind: output, shape index: {0}]
  %s6 = inlined_call_operand.hbm [shape: f32[16,128], index: 6, kind: output, shape index: {1}]
  %7 = xla_tuple %s5, %s6
  %s8 = sld [smem:[#allocation0]]
  $region46: #{_lambda_.2} parent=0
    _
  %s10 = ssub.s32 1, %s8
  %s11 = scalar_select 0, %s10, %s8
  $region1: #{_lambda_.2} parent=0
    #allocation3 [shape = 'u8[8192]{0}', space=vmem, size = 0x2000, scoped, tag = 'output window, operand 1, single buffered']
    #allocation4 [shape = 's32[1]{0}', space=sflag, size = 0x4, scoped, tag = 'scoped memory for _lambda_.2']
    %12 = vsyncpa [#allocation4], 0
    // Predicated region
    $region2: #{_lambda_.2} parent=1 // pred_check
      _
    $region3: #{_lambda_.2} parent=1 // pred_check_branch
      %14 = sbr.rel (0) target = $region5
    $region4: #{_lambda_.2} parent=1 // pred_region
      _
    $region5: #{_lambda_.2} parent=1 // pred_fallthru
      _
    // Predicated region
    $region6: #{_lambda_.2} parent=1 // pred_check
      _
    $region7: #{_lambda_.2} parent=1 // pred_check_branch
      %16 = sbr.rel (0) target = $region9
    $region8: #{_lambda_.2} parent=1 // pred_region
      _
    $region9: #{_lambda_.2} parent=1 // pred_fallthru
      _
    // Predicated region
    $region10: #{_lambda_.2} parent=1 // pred_check
      _
    $region11: #{_lambda_.2} parent=1 // pred_check_branch
      %18 = sbr.rel (0) target = $region13
    $region12: #{_lambda_.2} parent=1 // pred_region
      _
    $region13: #{_lambda_.2} parent=1 // pred_fallthru
      _
    // Predicated region
    $region14: #{_lambda_.2} parent=1 // pred_check
      _
    $region15: #{_lambda_.2} parent=1 // pred_check_branch
      %20 = sbr.rel (0) target = $region17
    $region16: #{_lambda_.2} parent=1 // pred_region
      _
    $region17: #{_lambda_.2} parent=1 // pred_fallthru
      _
    // Predicated region
    $region18: #{_lambda_.2} parent=1 // pred_check
      _
    $region19: #{_lambda_.2} parent=1 // pred_check_branch
      %22 = sbr.rel (0) target = $region21
    $region20: #{_lambda_.2} parent=1 // pred_region
      _
    $region21: #{_lambda_.2} parent=1 // pred_fallthru
      _
    %p24 = scmp.eq.s32.totalorder 0, 0
    // Predicated region
    $region22: #{_lambda_.2} parent=1 // pred_check
      %p25 = pneg %p24
    $region23: #{_lambda_.2} parent=1 // pred_check_branch
      %27 = sbr.rel (%p25) target = $region25
    $region24: #{_lambda_.2} parent=1 // pred_region
      %28 = vst [vmem:[#allocation2] sm:$0xff] 0.0
      %29 = vst [vmem:[#allocation2 + $0x8] sm:$0xff] 0.0
    $region25: #{_lambda_.2} parent=1 // pred_fallthru
      _
    %v30 = vld [vmem:[%s2] sm:$0xff]
    %v31 = vld [vmem:[%s2 + $0x8] sm:$0xff]
    %v32 = vld [vmem:[%s2 + $0x10] sm:$0xff]
    %v33 = vld [vmem:[%s2 + $0x18] sm:$0xff]
    %v34 = vld [vmem:[%s2 + $0x20] sm:$0xff]
    %v35 = vld [vmem:[%s2 + $0x28] sm:$0xff]
    %v36 = vld [vmem:[%s2 + $0x30] sm:$0xff]
    %v37 = vld [vmem:[%s2 + $0x38] sm:$0xff]
    %v38 = vld [vmem:[%s2 + $0x40] sm:$0xff]
    %v39 = vld [vmem:[%s2 + $0x48] sm:$0xff]
    %v40 = vld [vmem:[%s2 + $0x50] sm:$0xff]
    %v41 = vld [vmem:[%s2 + $0x58] sm:$0xff]
    %v42 = vld [vmem:[%s2 + $0x60] sm:$0xff]
    %v43 = vld [vmem:[%s2 + $0x68] sm:$0xff]
    %v44 = vld [vmem:[%s2 + $0x70] sm:$0xff]
    %v45 = vld [vmem:[%s2 + $0x78] sm:$0xff]
    %v46 = vld [vmem:[%s3] sm:$0xf]
    %v47 = vld [vmem:[%s3 + $0x4] sm:$0xf]
    %v48 = vld [vmem:[%s3 + $0x8] sm:$0xf]
    %v49 = vld [vmem:[%s3 + $0xc] sm:$0xf]
    %v50 = vld [vmem:[%s3 + $0x10] sm:$0xf]
    %v51 = vld [vmem:[%s3 + $0x14] sm:$0xf]
    %v52 = vld [vmem:[%s3 + $0x18] sm:$0xf]
    %v53 = vld [vmem:[%s3 + $0x1c] sm:$0xf]
    %v54 = vld [vmem:[%s3 + $0x20] sm:$0xf]
    %v55 = vld [vmem:[%s3 + $0x24] sm:$0xf]
    %v56 = vld [vmem:[%s3 + $0x28] sm:$0xf]
    %v57 = vld [vmem:[%s3 + $0x2c] sm:$0xf]
    %v58 = vld [vmem:[%s3 + $0x30] sm:$0xf]
    %v59 = vld [vmem:[%s3 + $0x34] sm:$0xf]
    %v60 = vld [vmem:[%s3 + $0x38] sm:$0xf]
    %v61 = vld [vmem:[%s3 + $0x3c] sm:$0xf]
    %v62 = vld [vmem:[%s0] sm:$0xff]
    %v63 = vld [vmem:[%s0 + $0x8] sm:$0xff]
    %s64 = smul.u32 0, 12
    %v65 = vld [vmem:[%s4] sm:$0x1]
    %v67 = vlaneseq
    %v68 = vshrl.u32 %v67, 7
    %v69 = vsub.s32 0, %v68
    %v70 = vrot.slane %v65, %v69
    %v72 = vld [vmem:[#allocation2] sm:$0xff]
    %v73 = vld [vmem:[#allocation2 + $0x8] sm:$0xff]
    %v74 = vld [vmem:[%s1] sm:$0xff]
    %v75 = vld [vmem:[%s1 + $0x8] sm:$0xf]
    %v76 = vld [vmem:[%s1 + $0xc] sm:$0xff]
    %v77 = vld [vmem:[%s1 + $0x14] sm:$0xf]
    %v78 = vpack.c.bf16 %v73, %v72
    %v95 = vunpack.c.l.b16 %v30
    %v96 = vunpack.c.h.b16 %v30
    %v97 = vunpack.c.l.b16 %v31
    %v98 = vunpack.c.h.b16 %v31
    %v99 = vunpack.c.l.b16 %v32
    %v100 = vunpack.c.h.b16 %v32
    %v101 = vunpack.c.l.b16 %v33
    %v102 = vunpack.c.h.b16 %v33
    %v103 = vunpack.c.l.b16 %v34
    %v104 = vunpack.c.h.b16 %v34
    %v105 = vunpack.c.l.b16 %v35
    %v106 = vunpack.c.h.b16 %v35
    %v107 = vunpack.c.l.b16 %v36
    %v108 = vunpack.c.h.b16 %v36
    %v109 = vunpack.c.l.b16 %v37
    %v110 = vunpack.c.h.b16 %v37
    %v111 = vunpack.c.l.b16 %v38
    %v112 = vunpack.c.h.b16 %v38
    %v113 = vunpack.c.l.b16 %v39
    %v114 = vunpack.c.h.b16 %v39
    %v115 = vunpack.c.l.b16 %v40
    %v116 = vunpack.c.h.b16 %v40
    %v117 = vunpack.c.l.b16 %v41
    %v118 = vunpack.c.h.b16 %v41
    %v119 = vunpack.c.l.b16 %v42
    %v120 = vunpack.c.h.b16 %v42
    %v121 = vunpack.c.l.b16 %v43
    %v122 = vunpack.c.h.b16 %v43
    %v123 = vunpack.c.l.b16 %v44
    %v124 = vunpack.c.h.b16 %v44
    %v125 = vunpack.c.l.b16 %v45
    %v126 = vunpack.c.h.b16 %v45
    %v127 = vpack.c.b16 %v97, %v95
    %v128 = vpack.c.b16 %v98, %v96
    %v129 = vpack.c.b16 %v101, %v99
    %v130 = vpack.c.b16 %v102, %v100
    %v131 = vpack.c.b16 %v105, %v103
    %v132 = vpack.c.b16 %v106, %v104
    %v133 = vpack.c.b16 %v109, %v107
    %v134 = vpack.c.b16 %v110, %v108
    %v135 = vpack.c.b16 %v113, %v111
    %v136 = vpack.c.b16 %v114, %v112
    %v137 = vpack.c.b16 %v117, %v115
    %v138 = vpack.c.b16 %v118, %v116
    %v139 = vpack.c.b16 %v121, %v119
    %v140 = vpack.c.b16 %v122, %v120
    %v141 = vpack.c.b16 %v125, %v123
    %v142 = vpack.c.b16 %v126, %v124
    %159 = vmatprep.subr.bf16.mxu0 %v142
    %160 = vmatpush1.bf16.msra.mxu0 %v141
    %161 = vmatprep.subr.bf16.mxu0 %v140
    %162 = vmatpush1.bf16.msra.mxu0 %v139
    %163 = vmatprep.subr.bf16.mxu0 %v138
    %164 = vmatpush1.bf16.msra.mxu0 %v137
    %165 = vmatprep.subr.bf16.mxu0 %v136
    %166 = vmatpush1.bf16.msra.mxu0 %v135
    %167 = vmatprep.subr.bf16.mxu0 %v134
    %168 = vmatpush1.bf16.msra.mxu0 %v133
    %169 = vmatprep.subr.bf16.mxu0 %v132
    %170 = vmatpush1.bf16.msra.mxu0 %v131
    %171 = vmatprep.subr.bf16.mxu0 %v130
    %172 = vmatpush1.bf16.msra.mxu0 %v129
    %173 = vmatprep.subr.bf16.mxu0 %v128
    %174 = vmatpush1.bf16.msra.mxu0 %v127
    %175 = vmatprep.subr.bf16.mxu0 0
    %176 = vmatpush2.bf16.msra.mxu0 0
    %177 = vmatprep.subr.bf16.mxu0 0
    %178 = vmatpush2.bf16.msra.mxu0 0
    %179 = vmatprep.subr.bf16.mxu0 0
    %180 = vmatpush2.bf16.msra.mxu0 0
    %181 = vmatprep.subr.bf16.mxu0 0
    %182 = vmatpush2.bf16.msra.mxu0 0
    %183 = vmatprep.subr.bf16.mxu0 0
    %184 = vmatpush2.bf16.msra.mxu0 0
    %185 = vmatprep.subr.bf16.mxu0 0
    %186 = vmatpush2.bf16.msra.mxu0 0
    %187 = vmatprep.subr.bf16.mxu0 0
    %188 = vmatpush2.bf16.msra.mxu0 0
    %189 = vmatprep.subr.bf16.mxu0 0
    %190 = vmatpush2.bf16.msra.mxu0 0
    %191 = vmatprep.mubr.bf16.mxu0 0
    %192 = vmatmul.mubr.bf16.gmra.mxu0 %v78
    %v193 = vpop.f32.mrf.mxu0
    %v194 = vadd.f32 0.0, %v193
    %v195 = vpop.f32.mrf.mxu0
    %v196 = vadd.f32 0.0, %v195
    %v197 = vpop.f32.mrf.mxu0
    %v198 = vadd.f32 0.0, %v197
    %v199 = vpop.f32.mrf.mxu0
    %v200 = vadd.f32 0.0, %v199
    %201 = vdwg.mxu0
    %v202 = vunpack.c.l.bf16 %v74
    %v203 = vunpack.c.l.bf16 %v76
    %v204 = vadd.f32 %v202, %v194
    %v205 = vadd.f32 %v203, %v198
    %v206 = vmul.f32 %v204, 0.5
    %v207 = vmul.f32 %v205, 0.5
    %v208 = vtanh.pop %v206
    %v209 = vtanh.pop %v207
    %v210 = vmul.f32 %v208, 0.5
    %v211 = vmul.f32 %v209, 0.5
    %v212 = vadd.f32 %v210, 0.5
    %v213 = vadd.f32 %v211, 0.5
    %v216 = vrot.slane %v74, 4
    %v217 = vrot.slane %v76, 4
    %v220 = vunpack.c.l.bf16 %v216
    %v221 = vunpack.c.l.bf16 %v217
    %v222 = vadd.f32 %v220, %v196
    %v223 = vadd.f32 %v221, %v200
    %v224 = vmul.f32 %v222, 0.5
    %v225 = vmul.f32 %v223, 0.5
    %v226 = vtanh.pop %v224
    %v227 = vtanh.pop %v225
    %v228 = vmul.f32 %v226, 0.5
    %v229 = vmul.f32 %v227, 0.5
    %v230 = vadd.f32 %v228, 0.5
    %v231 = vadd.f32 %v229, 0.5
    %v232 = vunpack.c.l.bf16 %v75
    %v233 = vunpack.c.l.bf16 %v77
    %v250 = vunpack.c.l.b16 %v46
    %v251 = vunpack.c.l.b16 %v47
    %v252 = vunpack.c.l.b16 %v48
    %v253 = vunpack.c.l.b16 %v49
    %v254 = vunpack.c.l.b16 %v50
    %v255 = vunpack.c.l.b16 %v51
    %v256 = vunpack.c.l.b16 %v52
    %v257 = vunpack.c.l.b16 %v53
    %v258 = vunpack.c.l.b16 %v54
    %v259 = vunpack.c.l.b16 %v55
    %v260 = vunpack.c.l.b16 %v56
    %v261 = vunpack.c.l.b16 %v57
    %v262 = vunpack.c.l.b16 %v58
    %v263 = vunpack.c.l.b16 %v59
    %v264 = vunpack.c.l.b16 %v60
    %v265 = vunpack.c.l.b16 %v61
    %v266 = vpack.c.b16 %v251, %v250
    %v267 = vpack.c.b16 %v253, %v252
    %v268 = vpack.c.b16 %v255, %v254
    %v269 = vpack.c.b16 %v257, %v256
    %v270 = vpack.c.b16 %v259, %v258
    %v271 = vpack.c.b16 %v261, %v260
    %v272 = vpack.c.b16 %v263, %v262
    %v273 = vpack.c.b16 %v265, %v264
    %282 = vmatprep.subr.bf16.mxu0 0
    %283 = vmatpush1.bf16.msra.mxu0 %v273
    %284 = vmatprep.subr.bf16.mxu0 0
    %285 = vmatpush1.bf16.msra.mxu0 %v272
    %286 = vmatprep.subr.bf16.mxu0 0
    %287 = vmatpush1.bf16.msra.mxu0 %v271
    %288 = vmatprep.subr.bf16.mxu0 0
    %289 = vmatpush1.bf16.msra.mxu0 %v270
    %290 = vmatprep.subr.bf16.mxu0 0
    %291 = vmatpush1.bf16.msra.mxu0 %v269
    %292 = vmatprep.subr.bf16.mxu0 0
    %293 = vmatpush1.bf16.msra.mxu0 %v268
    %294 = vmatprep.subr.bf16.mxu0 0
    %295 = vmatpush1.bf16.msra.mxu0 %v267
    %296 = vmatprep.subr.bf16.mxu0 0
    %297 = vmatpush1.bf16.msra.mxu0 %v266
    %298 = vmatprep.subr.bf16.mxu0 0
    %299 = vmatpush2.bf16.msra.mxu0 0
    %300 = vmatprep.subr.bf16.mxu0 0
    %301 = vmatpush2.bf16.msra.mxu0 0
    %302 = vmatprep.subr.bf16.mxu0 0
    %303 = vmatpush2.bf16.msra.mxu0 0
    %304 = vmatprep.subr.bf16.mxu0 0
    %305 = vmatpush2.bf16.msra.mxu0 0
    %306 = vmatprep.subr.bf16.mxu0 0
    %307 = vmatpush2.bf16.msra.mxu0 0
    %308 = vmatprep.subr.bf16.mxu0 0
    %309 = vmatpush2.bf16.msra.mxu0 0
    %310 = vmatprep.subr.bf16.mxu0 0
    %311 = vmatpush2.bf16.msra.mxu0 0
    %312 = vmatprep.subr.bf16.mxu0 0
    %313 = vmatpush2.bf16.msra.mxu0 0
    %314 = vmatprep.mubr.bf16.mxu0 0
    %315 = vmatmul.mubr.bf16.gmra.mxu0 %v78
    %v316 = vpop.f32.mrf.mxu0
    %v317 = vadd.f32 %v70, %v316
    %v318 = vpop.f32.mrf.mxu0
    %v319 = vpop.f32.mrf.mxu0
    %v320 = vadd.f32 %v70, %v319
    %v321 = vpop.f32.mrf.mxu0
    %322 = vdwg.mxu0
    %v323 = vmul.f32 %v212, %v317
    %v324 = vmul.f32 %v213, %v320
    %v325 = vadd.f32 %v232, %v323
    %v326 = vadd.f32 %v233, %v324
    %v327 = vtanh.pop %v325
    %v328 = vtanh.pop %v326
    %v329 = vsub.f32 %v72, %v327
    %v330 = vsub.f32 %v73, %v328
    %v331 = vmul.f32 %v230, %v329
    %v332 = vmul.f32 %v231, %v330
    %v333 = vadd.f32 %v327, %v331
    %v334 = vadd.f32 %v328, %v332
    %v335 = vstv %s64
    %vm336 = vcmp.lt.s32.totalorder %v335, %v62
    %vm337 = vcmp.lt.s32.totalorder %v335, %v63
    %v338 = vsel %vm336, 1, 0
    %v339 = vsel %vm337, 1, 0
    %340 = vset.pattern.permute.xlu0 0
    %341 = vperm.xlu0 %340, %v338
    %v342 = vpop.permute.xlu0 %341
    %343 = vset.pattern.permute.xlu0 0
    %344 = vperm.xlu0 %343, %v339
    %v345 = vpop.permute.xlu0 %344
    %vm346 = vcmp.eq.s32.totalorder %v342, 1
    %vm347 = vcmp.eq.s32.totalorder %v345, 1
    %v348 = vsel %vm346, %v333, 0.0
    %v349 = vsel %vm347, %v334, 0.0
    %v352 = vcombine.high %v348, %v348
    %v354 = vunpack.c.l.s4 1966171168
    %v355 = vunpack.c.0.s8 %v354
    %v356 = vlaneseq
    %v357 = vshrl.u32 %v356, 7
    %v358 = vsub.s32 %v355, %v357
    %v359 = vrot.slane %v348, %v358
    %v361 = vunpack.c.l.s4 1966171168
    %v362 = vunpack.c.0.s8 %v361
    %v363 = vlaneseq
    %v364 = vshrl.u32 %v363, 7
    %v365 = vsub.s32 %v362, %v364
    %v366 = vrot.slane %v352, %v365
    %v367 = vcombine.high %v359, %v359
    %v368 = vcombine.high %v366, %v366
    %v370 = vunpack.c.l.s4 1966171168
    %v371 = vunpack.c.0.s8 %v370
    %v372 = vlaneseq
    %v373 = vshrl.u32 %v372, 7
    %v374 = vsub.s32 %v371, %v373
    %v375 = vrot.slane %v359, %v374
    %v377 = vunpack.c.l.s4 1966171168
    %v378 = vunpack.c.0.s8 %v377
    %v379 = vlaneseq
    %v380 = vshrl.u32 %v379, 7
    %v381 = vsub.s32 %v378, %v380
    %v382 = vrot.slane %v366, %v381
    %v384 = vunpack.c.l.s4 1966171168
    %v385 = vunpack.c.0.s8 %v384
    %v386 = vlaneseq
    %v387 = vshrl.u32 %v386, 7
    %v388 = vsub.s32 %v385, %v387
    %v389 = vrot.slane %v367, %v388
    %v391 = vunpack.c.l.s4 1966171168
    %v392 = vunpack.c.0.s8 %v391
    %v393 = vlaneseq
    %v394 = vshrl.u32 %v393, 7
    %v395 = vsub.s32 %v392, %v394
    %v396 = vrot.slane %v368, %v395
    %v397 = vcombine.high %v375, %v375
    %v398 = vcombine.high %v382, %v382
    %v399 = vcombine.high %v389, %v389
    %v400 = vcombine.high %v396, %v396
    %v401 = vcombine.high %v349, %v349
    %v403 = vunpack.c.l.s4 1966171168
    %v404 = vunpack.c.0.s8 %v403
    %v405 = vlaneseq
    %v406 = vshrl.u32 %v405, 7
    %v407 = vsub.s32 %v404, %v406
    %v408 = vrot.slane %v349, %v407
    %v410 = vunpack.c.l.s4 1966171168
    %v411 = vunpack.c.0.s8 %v410
    %v412 = vlaneseq
    %v413 = vshrl.u32 %v412, 7
    %v414 = vsub.s32 %v411, %v413
    %v415 = vrot.slane %v401, %v414
    %v416 = vcombine.high %v408, %v408
    %v417 = vcombine.high %v415, %v415
    %v419 = vunpack.c.l.s4 1966171168
    %v420 = vunpack.c.0.s8 %v419
    %v421 = vlaneseq
    %v422 = vshrl.u32 %v421, 7
    %v423 = vsub.s32 %v420, %v422
    %v424 = vrot.slane %v408, %v423
    %v426 = vunpack.c.l.s4 1966171168
    %v427 = vunpack.c.0.s8 %v426
    %v428 = vlaneseq
    %v429 = vshrl.u32 %v428, 7
    %v430 = vsub.s32 %v427, %v429
    %v431 = vrot.slane %v415, %v430
    %v433 = vunpack.c.l.s4 1966171168
    %v434 = vunpack.c.0.s8 %v433
    %v435 = vlaneseq
    %v436 = vshrl.u32 %v435, 7
    %v437 = vsub.s32 %v434, %v436
    %v438 = vrot.slane %v416, %v437
    %v440 = vunpack.c.l.s4 1966171168
    %v441 = vunpack.c.0.s8 %v440
    %v442 = vlaneseq
    %v443 = vshrl.u32 %v442, 7
    %v444 = vsub.s32 %v441, %v443
    %v445 = vrot.slane %v417, %v444
    %v446 = vcombine.high %v424, %v424
    %v447 = vcombine.high %v431, %v431
    %v448 = vcombine.high %v438, %v438
    %v449 = vcombine.high %v445, %v445
    %466 = vst [vmem:[%s5] sm:$0x1] %v375
    %467 = vst [vmem:[%s5 + $0x10] sm:$0x1] %v389
    %468 = vst [vmem:[%s5 + $0x20] sm:$0x1] %v397
    %469 = vst [vmem:[%s5 + $0x30] sm:$0x1] %v399
    %470 = vst [vmem:[%s5 + $0x40] sm:$0x1] %v382
    %471 = vst [vmem:[%s5 + $0x50] sm:$0x1] %v396
    %472 = vst [vmem:[%s5 + $0x60] sm:$0x1] %v398
    %473 = vst [vmem:[%s5 + $0x70] sm:$0x1] %v400
    %474 = vst [vmem:[%s5 + $0x80] sm:$0x1] %v424
    %475 = vst [vmem:[%s5 + $0x90] sm:$0x1] %v438
    %476 = vst [vmem:[%s5 + $0xa0] sm:$0x1] %v446
    %477 = vst [vmem:[%s5 + $0xb0] sm:$0x1] %v448
    %478 = vst [vmem:[%s5 + $0xc0] sm:$0x1] %v431
    %479 = vst [vmem:[%s5 + $0xd0] sm:$0x1] %v445
    %480 = vst [vmem:[%s5 + $0xe0] sm:$0x1] %v447
    %481 = vst [vmem:[%s5 + $0xf0] sm:$0x1] %v449
    %v482 = vsel %vm346, %v333, %v72
    %v483 = vsel %vm347, %v334, %v73
    %s484 = scalar_lea.vmem %s1, 24
    %v485 = vld [vmem:[%s484] sm:$0xff]
    %v486 = vld [vmem:[%s484 + $0x8] sm:$0xf]
    %v487 = vld [vmem:[%s484 + $0xc] sm:$0xff]
    %v488 = vld [vmem:[%s484 + $0x14] sm:$0xf]
    %v489 = vpack.c.bf16 %v483, %v482
    %490 = vmatprep.subr.bf16.mxu0 %v142
    %491 = vmatpush1.bf16.msra.mxu0 %v141
    %492 = vmatprep.subr.bf16.mxu0 %v140
    %493 = vmatpush1.bf16.msra.mxu0 %v139
    %494 = vmatprep.subr.bf16.mxu0 %v138
    %495 = vmatpush1.bf16.msra.mxu0 %v137
    %496 = vmatprep.subr.bf16.mxu0 %v136
    %497 = vmatpush1.bf16.msra.mxu0 %v135
    %498 = vmatprep.subr.bf16.mxu0 %v134
    %499 = vmatpush1.bf16.msra.mxu0 %v133
    %500 = vmatprep.subr.bf16.mxu0 %v132
    %501 = vmatpush1.bf16.msra.mxu0 %v131
    %502 = vmatprep.subr.bf16.mxu0 %v130
    %503 = vmatpush1.bf16.msra.mxu0 %v129
    %504 = vmatprep.subr.bf16.mxu0 %v128
    %505 = vmatpush1.bf16.msra.mxu0 %v127
    %506 = vmatprep.subr.bf16.mxu0 0
    %507 = vmatpush2.bf16.msra.mxu0 0
    %508 = vmatprep.subr.bf16.mxu0 0
    %509 = vmatpush2.bf16.msra.mxu0 0
    %510 = vmatprep.subr.bf16.mxu0 0
    %511 = vmatpush2.bf16.msra.mxu0 0
    %512 = vmatprep.subr.bf16.mxu0 0
    %513 = vmatpush2.bf16.msra.mxu0 0
    %514 = vmatprep.subr.bf16.mxu0 0
    %515 = vmatpush2.bf16.msra.mxu0 0
    %516 = vmatprep.subr.bf16.mxu0 0
    %517 = vmatpush2.bf16.msra.mxu0 0
    %518 = vmatprep.subr.bf16.mxu0 0
    %519 = vmatpush2.bf16.msra.mxu0 0
    %520 = vmatprep.subr.bf16.mxu0 0
    %521 = vmatpush2.bf16.msra.mxu0 0
    %522 = vmatprep.mubr.bf16.mxu0 0
    %523 = vmatmul.mubr.bf16.gmra.mxu0 %v489
    %v524 = vpop.f32.mrf.mxu0
    %v525 = vadd.f32 0.0, %v524
    %v526 = vpop.f32.mrf.mxu0
    %v527 = vadd.f32 0.0, %v526
    %v528 = vpop.f32.mrf.mxu0
    %v529 = vadd.f32 0.0, %v528
    %v530 = vpop.f32.mrf.mxu0
    %v531 = vadd.f32 0.0, %v530
    %532 = vdwg.mxu0
    %v533 = vunpack.c.l.bf16 %v485
    %v534 = vunpack.c.l.bf16 %v487
    %v535 = vadd.f32 %v533, %v525
    %v536 = vadd.f32 %v534, %v529
    %v537 = vmul.f32 %v535, 0.5
    %v538 = vmul.f32 %v536, 0.5
    %v539 = vtanh.pop %v537
    %v540 = vtanh.pop %v538
    %v541 = vmul.f32 %v539, 0.5
    %v542 = vmul.f32 %v540, 0.5
    %v543 = vadd.f32 %v541, 0.5
    %v544 = vadd.f32 %v542, 0.5
    %v547 = vrot.slane %v485, 4
    %v548 = vrot.slane %v487, 4
    %v551 = vunpack.c.l.bf16 %v547
    %v552 = vunpack.c.l.bf16 %v548
    %v553 = vadd.f32 %v551, %v527
    %v554 = vadd.f32 %v552, %v531
    %v555 = vmul.f32 %v553, 0.5
    %v556 = vmul.f32 %v554, 0.5
    %v557 = vtanh.pop %v555
    %v558 = vtanh.pop %v556
    %v559 = vmul.f32 %v557, 0.5
    %v560 = vmul.f32 %v558, 0.5
    %v561 = vadd.f32 %v559, 0.5
    %v562 = vadd.f32 %v560, 0.5
    %v563 = vunpack.c.l.bf16 %v486
    %v564 = vunpack.c.l.bf16 %v488
    %565 = vmatprep.subr.bf16.mxu0 0
    %566 = vmatpush1.bf16.msra.mxu0 %v273
    %567 = vmatprep.subr.bf16.mxu0 0
    %568 = vmatpush1.bf16.msra.mxu0 %v272
    %569 = vmatprep.subr.bf16.mxu0 0
    %570 = vmatpush1.bf16.msra.mxu0 %v271
    %571 = vmatprep.subr.bf16.mxu0 0
    %572 = vmatpush1.bf16.msra.mxu0 %v270
    %573 = vmatprep.subr.bf16.mxu0 0
    %574 = vmatpush1.bf16.msra.mxu0 %v269
    %575 = vmatprep.subr.bf16.mxu0 0
    %576 = vmatpush1.bf16.msra.mxu0 %v268
    %577 = vmatprep.subr.bf16.mxu0 0
    %578 = vmatpush1.bf16.msra.mxu0 %v267
    %579 = vmatprep.subr.bf16.mxu0 0
    %580 = vmatpush1.bf16.msra.mxu0 %v266
    %581 = vmatprep.subr.bf16.mxu0 0
    %582 = vmatpush2.bf16.msra.mxu0 0
    %583 = vmatprep.subr.bf16.mxu0 0
    %584 = vmatpush2.bf16.msra.mxu0 0
    %585 = vmatprep.subr.bf16.mxu0 0
    %586 = vmatpush2.bf16.msra.mxu0 0
    %587 = vmatprep.subr.bf16.mxu0 0
    %588 = vmatpush2.bf16.msra.mxu0 0
    %589 = vmatprep.subr.bf16.mxu0 0
    %590 = vmatpush2.bf16.msra.mxu0 0
    %591 = vmatprep.subr.bf16.mxu0 0
    %592 = vmatpush2.bf16.msra.mxu0 0
    %593 = vmatprep.subr.bf16.mxu0 0
    %594 = vmatpush2.bf16.msra.mxu0 0
    %595 = vmatprep.subr.bf16.mxu0 0
    %596 = vmatpush2.bf16.msra.mxu0 0
    %597 = vmatprep.mubr.bf16.mxu0 0
    %598 = vmatmul.mubr.bf16.gmra.mxu0 %v489
    %v599 = vpop.f32.mrf.mxu0
    %v600 = vadd.f32 %v70, %v599
    %v601 = vpop.f32.mrf.mxu0
    %v602 = vpop.f32.mrf.mxu0
    %v603 = vadd.f32 %v70, %v602
    %v604 = vpop.f32.mrf.mxu0
    %605 = vdwg.mxu0
    %v606 = vmul.f32 %v543, %v600
    %v607 = vmul.f32 %v544, %v603
    %v608 = vadd.f32 %v563, %v606
    %v609 = vadd.f32 %v564, %v607
    %v610 = vtanh.pop %v608
    %v611 = vtanh.pop %v609
    %v612 = vsub.f32 %v482, %v610
    %v613 = vsub.f32 %v483, %v611
    %v614 = vmul.f32 %v561, %v612
    %v615 = vmul.f32 %v562, %v613
    %v616 = vadd.f32 %v610, %v614
    %v617 = vadd.f32 %v611, %v615
    %s618 = sadd.s32 %s64, 1
    %v619 = vstv %s618
    %vm620 = vcmp.lt.s32.totalorder %v619, %v62
    %vm621 = vcmp.lt.s32.totalorder %v619, %v63
    %v622 = vsel %vm620, 1, 0
    %v623 = vsel %vm621, 1, 0
    %624 = vset.pattern.permute.xlu0 0
    %625 = vperm.xlu0 %624, %v622
    %v626 = vpop.permute.xlu0 %625
    %627 = vset.pattern.permute.xlu0 0
    %628 = vperm.xlu0 %627, %v623
    %v629 = vpop.permute.xlu0 %628
    %vm630 = vcmp.eq.s32.totalorder %v626, 1
    %vm631 = vcmp.eq.s32.totalorder %v629, 1
    %v632 = vsel %vm630, %v616, 0.0
    %v633 = vsel %vm631, %v617, 0.0
    %v636 = vcombine.high %v632, %v632
    %v638 = vunpack.c.l.s4 1966171168
    %v639 = vunpack.c.0.s8 %v638
    %v640 = vlaneseq
    %v641 = vshrl.u32 %v640, 7
    %v642 = vsub.s32 %v639, %v641
    %v643 = vrot.slane %v632, %v642
    %v645 = vunpack.c.l.s4 1966171168
    %v646 = vunpack.c.0.s8 %v645
    %v647 = vlaneseq
    %v648 = vshrl.u32 %v647, 7
    %v649 = vsub.s32 %v646, %v648
    %v650 = vrot.slane %v636, %v649
    %v651 = vcombine.high %v643, %v643
    %v652 = vcombine.high %v650, %v650
    %v654 = vunpack.c.l.s4 1966171168
    %v655 = vunpack.c.0.s8 %v654
    %v656 = vlaneseq
    %v657 = vshrl.u32 %v656, 7
    %v658 = vsub.s32 %v655, %v657
    %v659 = vrot.slane %v643, %v658
    %v661 = vunpack.c.l.s4 1966171168
    %v662 = vunpack.c.0.s8 %v661
    %v663 = vlaneseq
    %v664 = vshrl.u32 %v663, 7
    %v665 = vsub.s32 %v662, %v664
    %v666 = vrot.slane %v650, %v665
    %v668 = vunpack.c.l.s4 1966171168
    %v669 = vunpack.c.0.s8 %v668
    %v670 = vlaneseq
    %v671 = vshrl.u32 %v670, 7
    %v672 = vsub.s32 %v669, %v671
    %v673 = vrot.slane %v651, %v672
    %v675 = vunpack.c.l.s4 1966171168
    %v676 = vunpack.c.0.s8 %v675
    %v677 = vlaneseq
    %v678 = vshrl.u32 %v677, 7
    %v679 = vsub.s32 %v676, %v678
    %v680 = vrot.slane %v652, %v679
    %v681 = vcombine.high %v659, %v659
    %v682 = vcombine.high %v666, %v666
    %v683 = vcombine.high %v673, %v673
    %v684 = vcombine.high %v680, %v680
    %v685 = vcombine.high %v633, %v633
    %v687 = vunpack.c.l.s4 1966171168
    %v688 = vunpack.c.0.s8 %v687
    %v689 = vlaneseq
    %v690 = vshrl.u32 %v689, 7
    %v691 = vsub.s32 %v688, %v690
    %v692 = vrot.slane %v633, %v691
    %v694 = vunpack.c.l.s4 1966171168
    %v695 = vunpack.c.0.s8 %v694
    %v696 = vlaneseq
    %v697 = vshrl.u32 %v696, 7
    %v698 = vsub.s32 %v695, %v697
    %v699 = vrot.slane %v685, %v698
    %v700 = vcombine.high %v692, %v692
    %v701 = vcombine.high %v699, %v699
    %v703 = vunpack.c.l.s4 1966171168
    %v704 = vunpack.c.0.s8 %v703
    %v705 = vlaneseq
    %v706 = vshrl.u32 %v705, 7
    %v707 = vsub.s32 %v704, %v706
    %v708 = vrot.slane %v692, %v707
    %v710 = vunpack.c.l.s4 1966171168
    %v711 = vunpack.c.0.s8 %v710
    %v712 = vlaneseq
    %v713 = vshrl.u32 %v712, 7
    %v714 = vsub.s32 %v711, %v713
    %v715 = vrot.slane %v699, %v714
    %v717 = vunpack.c.l.s4 1966171168
    %v718 = vunpack.c.0.s8 %v717
    %v719 = vlaneseq
    %v720 = vshrl.u32 %v719, 7
    %v721 = vsub.s32 %v718, %v720
    %v722 = vrot.slane %v700, %v721
    %v724 = vunpack.c.l.s4 1966171168
    %v725 = vunpack.c.0.s8 %v724
    %v726 = vlaneseq
    %v727 = vshrl.u32 %v726, 7
    %v728 = vsub.s32 %v725, %v727
    %v729 = vrot.slane %v701, %v728
    %v730 = vcombine.high %v708, %v708
    %v731 = vcombine.high %v715, %v715
    %v732 = vcombine.high %v722, %v722
    %v733 = vcombine.high %v729, %v729
    %750 = vst [vmem:[%s5 + $0x1] sm:$0x1] %v659
    %751 = vst [vmem:[%s5 + $0x11] sm:$0x1] %v673
    %752 = vst [vmem:[%s5 + $0x21] sm:$0x1] %v681
    %753 = vst [vmem:[%s5 + $0x31] sm:$0x1] %v683
    %754 = vst [vmem:[%s5 + $0x41] sm:$0x1] %v666
    %755 = vst [vmem:[%s5 + $0x51] sm:$0x1] %v680
    %756 = vst [vmem:[%s5 + $0x61] sm:$0x1] %v682
    %757 = vst [vmem:[%s5 + $0x71] sm:$0x1] %v684
    %758 = vst [vmem:[%s5 + $0x81] sm:$0x1] %v708
    %759 = vst [vmem:[%s5 + $0x91] sm:$0x1] %v722
    %760 = vst [vmem:[%s5 + $0xa1] sm:$0x1] %v730
    %761 = vst [vmem:[%s5 + $0xb1] sm:$0x1] %v732
    %762 = vst [vmem:[%s5 + $0xc1] sm:$0x1] %v715
    %763 = vst [vmem:[%s5 + $0xd1] sm:$0x1] %v729
    %764 = vst [vmem:[%s5 + $0xe1] sm:$0x1] %v731
    %765 = vst [vmem:[%s5 + $0xf1] sm:$0x1] %v733
    %v766 = vsel %vm630, %v616, %v482
    %v767 = vsel %vm631, %v617, %v483
    %s768 = scalar_lea.vmem %s1, 48
    %v769 = vld [vmem:[%s768] sm:$0xff]
    %v770 = vld [vmem:[%s768 + $0x8] sm:$0xf]
    %v771 = vld [vmem:[%s768 + $0xc] sm:$0xff]
    %v772 = vld [vmem:[%s768 + $0x14] sm:$0xf]
    %v773 = vpack.c.bf16 %v767, %v766
    %774 = vmatprep.subr.bf16.mxu0 %v142
    %775 = vmatpush1.bf16.msra.mxu0 %v141
    %776 = vmatprep.subr.bf16.mxu0 %v140
    %777 = vmatpush1.bf16.msra.mxu0 %v139
    %778 = vmatprep.subr.bf16.mxu0 %v138
    %779 = vmatpush1.bf16.msra.mxu0 %v137
    %780 = vmatprep.subr.bf16.mxu0 %v136
    %781 = vmatpush1.bf16.msra.mxu0 %v135
    %782 = vmatprep.subr.bf16.mxu0 %v134
    %783 = vmatpush1.bf16.msra.mxu0 %v133
    %784 = vmatprep.subr.bf16.mxu0 %v132
    %785 = vmatpush1.bf16.msra.mxu0 %v131
    %786 = vmatprep.subr.bf16.mxu0 %v130
    %787 = vmatpush1.bf16.msra.mxu0 %v129
    %788 = vmatprep.subr.bf16.mxu0 %v128
    %789 = vmatpush1.bf16.msra.mxu0 %v127
    %790 = vmatprep.subr.bf16.mxu0 0
    %791 = vmatpush2.bf16.msra.mxu0 0
    %792 = vmatprep.subr.bf16.mxu0 0
    %793 = vmatpush2.bf16.msra.mxu0 0
    %794 = vmatprep.subr.bf16.mxu0 0
    %795 = vmatpush2.bf16.msra.mxu0 0
    %796 = vmatprep.subr.bf16.mxu0 0
    %797 = vmatpush2.bf16.msra.mxu0 0
    %798 = vmatprep.subr.bf16.mxu0 0
    %799 = vmatpush2.bf16.msra.mxu0 0
    %800 = vmatprep.subr.bf16.mxu0 0
    %801 = vmatpush2.bf16.msra.mxu0 0
    %802 = vmatprep.subr.bf16.mxu0 0
    %803 = vmatpush2.bf16.msra.mxu0 0
    %804 = vmatprep.subr.bf16.mxu0 0
    %805 = vmatpush2.bf16.msra.mxu0 0
    %806 = vmatprep.mubr.bf16.mxu0 0
    %807 = vmatmul.mubr.bf16.gmra.mxu0 %v773
    %v808 = vpop.f32.mrf.mxu0
    %v809 = vadd.f32 0.0, %v808
    %v810 = vpop.f32.mrf.mxu0
    %v811 = vadd.f32 0.0, %v810
    %v812 = vpop.f32.mrf.mxu0
    %v813 = vadd.f32 0.0, %v812
    %v814 = vpop.f32.mrf.mxu0
    %v815 = vadd.f32 0.0, %v814
    %816 = vdwg.mxu0
    %v817 = vunpack.c.l.bf16 %v769
    %v818 = vunpack.c.l.bf16 %v771
    %v819 = vadd.f32 %v817, %v809
    %v820 = vadd.f32 %v818, %v813
    %v821 = vmul.f32 %v819, 0.5
    %v822 = vmul.f32 %v820, 0.5
    %v823 = vtanh.pop %v821
    %v824 = vtanh.pop %v822
    %v825 = vmul.f32 %v823, 0.5
    %v826 = vmul.f32 %v824, 0.5
    %v827 = vadd.f32 %v825, 0.5
    %v828 = vadd.f32 %v826, 0.5
    %v831 = vrot.slane %v769, 4
    %v832 = vrot.slane %v771, 4
    %v835 = vunpack.c.l.bf16 %v831
    %v836 = vunpack.c.l.bf16 %v832
    %v837 = vadd.f32 %v835, %v811
    %v838 = vadd.f32 %v836, %v815
    %v839 = vmul.f32 %v837, 0.5
    %v840 = vmul.f32 %v838, 0.5
    %v841 = vtanh.pop %v839
    %v842 = vtanh.pop %v840
    %v843 = vmul.f32 %v841, 0.5
    %v844 = vmul.f32 %v842, 0.5
    %v845 = vadd.f32 %v843, 0.5
    %v846 = vadd.f32 %v844, 0.5
    %v847 = vunpack.c.l.bf16 %v770
    %v848 = vunpack.c.l.bf16 %v772
    %849 = vmatprep.subr.bf16.mxu0 0
    %850 = vmatpush1.bf16.msra.mxu0 %v273
    %851 = vmatprep.subr.bf16.mxu0 0
    %852 = vmatpush1.bf16.msra.mxu0 %v272
    %853 = vmatprep.subr.bf16.mxu0 0
    %854 = vmatpush1.bf16.msra.mxu0 %v271
    %855 = vmatprep.subr.bf16.mxu0 0
    %856 = vmatpush1.bf16.msra.mxu0 %v270
    %857 = vmatprep.subr.bf16.mxu0 0
    %858 = vmatpush1.bf16.msra.mxu0 %v269
    %859 = vmatprep.subr.bf16.mxu0 0
    %860 = vmatpush1.bf16.msra.mxu0 %v268
    %861 = vmatprep.subr.bf16.mxu0 0
    %862 = vmatpush1.bf16.msra.mxu0 %v267
    %863 = vmatprep.subr.bf16.mxu0 0
    %864 = vmatpush1.bf16.msra.mxu0 %v266
    %865 = vmatprep.subr.bf16.mxu0 0
    %866 = vmatpush2.bf16.msra.mxu0 0
    %867 = vmatprep.subr.bf16.mxu0 0
    %868 = vmatpush2.bf16.msra.mxu0 0
    %869 = vmatprep.subr.bf16.mxu0 0
    %870 = vmatpush2.bf16.msra.mxu0 0
    %871 = vmatprep.subr.bf16.mxu0 0
    %872 = vmatpush2.bf16.msra.mxu0 0
    %873 = vmatprep.subr.bf16.mxu0 0
    %874 = vmatpush2.bf16.msra.mxu0 0
    %875 = vmatprep.subr.bf16.mxu0 0
    %876 = vmatpush2.bf16.msra.mxu0 0
    %877 = vmatprep.subr.bf16.mxu0 0
    %878 = vmatpush2.bf16.msra.mxu0 0
    %879 = vmatprep.subr.bf16.mxu0 0
    %880 = vmatpush2.bf16.msra.mxu0 0
    %881 = vmatprep.mubr.bf16.mxu0 0
    %882 = vmatmul.mubr.bf16.gmra.mxu0 %v773
    %v883 = vpop.f32.mrf.mxu0
    %v884 = vadd.f32 %v70, %v883
    %v885 = vpop.f32.mrf.mxu0
    %v886 = vpop.f32.mrf.mxu0
    %v887 = vadd.f32 %v70, %v886
    %v888 = vpop.f32.mrf.mxu0
    %889 = vdwg.mxu0
    %v890 = vmul.f32 %v827, %v884
    %v891 = vmul.f32 %v828, %v887
    %v892 = vadd.f32 %v847, %v890
    %v893 = vadd.f32 %v848, %v891
    %v894 = vtanh.pop %v892
    %v895 = vtanh.pop %v893
    %v896 = vsub.f32 %v766, %v894
    %v897 = vsub.f32 %v767, %v895
    %v898 = vmul.f32 %v845, %v896
    %v899 = vmul.f32 %v846, %v897
    %v900 = vadd.f32 %v894, %v898
    %v901 = vadd.f32 %v895, %v899
    %s902 = sadd.s32 %s64, 2
    %v903 = vstv %s902
    %vm904 = vcmp.lt.s32.totalorder %v903, %v62
    %vm905 = vcmp.lt.s32.totalorder %v903, %v63
    %v906 = vsel %vm904, 1, 0
    %v907 = vsel %vm905, 1, 0
    %908 = vset.pattern.permute.xlu0 0
    %909 = vperm.xlu0 %908, %v906
    %v910 = vpop.permute.xlu0 %909
    %911 = vset.pattern.permute.xlu0 0
    %912 = vperm.xlu0 %911, %v907
    %v913 = vpop.permute.xlu0 %912
    %vm914 = vcmp.eq.s32.totalorder %v910, 1
    %vm915 = vcmp.eq.s32.totalorder %v913, 1
    %v916 = vsel %vm914, %v900, 0.0
    %v917 = vsel %vm915, %v901, 0.0
    %v920 = vcombine.high %v916, %v916
    %v922 = vunpack.c.l.s4 1966171168
    %v923 = vunpack.c.0.s8 %v922
    %v924 = vlaneseq
    %v925 = vshrl.u32 %v924, 7
    %v926 = vsub.s32 %v923, %v925
    %v927 = vrot.slane %v916, %v926
    %v929 = vunpack.c.l.s4 1966171168
    %v930 = vunpack.c.0.s8 %v929
    %v931 = vlaneseq
    %v932 = vshrl.u32 %v931, 7
    %v933 = vsub.s32 %v930, %v932
    %v934 = vrot.slane %v920, %v933
    %v935 = vcombine.high %v927, %v927
    %v936 = vcombine.high %v934, %v934
    %v938 = vunpack.c.l.s4 1966171168
    %v939 = vunpack.c.0.s8 %v938
    %v940 = vlaneseq
    %v941 = vshrl.u32 %v940, 7
    %v942 = vsub.s32 %v939, %v941
    %v943 = vrot.slane %v927, %v942
    %v945 = vunpack.c.l.s4 1966171168
    %v946 = vunpack.c.0.s8 %v945
    %v947 = vlaneseq
    %v948 = vshrl.u32 %v947, 7
    %v949 = vsub.s32 %v946, %v948
    %v950 = vrot.slane %v934, %v949
    %v952 = vunpack.c.l.s4 1966171168
    %v953 = vunpack.c.0.s8 %v952
    %v954 = vlaneseq
    %v955 = vshrl.u32 %v954, 7
    %v956 = vsub.s32 %v953, %v955
    %v957 = vrot.slane %v935, %v956
    %v959 = vunpack.c.l.s4 1966171168
    %v960 = vunpack.c.0.s8 %v959
    %v961 = vlaneseq
    %v962 = vshrl.u32 %v961, 7
    %v963 = vsub.s32 %v960, %v962
    %v964 = vrot.slane %v936, %v963
    %v965 = vcombine.high %v943, %v943
    %v966 = vcombine.high %v950, %v950
    %v967 = vcombine.high %v957, %v957
    %v968 = vcombine.high %v964, %v964
    %v969 = vcombine.high %v917, %v917
    %v971 = vunpack.c.l.s4 1966171168
    %v972 = vunpack.c.0.s8 %v971
    %v973 = vlaneseq
    %v974 = vshrl.u32 %v973, 7
    %v975 = vsub.s32 %v972, %v974
    %v976 = vrot.slane %v917, %v975
    %v978 = vunpack.c.l.s4 1966171168
    %v979 = vunpack.c.0.s8 %v978
    %v980 = vlaneseq
    %v981 = vshrl.u32 %v980, 7
    %v982 = vsub.s32 %v979, %v981
    %v983 = vrot.slane %v969, %v982
    %v984 = vcombine.high %v976, %v976
    %v985 = vcombine.high %v983, %v983
    %v987 = vunpack.c.l.s4 1966171168
    %v988 = vunpack.c.0.s8 %v987
    %v989 = vlaneseq
    %v990 = vshrl.u32 %v989, 7
    %v991 = vsub.s32 %v988, %v990
    %v992 = vrot.slane %v976, %v991
    %v994 = vunpack.c.l.s4 1966171168
    %v995 = vunpack.c.0.s8 %v994
    %v996 = vlaneseq
    %v997 = vshrl.u32 %v996, 7
    %v998 = vsub.s32 %v995, %v997
    %v999 = vrot.slane %v983, %v998
    %v1001 = vunpack.c.l.s4 1966171168
    %v1002 = vunpack.c.0.s8 %v1001
    %v1003 = vlaneseq
    %v1004 = vshrl.u32 %v1003, 7
    %v1005 = vsub.s32 %v1002, %v1004
    %v1006 = vrot.slane %v984, %v1005
    %v1008 = vunpack.c.l.s4 1966171168
    %v1009 = vunpack.c.0.s8 %v1008
    %v1010 = vlaneseq
    %v1011 = vshrl.u32 %v1010, 7
    %v1012 = vsub.s32 %v1009, %v1011
    %v1013 = vrot.slane %v985, %v1012
    %v1014 = vcombine.high %v992, %v992
    %v1015 = vcombine.high %v999, %v999
    %v1016 = vcombine.high %v1006, %v1006
    %v1017 = vcombine.high %v1013, %v1013
    %1034 = vst [vmem:[%s5 + $0x2] sm:$0x1] %v943
    %1035 = vst [vmem:[%s5 + $0x12] sm:$0x1] %v957
    %1036 = vst [vmem:[%s5 + $0x22] sm:$0x1] %v965
    %1037 = vst [vmem:[%s5 + $0x32] sm:$0x1] %v967
    %1038 = vst [vmem:[%s5 + $0x42] sm:$0x1] %v950
    %1039 = vst [vmem:[%s5 + $0x52] sm:$0x1] %v964
    %1040 = vst [vmem:[%s5 + $0x62] sm:$0x1] %v966
    %1041 = vst [vmem:[%s5 + $0x72] sm:$0x1] %v968
    %1042 = vst [vmem:[%s5 + $0x82] sm:$0x1] %v992
    %1043 = vst [vmem:[%s5 + $0x92] sm:$0x1] %v1006
    %1044 = vst [vmem:[%s5 + $0xa2] sm:$0x1] %v1014
    %1045 = vst [vmem:[%s5 + $0xb2] sm:$0x1] %v1016
    %1046 = vst [vmem:[%s5 + $0xc2] sm:$0x1] %v999
    %1047 = vst [vmem:[%s5 + $0xd2] sm:$0x1] %v1013
    %1048 = vst [vmem:[%s5 + $0xe2] sm:$0x1] %v1015
    %1049 = vst [vmem:[%s5 + $0xf2] sm:$0x1] %v1017
    %v1050 = vsel %vm914, %v900, %v766
    %v1051 = vsel %vm915, %v901, %v767
    %s1052 = scalar_lea.vmem %s1, 72
    %v1053 = vld [vmem:[%s1052] sm:$0xff]
    %v1054 = vld [vmem:[%s1052 + $0x8] sm:$0xf]
    %v1055 = vld [vmem:[%s1052 + $0xc] sm:$0xff]
    %v1056 = vld [vmem:[%s1052 + $0x14] sm:$0xf]
    %v1057 = vpack.c.bf16 %v1051, %v1050
    %1058 = vmatprep.subr.bf16.mxu0 %v142
    %1059 = vmatpush1.bf16.msra.mxu0 %v141
    %1060 = vmatprep.subr.bf16.mxu0 %v140
    %1061 = vmatpush1.bf16.msra.mxu0 %v139
    %1062 = vmatprep.subr.bf16.mxu0 %v138
    %1063 = vmatpush1.bf16.msra.mxu0 %v137
    %1064 = vmatprep.subr.bf16.mxu0 %v136
    %1065 = vmatpush1.bf16.msra.mxu0 %v135
    %1066 = vmatprep.subr.bf16.mxu0 %v134
    %1067 = vmatpush1.bf16.msra.mxu0 %v133
    %1068 = vmatprep.subr.bf16.mxu0 %v132
    %1069 = vmatpush1.bf16.msra.mxu0 %v131
    %1070 = vmatprep.subr.bf16.mxu0 %v130
    %1071 = vmatpush1.bf16.msra.mxu0 %v129
    %1072 = vmatprep.subr.bf16.mxu0 %v128
    %1073 = vmatpush1.bf16.msra.mxu0 %v127
    %1074 = vmatprep.subr.bf16.mxu0 0
    %1075 = vmatpush2.bf16.msra.mxu0 0
    %1076 = vmatprep.subr.bf16.mxu0 0
    %1077 = vmatpush2.bf16.msra.mxu0 0
    %1078 = vmatprep.subr.bf16.mxu0 0
    %1079 = vmatpush2.bf16.msra.mxu0 0
    %1080 = vmatprep.subr.bf16.mxu0 0
    %1081 = vmatpush2.bf16.msra.mxu0 0
    %1082 = vmatprep.subr.bf16.mxu0 0
    %1083 = vmatpush2.bf16.msra.mxu0 0
    %1084 = vmatprep.subr.bf16.mxu0 0
    %1085 = vmatpush2.bf16.msra.mxu0 0
    %1086 = vmatprep.subr.bf16.mxu0 0
    %1087 = vmatpush2.bf16.msra.mxu0 0
    %1088 = vmatprep.subr.bf16.mxu0 0
    %1089 = vmatpush2.bf16.msra.mxu0 0
    %1090 = vmatprep.mubr.bf16.mxu0 0
    %1091 = vmatmul.mubr.bf16.gmra.mxu0 %v1057
    %v1092 = vpop.f32.mrf.mxu0
    %v1093 = vadd.f32 0.0, %v1092
    %v1094 = vpop.f32.mrf.mxu0
    %v1095 = vadd.f32 0.0, %v1094
    %v1096 = vpop.f32.mrf.mxu0
    %v1097 = vadd.f32 0.0, %v1096
    %v1098 = vpop.f32.mrf.mxu0
    %v1099 = vadd.f32 0.0, %v1098
    %1100 = vdwg.mxu0
    %v1101 = vunpack.c.l.bf16 %v1053
    %v1102 = vunpack.c.l.bf16 %v1055
    %v1103 = vadd.f32 %v1101, %v1093
    %v1104 = vadd.f32 %v1102, %v1097
    %v1105 = vmul.f32 %v1103, 0.5
    %v1106 = vmul.f32 %v1104, 0.5
    %v1107 = vtanh.pop %v1105
    %v1108 = vtanh.pop %v1106
    %v1109 = vmul.f32 %v1107, 0.5
    %v1110 = vmul.f32 %v1108, 0.5
    %v1111 = vadd.f32 %v1109, 0.5
    %v1112 = vadd.f32 %v1110, 0.5
    %v1115 = vrot.slane %v1053, 4
    %v1116 = vrot.slane %v1055, 4
    %v1119 = vunpack.c.l.bf16 %v1115
    %v1120 = vunpack.c.l.bf16 %v1116
    %v1121 = vadd.f32 %v1119, %v1095
    %v1122 = vadd.f32 %v1120, %v1099
    %v1123 = vmul.f32 %v1121, 0.5
    %v1124 = vmul.f32 %v1122, 0.5
    %v1125 = vtanh.pop %v1123
    %v1126 = vtanh.pop %v1124
    %v1127 = vmul.f32 %v1125, 0.5
    %v1128 = vmul.f32 %v1126, 0.5
    %v1129 = vadd.f32 %v1127, 0.5
    %v1130 = vadd.f32 %v1128, 0.5
    %v1131 = vunpack.c.l.bf16 %v1054
    %v1132 = vunpack.c.l.bf16 %v1056
    %1133 = vmatprep.subr.bf16.mxu0 0
    %1134 = vmatpush1.bf16.msra.mxu0 %v273
    %1135 = vmatprep.subr.bf16.mxu0 0
    %1136 = vmatpush1.bf16.msra.mxu0 %v272
    %1137 = vmatprep.subr.bf16.mxu0 0
    %1138 = vmatpush1.bf16.msra.mxu0 %v271
    %1139 = vmatprep.subr.bf16.mxu0 0
    %1140 = vmatpush1.bf16.msra.mxu0 %v270
    %1141 = vmatprep.subr.bf16.mxu0 0
    %1142 = vmatpush1.bf16.msra.mxu0 %v269
    %1143 = vmatprep.subr.bf16.mxu0 0
    %1144 = vmatpush1.bf16.msra.mxu0 %v268
    %1145 = vmatprep.subr.bf16.mxu0 0
    %1146 = vmatpush1.bf16.msra.mxu0 %v267
    %1147 = vmatprep.subr.bf16.mxu0 0
    %1148 = vmatpush1.bf16.msra.mxu0 %v266
    %1149 = vmatprep.subr.bf16.mxu0 0
    %1150 = vmatpush2.bf16.msra.mxu0 0
    %1151 = vmatprep.subr.bf16.mxu0 0
    %1152 = vmatpush2.bf16.msra.mxu0 0
    %1153 = vmatprep.subr.bf16.mxu0 0
    %1154 = vmatpush2.bf16.msra.mxu0 0
    %1155 = vmatprep.subr.bf16.mxu0 0
    %1156 = vmatpush2.bf16.msra.mxu0 0
    %1157 = vmatprep.subr.bf16.mxu0 0
    %1158 = vmatpush2.bf16.msra.mxu0 0
    %1159 = vmatprep.subr.bf16.mxu0 0
    %1160 = vmatpush2.bf16.msra.mxu0 0
    %1161 = vmatprep.subr.bf16.mxu0 0
    %1162 = vmatpush2.bf16.msra.mxu0 0
    %1163 = vmatprep.subr.bf16.mxu0 0
    %1164 = vmatpush2.bf16.msra.mxu0 0
    %1165 = vmatprep.mubr.bf16.mxu0 0
    %1166 = vmatmul.mubr.bf16.gmra.mxu0 %v1057
    %v1167 = vpop.f32.mrf.mxu0
    %v1168 = vadd.f32 %v70, %v1167
    %v1169 = vpop.f32.mrf.mxu0
    %v1170 = vpop.f32.mrf.mxu0
    %v1171 = vadd.f32 %v70, %v1170
    %v1172 = vpop.f32.mrf.mxu0
    %1173 = vdwg.mxu0
    %v1174 = vmul.f32 %v1111, %v1168
    %v1175 = vmul.f32 %v1112, %v1171
    %v1176 = vadd.f32 %v1131, %v1174
    %v1177 = vadd.f32 %v1132, %v1175
    %v1178 = vtanh.pop %v1176
    %v1179 = vtanh.pop %v1177
    %v1180 = vsub.f32 %v1050, %v1178
    %v1181 = vsub.f32 %v1051, %v1179
    %v1182 = vmul.f32 %v1129, %v1180
    %v1183 = vmul.f32 %v1130, %v1181
    %v1184 = vadd.f32 %v1178, %v1182
    %v1185 = vadd.f32 %v1179, %v1183
    %s1186 = sadd.s32 %s64, 3
    %v1187 = vstv %s1186
    %vm1188 = vcmp.lt.s32.totalorder %v1187, %v62
    %vm1189 = vcmp.lt.s32.totalorder %v1187, %v63
    %v1190 = vsel %vm1188, 1, 0
    %v1191 = vsel %vm1189, 1, 0
    %1192 = vset.pattern.permute.xlu0 0
    %1193 = vperm.xlu0 %1192, %v1190
    %v1194 = vpop.permute.xlu0 %1193
    %1195 = vset.pattern.permute.xlu0 0
    %1196 = vperm.xlu0 %1195, %v1191
    %v1197 = vpop.permute.xlu0 %1196
    %vm1198 = vcmp.eq.s32.totalorder %v1194, 1
    %vm1199 = vcmp.eq.s32.totalorder %v1197, 1
    %v1200 = vsel %vm1198, %v1184, 0.0
    %v1201 = vsel %vm1199, %v1185, 0.0
    %v1204 = vcombine.high %v1200, %v1200
    %v1206 = vunpack.c.l.s4 1966171168
    %v1207 = vunpack.c.0.s8 %v1206
    %v1208 = vlaneseq
    %v1209 = vshrl.u32 %v1208, 7
    %v1210 = vsub.s32 %v1207, %v1209
    %v1211 = vrot.slane %v1200, %v1210
    %v1213 = vunpack.c.l.s4 1966171168
    %v1214 = vunpack.c.0.s8 %v1213
    %v1215 = vlaneseq
    %v1216 = vshrl.u32 %v1215, 7
    %v1217 = vsub.s32 %v1214, %v1216
    %v1218 = vrot.slane %v1204, %v1217
    %v1219 = vcombine.high %v1211, %v1211
    %v1220 = vcombine.high %v1218, %v1218
    %v1222 = vunpack.c.l.s4 1966171168
    %v1223 = vunpack.c.0.s8 %v1222
    %v1224 = vlaneseq
    %v1225 = vshrl.u32 %v1224, 7
    %v1226 = vsub.s32 %v1223, %v1225
    %v1227 = vrot.slane %v1211, %v1226
    %v1229 = vunpack.c.l.s4 1966171168
    %v1230 = vunpack.c.0.s8 %v1229
    %v1231 = vlaneseq
    %v1232 = vshrl.u32 %v1231, 7
    %v1233 = vsub.s32 %v1230, %v1232
    %v1234 = vrot.slane %v1218, %v1233
    %v1236 = vunpack.c.l.s4 1966171168
    %v1237 = vunpack.c.0.s8 %v1236
    %v1238 = vlaneseq
    %v1239 = vshrl.u32 %v1238, 7
    %v1240 = vsub.s32 %v1237, %v1239
    %v1241 = vrot.slane %v1219, %v1240
    %v1243 = vunpack.c.l.s4 1966171168
    %v1244 = vunpack.c.0.s8 %v1243
    %v1245 = vlaneseq
    %v1246 = vshrl.u32 %v1245, 7
    %v1247 = vsub.s32 %v1244, %v1246
    %v1248 = vrot.slane %v1220, %v1247
    %v1249 = vcombine.high %v1227, %v1227
    %v1250 = vcombine.high %v1234, %v1234
    %v1251 = vcombine.high %v1241, %v1241
    %v1252 = vcombine.high %v1248, %v1248
    %v1253 = vcombine.high %v1201, %v1201
    %v1255 = vunpack.c.l.s4 1966171168
    %v1256 = vunpack.c.0.s8 %v1255
    %v1257 = vlaneseq
    %v1258 = vshrl.u32 %v1257, 7
    %v1259 = vsub.s32 %v1256, %v1258
    %v1260 = vrot.slane %v1201, %v1259
    %v1262 = vunpack.c.l.s4 1966171168
    %v1263 = vunpack.c.0.s8 %v1262
    %v1264 = vlaneseq
    %v1265 = vshrl.u32 %v1264, 7
    %v1266 = vsub.s32 %v1263, %v1265
    %v1267 = vrot.slane %v1253, %v1266
    %v1268 = vcombine.high %v1260, %v1260
    %v1269 = vcombine.high %v1267, %v1267
    %v1271 = vunpack.c.l.s4 1966171168
    %v1272 = vunpack.c.0.s8 %v1271
    %v1273 = vlaneseq
    %v1274 = vshrl.u32 %v1273, 7
    %v1275 = vsub.s32 %v1272, %v1274
    %v1276 = vrot.slane %v1260, %v1275
    %v1278 = vunpack.c.l.s4 1966171168
    %v1279 = vunpack.c.0.s8 %v1278
    %v1280 = vlaneseq
    %v1281 = vshrl.u32 %v1280, 7
    %v1282 = vsub.s32 %v1279, %v1281
    %v1283 = vrot.slane %v1267, %v1282
    %v1285 = vunpack.c.l.s4 1966171168
    %v1286 = vunpack.c.0.s8 %v1285
    %v1287 = vlaneseq
    %v1288 = vshrl.u32 %v1287, 7
    %v1289 = vsub.s32 %v1286, %v1288
    %v1290 = vrot.slane %v1268, %v1289
    %v1292 = vunpack.c.l.s4 1966171168
    %v1293 = vunpack.c.0.s8 %v1292
    %v1294 = vlaneseq
    %v1295 = vshrl.u32 %v1294, 7
    %v1296 = vsub.s32 %v1293, %v1295
    %v1297 = vrot.slane %v1269, %v1296
    %v1298 = vcombine.high %v1276, %v1276
    %v1299 = vcombine.high %v1283, %v1283
    %v1300 = vcombine.high %v1290, %v1290
    %v1301 = vcombine.high %v1297, %v1297
    %1318 = vst [vmem:[%s5 + $0x3] sm:$0x1] %v1227
    %1319 = vst [vmem:[%s5 + $0x13] sm:$0x1] %v1241
    %1320 = vst [vmem:[%s5 + $0x23] sm:$0x1] %v1249
    %1321 = vst [vmem:[%s5 + $0x33] sm:$0x1] %v1251
    %1322 = vst [vmem:[%s5 + $0x43] sm:$0x1] %v1234
    %1323 = vst [vmem:[%s5 + $0x53] sm:$0x1] %v1248
    %1324 = vst [vmem:[%s5 + $0x63] sm:$0x1] %v1250
    %1325 = vst [vmem:[%s5 + $0x73] sm:$0x1] %v1252
    %1326 = vst [vmem:[%s5 + $0x83] sm:$0x1] %v1276
    %1327 = vst [vmem:[%s5 + $0x93] sm:$0x1] %v1290
    %1328 = vst [vmem:[%s5 + $0xa3] sm:$0x1] %v1298
    %1329 = vst [vmem:[%s5 + $0xb3] sm:$0x1] %v1300
    %1330 = vst [vmem:[%s5 + $0xc3] sm:$0x1] %v1283
    %1331 = vst [vmem:[%s5 + $0xd3] sm:$0x1] %v1297
    %1332 = vst [vmem:[%s5 + $0xe3] sm:$0x1] %v1299
    %1333 = vst [vmem:[%s5 + $0xf3] sm:$0x1] %v1301
    %v1334 = vsel %vm1198, %v1184, %v1050
    %v1335 = vsel %vm1199, %v1185, %v1051
    %s1336 = scalar_lea.vmem %s1, 96
    %v1337 = vld [vmem:[%s1336] sm:$0xff]
    %v1338 = vld [vmem:[%s1336 + $0x8] sm:$0xf]
    %v1339 = vld [vmem:[%s1336 + $0xc] sm:$0xff]
    %v1340 = vld [vmem:[%s1336 + $0x14] sm:$0xf]
    %v1341 = vpack.c.bf16 %v1335, %v1334
    %1342 = vmatprep.subr.bf16.mxu0 %v142
    %1343 = vmatpush1.bf16.msra.mxu0 %v141
    %1344 = vmatprep.subr.bf16.mxu0 %v140
    %1345 = vmatpush1.bf16.msra.mxu0 %v139
    %1346 = vmatprep.subr.bf16.mxu0 %v138
    %1347 = vmatpush1.bf16.msra.mxu0 %v137
    %1348 = vmatprep.subr.bf16.mxu0 %v136
    %1349 = vmatpush1.bf16.msra.mxu0 %v135
    %1350 = vmatprep.subr.bf16.mxu0 %v134
    %1351 = vmatpush1.bf16.msra.mxu0 %v133
    %1352 = vmatprep.subr.bf16.mxu0 %v132
    %1353 = vmatpush1.bf16.msra.mxu0 %v131
    %1354 = vmatprep.subr.bf16.mxu0 %v130
    %1355 = vmatpush1.bf16.msra.mxu0 %v129
    %1356 = vmatprep.subr.bf16.mxu0 %v128
    %1357 = vmatpush1.bf16.msra.mxu0 %v127
    %1358 = vmatprep.subr.bf16.mxu0 0
    %1359 = vmatpush2.bf16.msra.mxu0 0
    %1360 = vmatprep.subr.bf16.mxu0 0
    %1361 = vmatpush2.bf16.msra.mxu0 0
    %1362 = vmatprep.subr.bf16.mxu0 0
    %1363 = vmatpush2.bf16.msra.mxu0 0
    %1364 = vmatprep.subr.bf16.mxu0 0
    %1365 = vmatpush2.bf16.msra.mxu0 0
    %1366 = vmatprep.subr.bf16.mxu0 0
    %1367 = vmatpush2.bf16.msra.mxu0 0
    %1368 = vmatprep.subr.bf16.mxu0 0
    %1369 = vmatpush2.bf16.msra.mxu0 0
    %1370 = vmatprep.subr.bf16.mxu0 0
    %1371 = vmatpush2.bf16.msra.mxu0 0
    %1372 = vmatprep.subr.bf16.mxu0 0
    %1373 = vmatpush2.bf16.msra.mxu0 0
    %1374 = vmatprep.mubr.bf16.mxu0 0
    %1375 = vmatmul.mubr.bf16.gmra.mxu0 %v1341
    %v1376 = vpop.f32.mrf.mxu0
    %v1377 = vadd.f32 0.0, %v1376
    %v1378 = vpop.f32.mrf.mxu0
    %v1379 = vadd.f32 0.0, %v1378
    %v1380 = vpop.f32.mrf.mxu0
    %v1381 = vadd.f32 0.0, %v1380
    %v1382 = vpop.f32.mrf.mxu0
    %v1383 = vadd.f32 0.0, %v1382
    %1384 = vdwg.mxu0
    %v1385 = vunpack.c.l.bf16 %v1337
    %v1386 = vunpack.c.l.bf16 %v1339
    %v1387 = vadd.f32 %v1385, %v1377
    %v1388 = vadd.f32 %v1386, %v1381
    %v1389 = vmul.f32 %v1387, 0.5
    %v1390 = vmul.f32 %v1388, 0.5
    %v1391 = vtanh.pop %v1389
    %v1392 = vtanh.pop %v1390
    %v1393 = vmul.f32 %v1391, 0.5
    %v1394 = vmul.f32 %v1392, 0.5
    %v1395 = vadd.f32 %v1393, 0.5
    %v1396 = vadd.f32 %v1394, 0.5
    %v1399 = vrot.slane %v1337, 4
    %v1400 = vrot.slane %v1339, 4
    %v1403 = vunpack.c.l.bf16 %v1399
    %v1404 = vunpack.c.l.bf16 %v1400
    %v1405 = vadd.f32 %v1403, %v1379
    %v1406 = vadd.f32 %v1404, %v1383
    %v1407 = vmul.f32 %v1405, 0.5
    %v1408 = vmul.f32 %v1406, 0.5
    %v1409 = vtanh.pop %v1407
    %v1410 = vtanh.pop %v1408
    %v1411 = vmul.f32 %v1409, 0.5
    %v1412 = vmul.f32 %v1410, 0.5
    %v1413 = vadd.f32 %v1411, 0.5
    %v1414 = vadd.f32 %v1412, 0.5
    %v1415 = vunpack.c.l.bf16 %v1338
    %v1416 = vunpack.c.l.bf16 %v1340
    %1417 = vmatprep.subr.bf16.mxu0 0
    %1418 = vmatpush1.bf16.msra.mxu0 %v273
    %1419 = vmatprep.subr.bf16.mxu0 0
    %1420 = vmatpush1.bf16.msra.mxu0 %v272
    %1421 = vmatprep.subr.bf16.mxu0 0
    %1422 = vmatpush1.bf16.msra.mxu0 %v271
    %1423 = vmatprep.subr.bf16.mxu0 0
    %1424 = vmatpush1.bf16.msra.mxu0 %v270
    %1425 = vmatprep.subr.bf16.mxu0 0
    %1426 = vmatpush1.bf16.msra.mxu0 %v269
    %1427 = vmatprep.subr.bf16.mxu0 0
    %1428 = vmatpush1.bf16.msra.mxu0 %v268
    %1429 = vmatprep.subr.bf16.mxu0 0
    %1430 = vmatpush1.bf16.msra.mxu0 %v267
    %1431 = vmatprep.subr.bf16.mxu0 0
    %1432 = vmatpush1.bf16.msra.mxu0 %v266
    %1433 = vmatprep.subr.bf16.mxu0 0
    %1434 = vmatpush2.bf16.msra.mxu0 0
    %1435 = vmatprep.subr.bf16.mxu0 0
    %1436 = vmatpush2.bf16.msra.mxu0 0
    %1437 = vmatprep.subr.bf16.mxu0 0
    %1438 = vmatpush2.bf16.msra.mxu0 0
    %1439 = vmatprep.subr.bf16.mxu0 0
    %1440 = vmatpush2.bf16.msra.mxu0 0
    %1441 = vmatprep.subr.bf16.mxu0 0
    %1442 = vmatpush2.bf16.msra.mxu0 0
    %1443 = vmatprep.subr.bf16.mxu0 0
    %1444 = vmatpush2.bf16.msra.mxu0 0
    %1445 = vmatprep.subr.bf16.mxu0 0
    %1446 = vmatpush2.bf16.msra.mxu0 0
    %1447 = vmatprep.subr.bf16.mxu0 0
    %1448 = vmatpush2.bf16.msra.mxu0 0
    %1449 = vmatprep.mubr.bf16.mxu0 0
    %1450 = vmatmul.mubr.bf16.gmra.mxu0 %v1341
    %v1451 = vpop.f32.mrf.mxu0
    %v1452 = vadd.f32 %v70, %v1451
    %v1453 = vpop.f32.mrf.mxu0
    %v1454 = vpop.f32.mrf.mxu0
    %v1455 = vadd.f32 %v70, %v1454
    %v1456 = vpop.f32.mrf.mxu0
    %1457 = vdwg.mxu0
    %v1458 = vmul.f32 %v1395, %v1452
    %v1459 = vmul.f32 %v1396, %v1455
    %v1460 = vadd.f32 %v1415, %v1458
    %v1461 = vadd.f32 %v1416, %v1459
    %v1462 = vtanh.pop %v1460
    %v1463 = vtanh.pop %v1461
    %v1464 = vsub.f32 %v1334, %v1462
    %v1465 = vsub.f32 %v1335, %v1463
    %v1466 = vmul.f32 %v1413, %v1464
    %v1467 = vmul.f32 %v1414, %v1465
    %v1468 = vadd.f32 %v1462, %v1466
    %v1469 = vadd.f32 %v1463, %v1467
    %s1470 = sadd.s32 %s64, 4
    %v1471 = vstv %s1470
    %vm1472 = vcmp.lt.s32.totalorder %v1471, %v62
    %vm1473 = vcmp.lt.s32.totalorder %v1471, %v63
    %v1474 = vsel %vm1472, 1, 0
    %v1475 = vsel %vm1473, 1, 0
    %1476 = vset.pattern.permute.xlu0 0
    %1477 = vperm.xlu0 %1476, %v1474
    %v1478 = vpop.permute.xlu0 %1477
    %1479 = vset.pattern.permute.xlu0 0
    %1480 = vperm.xlu0 %1479, %v1475
    %v1481 = vpop.permute.xlu0 %1480
    %vm1482 = vcmp.eq.s32.totalorder %v1478, 1
    %vm1483 = vcmp.eq.s32.totalorder %v1481, 1
    %v1484 = vsel %vm1482, %v1468, 0.0
    %v1485 = vsel %vm1483, %v1469, 0.0
    %v1488 = vcombine.high %v1484, %v1484
    %v1490 = vunpack.c.l.s4 1966171168
    %v1491 = vunpack.c.0.s8 %v1490
    %v1492 = vlaneseq
    %v1493 = vshrl.u32 %v1492, 7
    %v1494 = vsub.s32 %v1491, %v1493
    %v1495 = vrot.slane %v1484, %v1494
    %v1497 = vunpack.c.l.s4 1966171168
    %v1498 = vunpack.c.0.s8 %v1497
    %v1499 = vlaneseq
    %v1500 = vshrl.u32 %v1499, 7
    %v1501 = vsub.s32 %v1498, %v1500
    %v1502 = vrot.slane %v1488, %v1501
    %v1503 = vcombine.high %v1495, %v1495
    %v1504 = vcombine.high %v1502, %v1502
    %v1506 = vunpack.c.l.s4 1966171168
    %v1507 = vunpack.c.0.s8 %v1506
    %v1508 = vlaneseq
    %v1509 = vshrl.u32 %v1508, 7
    %v1510 = vsub.s32 %v1507, %v1509
    %v1511 = vrot.slane %v1495, %v1510
    %v1513 = vunpack.c.l.s4 1966171168
    %v1514 = vunpack.c.0.s8 %v1513
    %v1515 = vlaneseq
    %v1516 = vshrl.u32 %v1515, 7
    %v1517 = vsub.s32 %v1514, %v1516
    %v1518 = vrot.slane %v1502, %v1517
    %v1520 = vunpack.c.l.s4 1966171168
    %v1521 = vunpack.c.0.s8 %v1520
    %v1522 = vlaneseq
    %v1523 = vshrl.u32 %v1522, 7
    %v1524 = vsub.s32 %v1521, %v1523
    %v1525 = vrot.slane %v1503, %v1524
    %v1527 = vunpack.c.l.s4 1966171168
    %v1528 = vunpack.c.0.s8 %v1527
    %v1529 = vlaneseq
    %v1530 = vshrl.u32 %v1529, 7
    %v1531 = vsub.s32 %v1528, %v1530
    %v1532 = vrot.slane %v1504, %v1531
    %v1533 = vcombine.high %v1511, %v1511
    %v1534 = vcombine.high %v1518, %v1518
    %v1535 = vcombine.high %v1525, %v1525
    %v1536 = vcombine.high %v1532, %v1532
    %v1537 = vcombine.high %v1485, %v1485
    %v1539 = vunpack.c.l.s4 1966171168
    %v1540 = vunpack.c.0.s8 %v1539
    %v1541 = vlaneseq
    %v1542 = vshrl.u32 %v1541, 7
    %v1543 = vsub.s32 %v1540, %v1542
    %v1544 = vrot.slane %v1485, %v1543
    %v1546 = vunpack.c.l.s4 1966171168
    %v1547 = vunpack.c.0.s8 %v1546
    %v1548 = vlaneseq
    %v1549 = vshrl.u32 %v1548, 7
    %v1550 = vsub.s32 %v1547, %v1549
    %v1551 = vrot.slane %v1537, %v1550
    %v1552 = vcombine.high %v1544, %v1544
    %v1553 = vcombine.high %v1551, %v1551
    %v1555 = vunpack.c.l.s4 1966171168
    %v1556 = vunpack.c.0.s8 %v1555
    %v1557 = vlaneseq
    %v1558 = vshrl.u32 %v1557, 7
    %v1559 = vsub.s32 %v1556, %v1558
    %v1560 = vrot.slane %v1544, %v1559
    %v1562 = vunpack.c.l.s4 1966171168
    %v1563 = vunpack.c.0.s8 %v1562
    %v1564 = vlaneseq
    %v1565 = vshrl.u32 %v1564, 7
    %v1566 = vsub.s32 %v1563, %v1565
    %v1567 = vrot.slane %v1551, %v1566
    %v1569 = vunpack.c.l.s4 1966171168
    %v1570 = vunpack.c.0.s8 %v1569
    %v1571 = vlaneseq
    %v1572 = vshrl.u32 %v1571, 7
    %v1573 = vsub.s32 %v1570, %v1572
    %v1574 = vrot.slane %v1552, %v1573
    %v1576 = vunpack.c.l.s4 1966171168
    %v1577 = vunpack.c.0.s8 %v1576
    %v1578 = vlaneseq
    %v1579 = vshrl.u32 %v1578, 7
    %v1580 = vsub.s32 %v1577, %v1579
    %v1581 = vrot.slane %v1553, %v1580
    %v1582 = vcombine.high %v1560, %v1560
    %v1583 = vcombine.high %v1567, %v1567
    %v1584 = vcombine.high %v1574, %v1574
    %v1585 = vcombine.high %v1581, %v1581
    %1602 = vst [vmem:[%s5 + $0x4] sm:$0x1] %v1511
    %1603 = vst [vmem:[%s5 + $0x14] sm:$0x1] %v1525
    %1604 = vst [vmem:[%s5 + $0x24] sm:$0x1] %v1533
    %1605 = vst [vmem:[%s5 + $0x34] sm:$0x1] %v1535
    %1606 = vst [vmem:[%s5 + $0x44] sm:$0x1] %v1518
    %1607 = vst [vmem:[%s5 + $0x54] sm:$0x1] %v1532
    %1608 = vst [vmem:[%s5 + $0x64] sm:$0x1] %v1534
    %1609 = vst [vmem:[%s5 + $0x74] sm:$0x1] %v1536
    %1610 = vst [vmem:[%s5 + $0x84] sm:$0x1] %v1560
    %1611 = vst [vmem:[%s5 + $0x94] sm:$0x1] %v1574
    %1612 = vst [vmem:[%s5 + $0xa4] sm:$0x1] %v1582
    %1613 = vst [vmem:[%s5 + $0xb4] sm:$0x1] %v1584
    %1614 = vst [vmem:[%s5 + $0xc4] sm:$0x1] %v1567
    %1615 = vst [vmem:[%s5 + $0xd4] sm:$0x1] %v1581
    %1616 = vst [vmem:[%s5 + $0xe4] sm:$0x1] %v1583
    %1617 = vst [vmem:[%s5 + $0xf4] sm:$0x1] %v1585
    %v1618 = vsel %vm1482, %v1468, %v1334
    %v1619 = vsel %vm1483, %v1469, %v1335
    %s1620 = scalar_lea.vmem %s1, 120
    %v1621 = vld [vmem:[%s1620] sm:$0xff]
    %v1622 = vld [vmem:[%s1620 + $0x8] sm:$0xf]
    %v1623 = vld [vmem:[%s1620 + $0xc] sm:$0xff]
    %v1624 = vld [vmem:[%s1620 + $0x14] sm:$0xf]
    %v1625 = vpack.c.bf16 %v1619, %v1618
    %1626 = vmatprep.subr.bf16.mxu0 %v142
    %1627 = vmatpush1.bf16.msra.mxu0 %v141
    %1628 = vmatprep.subr.bf16.mxu0 %v140
    %1629 = vmatpush1.bf16.msra.mxu0 %v139
    %1630 = vmatprep.subr.bf16.mxu0 %v138
    %1631 = vmatpush1.bf16.msra.mxu0 %v137
    %1632 = vmatprep.subr.bf16.mxu0 %v136
    %1633 = vmatpush1.bf16.msra.mxu0 %v135
    %1634 = vmatprep.subr.bf16.mxu0 %v134
    %1635 = vmatpush1.bf16.msra.mxu0 %v133
    %1636 = vmatprep.subr.bf16.mxu0 %v132
    %1637 = vmatpush1.bf16.msra.mxu0 %v131
    %1638 = vmatprep.subr.bf16.mxu0 %v130
    %1639 = vmatpush1.bf16.msra.mxu0 %v129
    %1640 = vmatprep.subr.bf16.mxu0 %v128
    %1641 = vmatpush1.bf16.msra.mxu0 %v127
    %1642 = vmatprep.subr.bf16.mxu0 0
    %1643 = vmatpush2.bf16.msra.mxu0 0
    %1644 = vmatprep.subr.bf16.mxu0 0
    %1645 = vmatpush2.bf16.msra.mxu0 0
    %1646 = vmatprep.subr.bf16.mxu0 0
    %1647 = vmatpush2.bf16.msra.mxu0 0
    %1648 = vmatprep.subr.bf16.mxu0 0
    %1649 = vmatpush2.bf16.msra.mxu0 0
    %1650 = vmatprep.subr.bf16.mxu0 0
    %1651 = vmatpush2.bf16.msra.mxu0 0
    %1652 = vmatprep.subr.bf16.mxu0 0
    %1653 = vmatpush2.bf16.msra.mxu0 0
    %1654 = vmatprep.subr.bf16.mxu0 0
    %1655 = vmatpush2.bf16.msra.mxu0 0
    %1656 = vmatprep.subr.bf16.mxu0 0
    %1657 = vmatpush2.bf16.msra.mxu0 0
    %1658 = vmatprep.mubr.bf16.mxu0 0
    %1659 = vmatmul.mubr.bf16.gmra.mxu0 %v1625
    %v1660 = vpop.f32.mrf.mxu0
    %v1661 = vadd.f32 0.0, %v1660
    %v1662 = vpop.f32.mrf.mxu0
    %v1663 = vadd.f32 0.0, %v1662
    %v1664 = vpop.f32.mrf.mxu0
    %v1665 = vadd.f32 0.0, %v1664
    %v1666 = vpop.f32.mrf.mxu0
    %v1667 = vadd.f32 0.0, %v1666
    %1668 = vdwg.mxu0
    %v1669 = vunpack.c.l.bf16 %v1621
    %v1670 = vunpack.c.l.bf16 %v1623
    %v1671 = vadd.f32 %v1669, %v1661
    %v1672 = vadd.f32 %v1670, %v1665
    %v1673 = vmul.f32 %v1671, 0.5
    %v1674 = vmul.f32 %v1672, 0.5
    %v1675 = vtanh.pop %v1673
    %v1676 = vtanh.pop %v1674
    %v1677 = vmul.f32 %v1675, 0.5
    %v1678 = vmul.f32 %v1676, 0.5
    %v1679 = vadd.f32 %v1677, 0.5
    %v1680 = vadd.f32 %v1678, 0.5
    %v1683 = vrot.slane %v1621, 4
    %v1684 = vrot.slane %v1623, 4
    %v1687 = vunpack.c.l.bf16 %v1683
    %v1688 = vunpack.c.l.bf16 %v1684
    %v1689 = vadd.f32 %v1687, %v1663
    %v1690 = vadd.f32 %v1688, %v1667
    %v1691 = vmul.f32 %v1689, 0.5
    %v1692 = vmul.f32 %v1690, 0.5
    %v1693 = vtanh.pop %v1691
    %v1694 = vtanh.pop %v1692
    %v1695 = vmul.f32 %v1693, 0.5
    %v1696 = vmul.f32 %v1694, 0.5
    %v1697 = vadd.f32 %v1695, 0.5
    %v1698 = vadd.f32 %v1696, 0.5
    %v1699 = vunpack.c.l.bf16 %v1622
    %v1700 = vunpack.c.l.bf16 %v1624
    %1701 = vmatprep.subr.bf16.mxu0 0
    %1702 = vmatpush1.bf16.msra.mxu0 %v273
    %1703 = vmatprep.subr.bf16.mxu0 0
    %1704 = vmatpush1.bf16.msra.mxu0 %v272
    %1705 = vmatprep.subr.bf16.mxu0 0
    %1706 = vmatpush1.bf16.msra.mxu0 %v271
    %1707 = vmatprep.subr.bf16.mxu0 0
    %1708 = vmatpush1.bf16.msra.mxu0 %v270
    %1709 = vmatprep.subr.bf16.mxu0 0
    %1710 = vmatpush1.bf16.msra.mxu0 %v269
    %1711 = vmatprep.subr.bf16.mxu0 0
    %1712 = vmatpush1.bf16.msra.mxu0 %v268
    %1713 = vmatprep.subr.bf16.mxu0 0
    %1714 = vmatpush1.bf16.msra.mxu0 %v267
    %1715 = vmatprep.subr.bf16.mxu0 0
    %1716 = vmatpush1.bf16.msra.mxu0 %v266
    %1717 = vmatprep.subr.bf16.mxu0 0
    %1718 = vmatpush2.bf16.msra.mxu0 0
    %1719 = vmatprep.subr.bf16.mxu0 0
    %1720 = vmatpush2.bf16.msra.mxu0 0
    %1721 = vmatprep.subr.bf16.mxu0 0
    %1722 = vmatpush2.bf16.msra.mxu0 0
    %1723 = vmatprep.subr.bf16.mxu0 0
    %1724 = vmatpush2.bf16.msra.mxu0 0
    %1725 = vmatprep.subr.bf16.mxu0 0
    %1726 = vmatpush2.bf16.msra.mxu0 0
    %1727 = vmatprep.subr.bf16.mxu0 0
    %1728 = vmatpush2.bf16.msra.mxu0 0
    %1729 = vmatprep.subr.bf16.mxu0 0
    %1730 = vmatpush2.bf16.msra.mxu0 0
    %1731 = vmatprep.subr.bf16.mxu0 0
    %1732 = vmatpush2.bf16.msra.mxu0 0
    %1733 = vmatprep.mubr.bf16.mxu0 0
    %1734 = vmatmul.mubr.bf16.gmra.mxu0 %v1625
    %v1735 = vpop.f32.mrf.mxu0
    %v1736 = vadd.f32 %v70, %v1735
    %v1737 = vpop.f32.mrf.mxu0
    %v1738 = vpop.f32.mrf.mxu0
    %v1739 = vadd.f32 %v70, %v1738
    %v1740 = vpop.f32.mrf.mxu0
    %1741 = vdwg.mxu0
    %v1742 = vmul.f32 %v1679, %v1736
    %v1743 = vmul.f32 %v1680, %v1739
    %v1744 = vadd.f32 %v1699, %v1742
    %v1745 = vadd.f32 %v1700, %v1743
    %v1746 = vtanh.pop %v1744
    %v1747 = vtanh.pop %v1745
    %v1748 = vsub.f32 %v1618, %v1746
    %v1749 = vsub.f32 %v1619, %v1747
    %v1750 = vmul.f32 %v1697, %v1748
    %v1751 = vmul.f32 %v1698, %v1749
    %v1752 = vadd.f32 %v1746, %v1750
    %v1753 = vadd.f32 %v1747, %v1751
    %s1754 = sadd.s32 %s64, 5
    %v1755 = vstv %s1754
    %vm1756 = vcmp.lt.s32.totalorder %v1755, %v62
    %vm1757 = vcmp.lt.s32.totalorder %v1755, %v63
    %v1758 = vsel %vm1756, 1, 0
    %v1759 = vsel %vm1757, 1, 0
    %1760 = vset.pattern.permute.xlu0 0
    %1761 = vperm.xlu0 %1760, %v1758
    %v1762 = vpop.permute.xlu0 %1761
    %1763 = vset.pattern.permute.xlu0 0
    %1764 = vperm.xlu0 %1763, %v1759
    %v1765 = vpop.permute.xlu0 %1764
    %vm1766 = vcmp.eq.s32.totalorder %v1762, 1
    %vm1767 = vcmp.eq.s32.totalorder %v1765, 1
    %v1768 = vsel %vm1766, %v1752, 0.0
    %v1769 = vsel %vm1767, %v1753, 0.0
    %v1772 = vcombine.high %v1768, %v1768
    %v1774 = vunpack.c.l.s4 1966171168
    %v1775 = vunpack.c.0.s8 %v1774
    %v1776 = vlaneseq
    %v1777 = vshrl.u32 %v1776, 7
    %v1778 = vsub.s32 %v1775, %v1777
    %v1779 = vrot.slane %v1768, %v1778
    %v1781 = vunpack.c.l.s4 1966171168
    %v1782 = vunpack.c.0.s8 %v1781
    %v1783 = vlaneseq
    %v1784 = vshrl.u32 %v1783, 7
    %v1785 = vsub.s32 %v1782, %v1784
    %v1786 = vrot.slane %v1772, %v1785
    %v1787 = vcombine.high %v1779, %v1779
    %v1788 = vcombine.high %v1786, %v1786
    %v1790 = vunpack.c.l.s4 1966171168
    %v1791 = vunpack.c.0.s8 %v1790
    %v1792 = vlaneseq
    %v1793 = vshrl.u32 %v1792, 7
    %v1794 = vsub.s32 %v1791, %v1793
    %v1795 = vrot.slane %v1779, %v1794
    %v1797 = vunpack.c.l.s4 1966171168
    %v1798 = vunpack.c.0.s8 %v1797
    %v1799 = vlaneseq
    %v1800 = vshrl.u32 %v1799, 7
    %v1801 = vsub.s32 %v1798, %v1800
    %v1802 = vrot.slane %v1786, %v1801
    %v1804 = vunpack.c.l.s4 1966171168
    %v1805 = vunpack.c.0.s8 %v1804
    %v1806 = vlaneseq
    %v1807 = vshrl.u32 %v1806, 7
    %v1808 = vsub.s32 %v1805, %v1807
    %v1809 = vrot.slane %v1787, %v1808
    %v1811 = vunpack.c.l.s4 1966171168
    %v1812 = vunpack.c.0.s8 %v1811
    %v1813 = vlaneseq
    %v1814 = vshrl.u32 %v1813, 7
    %v1815 = vsub.s32 %v1812, %v1814
    %v1816 = vrot.slane %v1788, %v1815
    %v1817 = vcombine.high %v1795, %v1795
    %v1818 = vcombine.high %v1802, %v1802
    %v1819 = vcombine.high %v1809, %v1809
    %v1820 = vcombine.high %v1816, %v1816
    %v1821 = vcombine.high %v1769, %v1769
    %v1823 = vunpack.c.l.s4 1966171168
    %v1824 = vunpack.c.0.s8 %v1823
    %v1825 = vlaneseq
    %v1826 = vshrl.u32 %v1825, 7
    %v1827 = vsub.s32 %v1824, %v1826
    %v1828 = vrot.slane %v1769, %v1827
    %v1830 = vunpack.c.l.s4 1966171168
    %v1831 = vunpack.c.0.s8 %v1830
    %v1832 = vlaneseq
    %v1833 = vshrl.u32 %v1832, 7
    %v1834 = vsub.s32 %v1831, %v1833
    %v1835 = vrot.slane %v1821, %v1834
    %v1836 = vcombine.high %v1828, %v1828
    %v1837 = vcombine.high %v1835, %v1835
    %v1839 = vunpack.c.l.s4 1966171168
    %v1840 = vunpack.c.0.s8 %v1839
    %v1841 = vlaneseq
    %v1842 = vshrl.u32 %v1841, 7
    %v1843 = vsub.s32 %v1840, %v1842
    %v1844 = vrot.slane %v1828, %v1843
    %v1846 = vunpack.c.l.s4 1966171168
    %v1847 = vunpack.c.0.s8 %v1846
    %v1848 = vlaneseq
    %v1849 = vshrl.u32 %v1848, 7
    %v1850 = vsub.s32 %v1847, %v1849
    %v1851 = vrot.slane %v1835, %v1850
    %v1853 = vunpack.c.l.s4 1966171168
    %v1854 = vunpack.c.0.s8 %v1853
    %v1855 = vlaneseq
    %v1856 = vshrl.u32 %v1855, 7
    %v1857 = vsub.s32 %v1854, %v1856
    %v1858 = vrot.slane %v1836, %v1857
    %v1860 = vunpack.c.l.s4 1966171168
    %v1861 = vunpack.c.0.s8 %v1860
    %v1862 = vlaneseq
    %v1863 = vshrl.u32 %v1862, 7
    %v1864 = vsub.s32 %v1861, %v1863
    %v1865 = vrot.slane %v1837, %v1864
    %v1866 = vcombine.high %v1844, %v1844
    %v1867 = vcombine.high %v1851, %v1851
    %v1868 = vcombine.high %v1858, %v1858
    %v1869 = vcombine.high %v1865, %v1865
    %1886 = vst [vmem:[%s5 + $0x5] sm:$0x1] %v1795
    %1887 = vst [vmem:[%s5 + $0x15] sm:$0x1] %v1809
    %1888 = vst [vmem:[%s5 + $0x25] sm:$0x1] %v1817
    %1889 = vst [vmem:[%s5 + $0x35] sm:$0x1] %v1819
    %1890 = vst [vmem:[%s5 + $0x45] sm:$0x1] %v1802
    %1891 = vst [vmem:[%s5 + $0x55] sm:$0x1] %v1816
    %1892 = vst [vmem:[%s5 + $0x65] sm:$0x1] %v1818
    %1893 = vst [vmem:[%s5 + $0x75] sm:$0x1] %v1820
    %1894 = vst [vmem:[%s5 + $0x85] sm:$0x1] %v1844
    %1895 = vst [vmem:[%s5 + $0x95] sm:$0x1] %v1858
    %1896 = vst [vmem:[%s5 + $0xa5] sm:$0x1] %v1866
    %1897 = vst [vmem:[%s5 + $0xb5] sm:$0x1] %v1868
    %1898 = vst [vmem:[%s5 + $0xc5] sm:$0x1] %v1851
    %1899 = vst [vmem:[%s5 + $0xd5] sm:$0x1] %v1865
    %1900 = vst [vmem:[%s5 + $0xe5] sm:$0x1] %v1867
    %1901 = vst [vmem:[%s5 + $0xf5] sm:$0x1] %v1869
    %v1902 = vsel %vm1766, %v1752, %v1618
    %v1903 = vsel %vm1767, %v1753, %v1619
    %s1904 = scalar_lea.vmem %s1, 144
    %v1905 = vld [vmem:[%s1904] sm:$0xff]
    %v1906 = vld [vmem:[%s1904 + $0x8] sm:$0xf]
    %v1907 = vld [vmem:[%s1904 + $0xc] sm:$0xff]
    %v1908 = vld [vmem:[%s1904 + $0x14] sm:$0xf]
    %v1909 = vpack.c.bf16 %v1903, %v1902
    %1910 = vmatprep.subr.bf16.mxu0 %v142
    %1911 = vmatpush1.bf16.msra.mxu0 %v141
    %1912 = vmatprep.subr.bf16.mxu0 %v140
    %1913 = vmatpush1.bf16.msra.mxu0 %v139
    %1914 = vmatprep.subr.bf16.mxu0 %v138
    %1915 = vmatpush1.bf16.msra.mxu0 %v137
    %1916 = vmatprep.subr.bf16.mxu0 %v136
    %1917 = vmatpush1.bf16.msra.mxu0 %v135
    %1918 = vmatprep.subr.bf16.mxu0 %v134
    %1919 = vmatpush1.bf16.msra.mxu0 %v133
    %1920 = vmatprep.subr.bf16.mxu0 %v132
    %1921 = vmatpush1.bf16.msra.mxu0 %v131
    %1922 = vmatprep.subr.bf16.mxu0 %v130
    %1923 = vmatpush1.bf16.msra.mxu0 %v129
    %1924 = vmatprep.subr.bf16.mxu0 %v128
    %1925 = vmatpush1.bf16.msra.mxu0 %v127
    %1926 = vmatprep.subr.bf16.mxu0 0
    %1927 = vmatpush2.bf16.msra.mxu0 0
    %1928 = vmatprep.subr.bf16.mxu0 0
    %1929 = vmatpush2.bf16.msra.mxu0 0
    %1930 = vmatprep.subr.bf16.mxu0 0
    %1931 = vmatpush2.bf16.msra.mxu0 0
    %1932 = vmatprep.subr.bf16.mxu0 0
    %1933 = vmatpush2.bf16.msra.mxu0 0
    %1934 = vmatprep.subr.bf16.mxu0 0
    %1935 = vmatpush2.bf16.msra.mxu0 0
    %1936 = vmatprep.subr.bf16.mxu0 0
    %1937 = vmatpush2.bf16.msra.mxu0 0
    %1938 = vmatprep.subr.bf16.mxu0 0
    %1939 = vmatpush2.bf16.msra.mxu0 0
    %1940 = vmatprep.subr.bf16.mxu0 0
    %1941 = vmatpush2.bf16.msra.mxu0 0
    %1942 = vmatprep.mubr.bf16.mxu0 0
    %1943 = vmatmul.mubr.bf16.gmra.mxu0 %v1909
    %v1944 = vpop.f32.mrf.mxu0
    %v1945 = vadd.f32 0.0, %v1944
    %v1946 = vpop.f32.mrf.mxu0
    %v1947 = vadd.f32 0.0, %v1946
    %v1948 = vpop.f32.mrf.mxu0
    %v1949 = vadd.f32 0.0, %v1948
    %v1950 = vpop.f32.mrf.mxu0
    %v1951 = vadd.f32 0.0, %v1950
    %1952 = vdwg.mxu0
    %v1953 = vunpack.c.l.bf16 %v1905
    %v1954 = vunpack.c.l.bf16 %v1907
    %v1955 = vadd.f32 %v1953, %v1945
    %v1956 = vadd.f32 %v1954, %v1949
    %v1957 = vmul.f32 %v1955, 0.5
    %v1958 = vmul.f32 %v1956, 0.5
    %v1959 = vtanh.pop %v1957
    %v1960 = vtanh.pop %v1958
    %v1961 = vmul.f32 %v1959, 0.5
    %v1962 = vmul.f32 %v1960, 0.5
    %v1963 = vadd.f32 %v1961, 0.5
    %v1964 = vadd.f32 %v1962, 0.5
    %v1967 = vrot.slane %v1905, 4
    %v1968 = vrot.slane %v1907, 4
    %v1971 = vunpack.c.l.bf16 %v1967
    %v1972 = vunpack.c.l.bf16 %v1968
    %v1973 = vadd.f32 %v1971, %v1947
    %v1974 = vadd.f32 %v1972, %v1951
    %v1975 = vmul.f32 %v1973, 0.5
    %v1976 = vmul.f32 %v1974, 0.5
    %v1977 = vtanh.pop %v1975
    %v1978 = vtanh.pop %v1976
    %v1979 = vmul.f32 %v1977, 0.5
    %v1980 = vmul.f32 %v1978, 0.5
    %v1981 = vadd.f32 %v1979, 0.5
    %v1982 = vadd.f32 %v1980, 0.5
    %v1983 = vunpack.c.l.bf16 %v1906
    %v1984 = vunpack.c.l.bf16 %v1908
    %1985 = vmatprep.subr.bf16.mxu0 0
    %1986 = vmatpush1.bf16.msra.mxu0 %v273
    %1987 = vmatprep.subr.bf16.mxu0 0
    %1988 = vmatpush1.bf16.msra.mxu0 %v272
    %1989 = vmatprep.subr.bf16.mxu0 0
    %1990 = vmatpush1.bf16.msra.mxu0 %v271
    %1991 = vmatprep.subr.bf16.mxu0 0
    %1992 = vmatpush1.bf16.msra.mxu0 %v270
    %1993 = vmatprep.subr.bf16.mxu0 0
    %1994 = vmatpush1.bf16.msra.mxu0 %v269
    %1995 = vmatprep.subr.bf16.mxu0 0
    %1996 = vmatpush1.bf16.msra.mxu0 %v268
    %1997 = vmatprep.subr.bf16.mxu0 0
    %1998 = vmatpush1.bf16.msra.mxu0 %v267
    %1999 = vmatprep.subr.bf16.mxu0 0
    %2000 = vmatpush1.bf16.msra.mxu0 %v266
    %2001 = vmatprep.subr.bf16.mxu0 0
    %2002 = vmatpush2.bf16.msra.mxu0 0
    %2003 = vmatprep.subr.bf16.mxu0 0
    %2004 = vmatpush2.bf16.msra.mxu0 0
    %2005 = vmatprep.subr.bf16.mxu0 0
    %2006 = vmatpush2.bf16.msra.mxu0 0
    %2007 = vmatprep.subr.bf16.mxu0 0
    %2008 = vmatpush2.bf16.msra.mxu0 0
    %2009 = vmatprep.subr.bf16.mxu0 0
    %2010 = vmatpush2.bf16.msra.mxu0 0
    %2011 = vmatprep.subr.bf16.mxu0 0
    %2012 = vmatpush2.bf16.msra.mxu0 0
    %2013 = vmatprep.subr.bf16.mxu0 0
    %2014 = vmatpush2.bf16.msra.mxu0 0
    %2015 = vmatprep.subr.bf16.mxu0 0
    %2016 = vmatpush2.bf16.msra.mxu0 0
    %2017 = vmatprep.mubr.bf16.mxu0 0
    %2018 = vmatmul.mubr.bf16.gmra.mxu0 %v1909
    %v2019 = vpop.f32.mrf.mxu0
    %v2020 = vadd.f32 %v70, %v2019
    %v2021 = vpop.f32.mrf.mxu0
    %v2022 = vpop.f32.mrf.mxu0
    %v2023 = vadd.f32 %v70, %v2022
    %v2024 = vpop.f32.mrf.mxu0
    %2025 = vdwg.mxu0
    %v2026 = vmul.f32 %v1963, %v2020
    %v2027 = vmul.f32 %v1964, %v2023
    %v2028 = vadd.f32 %v1983, %v2026
    %v2029 = vadd.f32 %v1984, %v2027
    %v2030 = vtanh.pop %v2028
    %v2031 = vtanh.pop %v2029
    %v2032 = vsub.f32 %v1902, %v2030
    %v2033 = vsub.f32 %v1903, %v2031
    %v2034 = vmul.f32 %v1981, %v2032
    %v2035 = vmul.f32 %v1982, %v2033
    %v2036 = vadd.f32 %v2030, %v2034
    %v2037 = vadd.f32 %v2031, %v2035
    %s2038 = sadd.s32 %s64, 6
    %v2039 = vstv %s2038
    %vm2040 = vcmp.lt.s32.totalorder %v2039, %v62
    %vm2041 = vcmp.lt.s32.totalorder %v2039, %v63
    %v2042 = vsel %vm2040, 1, 0
    %v2043 = vsel %vm2041, 1, 0
    %2044 = vset.pattern.permute.xlu0 0
    %2045 = vperm.xlu0 %2044, %v2042
    %v2046 = vpop.permute.xlu0 %2045
    %2047 = vset.pattern.permute.xlu0 0
    %2048 = vperm.xlu0 %2047, %v2043
    %v2049 = vpop.permute.xlu0 %2048
    %vm2050 = vcmp.eq.s32.totalorder %v2046, 1
    %vm2051 = vcmp.eq.s32.totalorder %v2049, 1
    %v2052 = vsel %vm2050, %v2036, 0.0
    %v2053 = vsel %vm2051, %v2037, 0.0
    %v2056 = vcombine.high %v2052, %v2052
    %v2058 = vunpack.c.l.s4 1966171168
    %v2059 = vunpack.c.0.s8 %v2058
    %v2060 = vlaneseq
    %v2061 = vshrl.u32 %v2060, 7
    %v2062 = vsub.s32 %v2059, %v2061
    %v2063 = vrot.slane %v2052, %v2062
    %v2065 = vunpack.c.l.s4 1966171168
    %v2066 = vunpack.c.0.s8 %v2065
    %v2067 = vlaneseq
    %v2068 = vshrl.u32 %v2067, 7
    %v2069 = vsub.s32 %v2066, %v2068
    %v2070 = vrot.slane %v2056, %v2069
    %v2071 = vcombine.high %v2063, %v2063
    %v2072 = vcombine.high %v2070, %v2070
    %v2074 = vunpack.c.l.s4 1966171168
    %v2075 = vunpack.c.0.s8 %v2074
    %v2076 = vlaneseq
    %v2077 = vshrl.u32 %v2076, 7
    %v2078 = vsub.s32 %v2075, %v2077
    %v2079 = vrot.slane %v2063, %v2078
    %v2081 = vunpack.c.l.s4 1966171168
    %v2082 = vunpack.c.0.s8 %v2081
    %v2083 = vlaneseq
    %v2084 = vshrl.u32 %v2083, 7
    %v2085 = vsub.s32 %v2082, %v2084
    %v2086 = vrot.slane %v2070, %v2085
    %v2088 = vunpack.c.l.s4 1966171168
    %v2089 = vunpack.c.0.s8 %v2088
    %v2090 = vlaneseq
    %v2091 = vshrl.u32 %v2090, 7
    %v2092 = vsub.s32 %v2089, %v2091
    %v2093 = vrot.slane %v2071, %v2092
    %v2095 = vunpack.c.l.s4 1966171168
    %v2096 = vunpack.c.0.s8 %v2095
    %v2097 = vlaneseq
    %v2098 = vshrl.u32 %v2097, 7
    %v2099 = vsub.s32 %v2096, %v2098
    %v2100 = vrot.slane %v2072, %v2099
    %v2101 = vcombine.high %v2079, %v2079
    %v2102 = vcombine.high %v2086, %v2086
    %v2103 = vcombine.high %v2093, %v2093
    %v2104 = vcombine.high %v2100, %v2100
    %v2105 = vcombine.high %v2053, %v2053
    %v2107 = vunpack.c.l.s4 1966171168
    %v2108 = vunpack.c.0.s8 %v2107
    %v2109 = vlaneseq
    %v2110 = vshrl.u32 %v2109, 7
    %v2111 = vsub.s32 %v2108, %v2110
    %v2112 = vrot.slane %v2053, %v2111
    %v2114 = vunpack.c.l.s4 1966171168
    %v2115 = vunpack.c.0.s8 %v2114
    %v2116 = vlaneseq
    %v2117 = vshrl.u32 %v2116, 7
    %v2118 = vsub.s32 %v2115, %v2117
    %v2119 = vrot.slane %v2105, %v2118
    %v2120 = vcombine.high %v2112, %v2112
    %v2121 = vcombine.high %v2119, %v2119
    %v2123 = vunpack.c.l.s4 1966171168
    %v2124 = vunpack.c.0.s8 %v2123
    %v2125 = vlaneseq
    %v2126 = vshrl.u32 %v2125, 7
    %v2127 = vsub.s32 %v2124, %v2126
    %v2128 = vrot.slane %v2112, %v2127
    %v2130 = vunpack.c.l.s4 1966171168
    %v2131 = vunpack.c.0.s8 %v2130
    %v2132 = vlaneseq
    %v2133 = vshrl.u32 %v2132, 7
    %v2134 = vsub.s32 %v2131, %v2133
    %v2135 = vrot.slane %v2119, %v2134
    %v2137 = vunpack.c.l.s4 1966171168
    %v2138 = vunpack.c.0.s8 %v2137
    %v2139 = vlaneseq
    %v2140 = vshrl.u32 %v2139, 7
    %v2141 = vsub.s32 %v2138, %v2140
    %v2142 = vrot.slane %v2120, %v2141
    %v2144 = vunpack.c.l.s4 1966171168
    %v2145 = vunpack.c.0.s8 %v2144
    %v2146 = vlaneseq
    %v2147 = vshrl.u32 %v2146, 7
    %v2148 = vsub.s32 %v2145, %v2147
    %v2149 = vrot.slane %v2121, %v2148
    %v2150 = vcombine.high %v2128, %v2128
    %v2151 = vcombine.high %v2135, %v2135
    %v2152 = vcombine.high %v2142, %v2142
    %v2153 = vcombine.high %v2149, %v2149
    %2170 = vst [vmem:[%s5 + $0x6] sm:$0x1] %v2079
    %2171 = vst [vmem:[%s5 + $0x16] sm:$0x1] %v2093
    %2172 = vst [vmem:[%s5 + $0x26] sm:$0x1] %v2101
    %2173 = vst [vmem:[%s5 + $0x36] sm:$0x1] %v2103
    %2174 = vst [vmem:[%s5 + $0x46] sm:$0x1] %v2086
    %2175 = vst [vmem:[%s5 + $0x56] sm:$0x1] %v2100
    %2176 = vst [vmem:[%s5 + $0x66] sm:$0x1] %v2102
    %2177 = vst [vmem:[%s5 + $0x76] sm:$0x1] %v2104
    %2178 = vst [vmem:[%s5 + $0x86] sm:$0x1] %v2128
    %2179 = vst [vmem:[%s5 + $0x96] sm:$0x1] %v2142
    %2180 = vst [vmem:[%s5 + $0xa6] sm:$0x1] %v2150
    %2181 = vst [vmem:[%s5 + $0xb6] sm:$0x1] %v2152
    %2182 = vst [vmem:[%s5 + $0xc6] sm:$0x1] %v2135
    %2183 = vst [vmem:[%s5 + $0xd6] sm:$0x1] %v2149
    %2184 = vst [vmem:[%s5 + $0xe6] sm:$0x1] %v2151
    %2185 = vst [vmem:[%s5 + $0xf6] sm:$0x1] %v2153
    %v2186 = vsel %vm2050, %v2036, %v1902
    %v2187 = vsel %vm2051, %v2037, %v1903
    %s2188 = scalar_lea.vmem %s1, 168
    %v2189 = vld [vmem:[%s2188] sm:$0xff]
    %v2190 = vld [vmem:[%s2188 + $0x8] sm:$0xf]
    %v2191 = vld [vmem:[%s2188 + $0xc] sm:$0xff]
    %v2192 = vld [vmem:[%s2188 + $0x14] sm:$0xf]
    %v2193 = vpack.c.bf16 %v2187, %v2186
    %2194 = vmatprep.subr.bf16.mxu0 %v142
    %2195 = vmatpush1.bf16.msra.mxu0 %v141
    %2196 = vmatprep.subr.bf16.mxu0 %v140
    %2197 = vmatpush1.bf16.msra.mxu0 %v139
    %2198 = vmatprep.subr.bf16.mxu0 %v138
    %2199 = vmatpush1.bf16.msra.mxu0 %v137
    %2200 = vmatprep.subr.bf16.mxu0 %v136
    %2201 = vmatpush1.bf16.msra.mxu0 %v135
    %2202 = vmatprep.subr.bf16.mxu0 %v134
    %2203 = vmatpush1.bf16.msra.mxu0 %v133
    %2204 = vmatprep.subr.bf16.mxu0 %v132
    %2205 = vmatpush1.bf16.msra.mxu0 %v131
    %2206 = vmatprep.subr.bf16.mxu0 %v130
    %2207 = vmatpush1.bf16.msra.mxu0 %v129
    %2208 = vmatprep.subr.bf16.mxu0 %v128
    %2209 = vmatpush1.bf16.msra.mxu0 %v127
    %2210 = vmatprep.subr.bf16.mxu0 0
    %2211 = vmatpush2.bf16.msra.mxu0 0
    %2212 = vmatprep.subr.bf16.mxu0 0
    %2213 = vmatpush2.bf16.msra.mxu0 0
    %2214 = vmatprep.subr.bf16.mxu0 0
    %2215 = vmatpush2.bf16.msra.mxu0 0
    %2216 = vmatprep.subr.bf16.mxu0 0
    %2217 = vmatpush2.bf16.msra.mxu0 0
    %2218 = vmatprep.subr.bf16.mxu0 0
    %2219 = vmatpush2.bf16.msra.mxu0 0
    %2220 = vmatprep.subr.bf16.mxu0 0
    %2221 = vmatpush2.bf16.msra.mxu0 0
    %2222 = vmatprep.subr.bf16.mxu0 0
    %2223 = vmatpush2.bf16.msra.mxu0 0
    %2224 = vmatprep.subr.bf16.mxu0 0
    %2225 = vmatpush2.bf16.msra.mxu0 0
    %2226 = vmatprep.mubr.bf16.mxu0 0
    %2227 = vmatmul.mubr.bf16.gmra.mxu0 %v2193
    %v2228 = vpop.f32.mrf.mxu0
    %v2229 = vadd.f32 0.0, %v2228
    %v2230 = vpop.f32.mrf.mxu0
    %v2231 = vadd.f32 0.0, %v2230
    %v2232 = vpop.f32.mrf.mxu0
    %v2233 = vadd.f32 0.0, %v2232
    %v2234 = vpop.f32.mrf.mxu0
    %v2235 = vadd.f32 0.0, %v2234
    %2236 = vdwg.mxu0
    %v2237 = vunpack.c.l.bf16 %v2189
    %v2238 = vunpack.c.l.bf16 %v2191
    %v2239 = vadd.f32 %v2237, %v2229
    %v2240 = vadd.f32 %v2238, %v2233
    %v2241 = vmul.f32 %v2239, 0.5
    %v2242 = vmul.f32 %v2240, 0.5
    %v2243 = vtanh.pop %v2241
    %v2244 = vtanh.pop %v2242
    %v2245 = vmul.f32 %v2243, 0.5
    %v2246 = vmul.f32 %v2244, 0.5
    %v2247 = vadd.f32 %v2245, 0.5
    %v2248 = vadd.f32 %v2246, 0.5
    %v2251 = vrot.slane %v2189, 4
    %v2252 = vrot.slane %v2191, 4
    %v2255 = vunpack.c.l.bf16 %v2251
    %v2256 = vunpack.c.l.bf16 %v2252
    %v2257 = vadd.f32 %v2255, %v2231
    %v2258 = vadd.f32 %v2256, %v2235
    %v2259 = vmul.f32 %v2257, 0.5
    %v2260 = vmul.f32 %v2258, 0.5
    %v2261 = vtanh.pop %v2259
    %v2262 = vtanh.pop %v2260
    %v2263 = vmul.f32 %v2261, 0.5
    %v2264 = vmul.f32 %v2262, 0.5
    %v2265 = vadd.f32 %v2263, 0.5
    %v2266 = vadd.f32 %v2264, 0.5
    %v2267 = vunpack.c.l.bf16 %v2190
    %v2268 = vunpack.c.l.bf16 %v2192
    %2269 = vmatprep.subr.bf16.mxu0 0
    %2270 = vmatpush1.bf16.msra.mxu0 %v273
    %2271 = vmatprep.subr.bf16.mxu0 0
    %2272 = vmatpush1.bf16.msra.mxu0 %v272
    %2273 = vmatprep.subr.bf16.mxu0 0
    %2274 = vmatpush1.bf16.msra.mxu0 %v271
    %2275 = vmatprep.subr.bf16.mxu0 0
    %2276 = vmatpush1.bf16.msra.mxu0 %v270
    %2277 = vmatprep.subr.bf16.mxu0 0
    %2278 = vmatpush1.bf16.msra.mxu0 %v269
    %2279 = vmatprep.subr.bf16.mxu0 0
    %2280 = vmatpush1.bf16.msra.mxu0 %v268
    %2281 = vmatprep.subr.bf16.mxu0 0
    %2282 = vmatpush1.bf16.msra.mxu0 %v267
    %2283 = vmatprep.subr.bf16.mxu0 0
    %2284 = vmatpush1.bf16.msra.mxu0 %v266
    %2285 = vmatprep.subr.bf16.mxu0 0
    %2286 = vmatpush2.bf16.msra.mxu0 0
    %2287 = vmatprep.subr.bf16.mxu0 0
    %2288 = vmatpush2.bf16.msra.mxu0 0
    %2289 = vmatprep.subr.bf16.mxu0 0
    %2290 = vmatpush2.bf16.msra.mxu0 0
    %2291 = vmatprep.subr.bf16.mxu0 0
    %2292 = vmatpush2.bf16.msra.mxu0 0
    %2293 = vmatprep.subr.bf16.mxu0 0
    %2294 = vmatpush2.bf16.msra.mxu0 0
    %2295 = vmatprep.subr.bf16.mxu0 0
    %2296 = vmatpush2.bf16.msra.mxu0 0
    %2297 = vmatprep.subr.bf16.mxu0 0
    %2298 = vmatpush2.bf16.msra.mxu0 0
    %2299 = vmatprep.subr.bf16.mxu0 0
    %2300 = vmatpush2.bf16.msra.mxu0 0
    %2301 = vmatprep.mubr.bf16.mxu0 0
    %2302 = vmatmul.mubr.bf16.gmra.mxu0 %v2193
    %v2303 = vpop.f32.mrf.mxu0
    %v2304 = vadd.f32 %v70, %v2303
    %v2305 = vpop.f32.mrf.mxu0
    %v2306 = vpop.f32.mrf.mxu0
    %v2307 = vadd.f32 %v70, %v2306
    %v2308 = vpop.f32.mrf.mxu0
    %2309 = vdwg.mxu0
    %v2310 = vmul.f32 %v2247, %v2304
    %v2311 = vmul.f32 %v2248, %v2307
    %v2312 = vadd.f32 %v2267, %v2310
    %v2313 = vadd.f32 %v2268, %v2311
    %v2314 = vtanh.pop %v2312
    %v2315 = vtanh.pop %v2313
    %v2316 = vsub.f32 %v2186, %v2314
    %v2317 = vsub.f32 %v2187, %v2315
    %v2318 = vmul.f32 %v2265, %v2316
    %v2319 = vmul.f32 %v2266, %v2317
    %v2320 = vadd.f32 %v2314, %v2318
    %v2321 = vadd.f32 %v2315, %v2319
    %s2322 = sadd.s32 %s64, 7
    %v2323 = vstv %s2322
    %vm2324 = vcmp.lt.s32.totalorder %v2323, %v62
    %vm2325 = vcmp.lt.s32.totalorder %v2323, %v63
    %v2326 = vsel %vm2324, 1, 0
    %v2327 = vsel %vm2325, 1, 0
    %2328 = vset.pattern.permute.xlu0 0
    %2329 = vperm.xlu0 %2328, %v2326
    %v2330 = vpop.permute.xlu0 %2329
    %2331 = vset.pattern.permute.xlu0 0
    %2332 = vperm.xlu0 %2331, %v2327
    %v2333 = vpop.permute.xlu0 %2332
    %vm2334 = vcmp.eq.s32.totalorder %v2330, 1
    %vm2335 = vcmp.eq.s32.totalorder %v2333, 1
    %v2336 = vsel %vm2334, %v2320, 0.0
    %v2337 = vsel %vm2335, %v2321, 0.0
    %v2340 = vcombine.high %v2336, %v2336
    %v2342 = vunpack.c.l.s4 1966171168
    %v2343 = vunpack.c.0.s8 %v2342
    %v2344 = vlaneseq
    %v2345 = vshrl.u32 %v2344, 7
    %v2346 = vsub.s32 %v2343, %v2345
    %v2347 = vrot.slane %v2336, %v2346
    %v2349 = vunpack.c.l.s4 1966171168
    %v2350 = vunpack.c.0.s8 %v2349
    %v2351 = vlaneseq
    %v2352 = vshrl.u32 %v2351, 7
    %v2353 = vsub.s32 %v2350, %v2352
    %v2354 = vrot.slane %v2340, %v2353
    %v2355 = vcombine.high %v2347, %v2347
    %v2356 = vcombine.high %v2354, %v2354
    %v2358 = vunpack.c.l.s4 1966171168
    %v2359 = vunpack.c.0.s8 %v2358
    %v2360 = vlaneseq
    %v2361 = vshrl.u32 %v2360, 7
    %v2362 = vsub.s32 %v2359, %v2361
    %v2363 = vrot.slane %v2347, %v2362
    %v2365 = vunpack.c.l.s4 1966171168
    %v2366 = vunpack.c.0.s8 %v2365
    %v2367 = vlaneseq
    %v2368 = vshrl.u32 %v2367, 7
    %v2369 = vsub.s32 %v2366, %v2368
    %v2370 = vrot.slane %v2354, %v2369
    %v2372 = vunpack.c.l.s4 1966171168
    %v2373 = vunpack.c.0.s8 %v2372
    %v2374 = vlaneseq
    %v2375 = vshrl.u32 %v2374, 7
    %v2376 = vsub.s32 %v2373, %v2375
    %v2377 = vrot.slane %v2355, %v2376
    %v2379 = vunpack.c.l.s4 1966171168
    %v2380 = vunpack.c.0.s8 %v2379
    %v2381 = vlaneseq
    %v2382 = vshrl.u32 %v2381, 7
    %v2383 = vsub.s32 %v2380, %v2382
    %v2384 = vrot.slane %v2356, %v2383
    %v2385 = vcombine.high %v2363, %v2363
    %v2386 = vcombine.high %v2370, %v2370
    %v2387 = vcombine.high %v2377, %v2377
    %v2388 = vcombine.high %v2384, %v2384
    %v2389 = vcombine.high %v2337, %v2337
    %v2391 = vunpack.c.l.s4 1966171168
    %v2392 = vunpack.c.0.s8 %v2391
    %v2393 = vlaneseq
    %v2394 = vshrl.u32 %v2393, 7
    %v2395 = vsub.s32 %v2392, %v2394
    %v2396 = vrot.slane %v2337, %v2395
    %v2398 = vunpack.c.l.s4 1966171168
    %v2399 = vunpack.c.0.s8 %v2398
    %v2400 = vlaneseq
    %v2401 = vshrl.u32 %v2400, 7
    %v2402 = vsub.s32 %v2399, %v2401
    %v2403 = vrot.slane %v2389, %v2402
    %v2404 = vcombine.high %v2396, %v2396
    %v2405 = vcombine.high %v2403, %v2403
    %v2407 = vunpack.c.l.s4 1966171168
    %v2408 = vunpack.c.0.s8 %v2407
    %v2409 = vlaneseq
    %v2410 = vshrl.u32 %v2409, 7
    %v2411 = vsub.s32 %v2408, %v2410
    %v2412 = vrot.slane %v2396, %v2411
    %v2414 = vunpack.c.l.s4 1966171168
    %v2415 = vunpack.c.0.s8 %v2414
    %v2416 = vlaneseq
    %v2417 = vshrl.u32 %v2416, 7
    %v2418 = vsub.s32 %v2415, %v2417
    %v2419 = vrot.slane %v2403, %v2418
    %v2421 = vunpack.c.l.s4 1966171168
    %v2422 = vunpack.c.0.s8 %v2421
    %v2423 = vlaneseq
    %v2424 = vshrl.u32 %v2423, 7
    %v2425 = vsub.s32 %v2422, %v2424
    %v2426 = vrot.slane %v2404, %v2425
    %v2428 = vunpack.c.l.s4 1966171168
    %v2429 = vunpack.c.0.s8 %v2428
    %v2430 = vlaneseq
    %v2431 = vshrl.u32 %v2430, 7
    %v2432 = vsub.s32 %v2429, %v2431
    %v2433 = vrot.slane %v2405, %v2432
    %v2434 = vcombine.high %v2412, %v2412
    %v2435 = vcombine.high %v2419, %v2419
    %v2436 = vcombine.high %v2426, %v2426
    %v2437 = vcombine.high %v2433, %v2433
    %2454 = vst [vmem:[%s5 + $0x7] sm:$0x1] %v2363
    %2455 = vst [vmem:[%s5 + $0x17] sm:$0x1] %v2377
    %2456 = vst [vmem:[%s5 + $0x27] sm:$0x1] %v2385
    %2457 = vst [vmem:[%s5 + $0x37] sm:$0x1] %v2387
    %2458 = vst [vmem:[%s5 + $0x47] sm:$0x1] %v2370
    %2459 = vst [vmem:[%s5 + $0x57] sm:$0x1] %v2384
    %2460 = vst [vmem:[%s5 + $0x67] sm:$0x1] %v2386
    %2461 = vst [vmem:[%s5 + $0x77] sm:$0x1] %v2388
    %2462 = vst [vmem:[%s5 + $0x87] sm:$0x1] %v2412
    %2463 = vst [vmem:[%s5 + $0x97] sm:$0x1] %v2426
    %2464 = vst [vmem:[%s5 + $0xa7] sm:$0x1] %v2434
    %2465 = vst [vmem:[%s5 + $0xb7] sm:$0x1] %v2436
    %2466 = vst [vmem:[%s5 + $0xc7] sm:$0x1] %v2419
    %2467 = vst [vmem:[%s5 + $0xd7] sm:$0x1] %v2433
    %2468 = vst [vmem:[%s5 + $0xe7] sm:$0x1] %v2435
    %2469 = vst [vmem:[%s5 + $0xf7] sm:$0x1] %v2437
    %v2470 = vsel %vm2334, %v2320, %v2186
    %v2471 = vsel %vm2335, %v2321, %v2187
    %s2472 = scalar_lea.vmem %s1, 192
    %v2473 = vld [vmem:[%s2472] sm:$0xff]
    %v2474 = vld [vmem:[%s2472 + $0x8] sm:$0xf]
    %v2475 = vld [vmem:[%s2472 + $0xc] sm:$0xff]
    %v2476 = vld [vmem:[%s2472 + $0x14] sm:$0xf]
    %v2477 = vpack.c.bf16 %v2471, %v2470
    %2478 = vmatprep.subr.bf16.mxu0 %v142
    %2479 = vmatpush1.bf16.msra.mxu0 %v141
    %2480 = vmatprep.subr.bf16.mxu0 %v140
    %2481 = vmatpush1.bf16.msra.mxu0 %v139
    %2482 = vmatprep.subr.bf16.mxu0 %v138
    %2483 = vmatpush1.bf16.msra.mxu0 %v137
    %2484 = vmatprep.subr.bf16.mxu0 %v136
    %2485 = vmatpush1.bf16.msra.mxu0 %v135
    %2486 = vmatprep.subr.bf16.mxu0 %v134
    %2487 = vmatpush1.bf16.msra.mxu0 %v133
    %2488 = vmatprep.subr.bf16.mxu0 %v132
    %2489 = vmatpush1.bf16.msra.mxu0 %v131
    %2490 = vmatprep.subr.bf16.mxu0 %v130
    %2491 = vmatpush1.bf16.msra.mxu0 %v129
    %2492 = vmatprep.subr.bf16.mxu0 %v128
    %2493 = vmatpush1.bf16.msra.mxu0 %v127
    %2494 = vmatprep.subr.bf16.mxu0 0
    %2495 = vmatpush2.bf16.msra.mxu0 0
    %2496 = vmatprep.subr.bf16.mxu0 0
    %2497 = vmatpush2.bf16.msra.mxu0 0
    %2498 = vmatprep.subr.bf16.mxu0 0
    %2499 = vmatpush2.bf16.msra.mxu0 0
    %2500 = vmatprep.subr.bf16.mxu0 0
    %2501 = vmatpush2.bf16.msra.mxu0 0
    %2502 = vmatprep.subr.bf16.mxu0 0
    %2503 = vmatpush2.bf16.msra.mxu0 0
    %2504 = vmatprep.subr.bf16.mxu0 0
    %2505 = vmatpush2.bf16.msra.mxu0 0
    %2506 = vmatprep.subr.bf16.mxu0 0
    %2507 = vmatpush2.bf16.msra.mxu0 0
    %2508 = vmatprep.subr.bf16.mxu0 0
    %2509 = vmatpush2.bf16.msra.mxu0 0
    %2510 = vmatprep.mubr.bf16.mxu0 0
    %2511 = vmatmul.mubr.bf16.gmra.mxu0 %v2477
    %v2512 = vpop.f32.mrf.mxu0
    %v2513 = vadd.f32 0.0, %v2512
    %v2514 = vpop.f32.mrf.mxu0
    %v2515 = vadd.f32 0.0, %v2514
    %v2516 = vpop.f32.mrf.mxu0
    %v2517 = vadd.f32 0.0, %v2516
    %v2518 = vpop.f32.mrf.mxu0
    %v2519 = vadd.f32 0.0, %v2518
    %2520 = vdwg.mxu0
    %v2521 = vunpack.c.l.bf16 %v2473
    %v2522 = vunpack.c.l.bf16 %v2475
    %v2523 = vadd.f32 %v2521, %v2513
    %v2524 = vadd.f32 %v2522, %v2517
    %v2525 = vmul.f32 %v2523, 0.5
    %v2526 = vmul.f32 %v2524, 0.5
    %v2527 = vtanh.pop %v2525
    %v2528 = vtanh.pop %v2526
    %v2529 = vmul.f32 %v2527, 0.5
    %v2530 = vmul.f32 %v2528, 0.5
    %v2531 = vadd.f32 %v2529, 0.5
    %v2532 = vadd.f32 %v2530, 0.5
    %v2535 = vrot.slane %v2473, 4
    %v2536 = vrot.slane %v2475, 4
    %v2539 = vunpack.c.l.bf16 %v2535
    %v2540 = vunpack.c.l.bf16 %v2536
    %v2541 = vadd.f32 %v2539, %v2515
    %v2542 = vadd.f32 %v2540, %v2519
    %v2543 = vmul.f32 %v2541, 0.5
    %v2544 = vmul.f32 %v2542, 0.5
    %v2545 = vtanh.pop %v2543
    %v2546 = vtanh.pop %v2544
    %v2547 = vmul.f32 %v2545, 0.5
    %v2548 = vmul.f32 %v2546, 0.5
    %v2549 = vadd.f32 %v2547, 0.5
    %v2550 = vadd.f32 %v2548, 0.5
    %v2551 = vunpack.c.l.bf16 %v2474
    %v2552 = vunpack.c.l.bf16 %v2476
    %2553 = vmatprep.subr.bf16.mxu0 0
    %2554 = vmatpush1.bf16.msra.mxu0 %v273
    %2555 = vmatprep.subr.bf16.mxu0 0
    %2556 = vmatpush1.bf16.msra.mxu0 %v272
    %2557 = vmatprep.subr.bf16.mxu0 0
    %2558 = vmatpush1.bf16.msra.mxu0 %v271
    %2559 = vmatprep.subr.bf16.mxu0 0
    %2560 = vmatpush1.bf16.msra.mxu0 %v270
    %2561 = vmatprep.subr.bf16.mxu0 0
    %2562 = vmatpush1.bf16.msra.mxu0 %v269
    %2563 = vmatprep.subr.bf16.mxu0 0
    %2564 = vmatpush1.bf16.msra.mxu0 %v268
    %2565 = vmatprep.subr.bf16.mxu0 0
    %2566 = vmatpush1.bf16.msra.mxu0 %v267
    %2567 = vmatprep.subr.bf16.mxu0 0
    %2568 = vmatpush1.bf16.msra.mxu0 %v266
    %2569 = vmatprep.subr.bf16.mxu0 0
    %2570 = vmatpush2.bf16.msra.mxu0 0
    %2571 = vmatprep.subr.bf16.mxu0 0
    %2572 = vmatpush2.bf16.msra.mxu0 0
    %2573 = vmatprep.subr.bf16.mxu0 0
    %2574 = vmatpush2.bf16.msra.mxu0 0
    %2575 = vmatprep.subr.bf16.mxu0 0
    %2576 = vmatpush2.bf16.msra.mxu0 0
    %2577 = vmatprep.subr.bf16.mxu0 0
    %2578 = vmatpush2.bf16.msra.mxu0 0
    %2579 = vmatprep.subr.bf16.mxu0 0
    %2580 = vmatpush2.bf16.msra.mxu0 0
    %2581 = vmatprep.subr.bf16.mxu0 0
    %2582 = vmatpush2.bf16.msra.mxu0 0
    %2583 = vmatprep.subr.bf16.mxu0 0
    %2584 = vmatpush2.bf16.msra.mxu0 0
    %2585 = vmatprep.mubr.bf16.mxu0 0
    %2586 = vmatmul.mubr.bf16.gmra.mxu0 %v2477
    %v2587 = vpop.f32.mrf.mxu0
    %v2588 = vadd.f32 %v70, %v2587
    %v2589 = vpop.f32.mrf.mxu0
    %v2590 = vpop.f32.mrf.mxu0
    %v2591 = vadd.f32 %v70, %v2590
    %v2592 = vpop.f32.mrf.mxu0
    %2593 = vdwg.mxu0
    %v2594 = vmul.f32 %v2531, %v2588
    %v2595 = vmul.f32 %v2532, %v2591
    %v2596 = vadd.f32 %v2551, %v2594
    %v2597 = vadd.f32 %v2552, %v2595
    %v2598 = vtanh.pop %v2596
    %v2599 = vtanh.pop %v2597
    %v2600 = vsub.f32 %v2470, %v2598
    %v2601 = vsub.f32 %v2471, %v2599
    %v2602 = vmul.f32 %v2549, %v2600
    %v2603 = vmul.f32 %v2550, %v2601
    %v2604 = vadd.f32 %v2598, %v2602
    %v2605 = vadd.f32 %v2599, %v2603
    %s2606 = sadd.s32 %s64, 8
    %v2607 = vstv %s2606
    %vm2608 = vcmp.lt.s32.totalorder %v2607, %v62
    %vm2609 = vcmp.lt.s32.totalorder %v2607, %v63
    %v2610 = vsel %vm2608, 1, 0
    %v2611 = vsel %vm2609, 1, 0
    %2612 = vset.pattern.permute.xlu0 0
    %2613 = vperm.xlu0 %2612, %v2610
    %v2614 = vpop.permute.xlu0 %2613
    %2615 = vset.pattern.permute.xlu0 0
    %2616 = vperm.xlu0 %2615, %v2611
    %v2617 = vpop.permute.xlu0 %2616
    %vm2618 = vcmp.eq.s32.totalorder %v2614, 1
    %vm2619 = vcmp.eq.s32.totalorder %v2617, 1
    %v2620 = vsel %vm2618, %v2604, 0.0
    %v2621 = vsel %vm2619, %v2605, 0.0
    %v2624 = vcombine.high %v2620, %v2620
    %v2626 = vunpack.c.l.s4 1966171168
    %v2627 = vunpack.c.0.s8 %v2626
    %v2628 = vlaneseq
    %v2629 = vshrl.u32 %v2628, 7
    %v2630 = vsub.s32 %v2627, %v2629
    %v2631 = vrot.slane %v2620, %v2630
    %v2633 = vunpack.c.l.s4 1966171168
    %v2634 = vunpack.c.0.s8 %v2633
    %v2635 = vlaneseq
    %v2636 = vshrl.u32 %v2635, 7
    %v2637 = vsub.s32 %v2634, %v2636
    %v2638 = vrot.slane %v2624, %v2637
    %v2639 = vcombine.high %v2631, %v2631
    %v2640 = vcombine.high %v2638, %v2638
    %v2642 = vunpack.c.l.s4 1966171168
    %v2643 = vunpack.c.0.s8 %v2642
    %v2644 = vlaneseq
    %v2645 = vshrl.u32 %v2644, 7
    %v2646 = vsub.s32 %v2643, %v2645
    %v2647 = vrot.slane %v2631, %v2646
    %v2649 = vunpack.c.l.s4 1966171168
    %v2650 = vunpack.c.0.s8 %v2649
    %v2651 = vlaneseq
    %v2652 = vshrl.u32 %v2651, 7
    %v2653 = vsub.s32 %v2650, %v2652
    %v2654 = vrot.slane %v2638, %v2653
    %v2656 = vunpack.c.l.s4 1966171168
    %v2657 = vunpack.c.0.s8 %v2656
    %v2658 = vlaneseq
    %v2659 = vshrl.u32 %v2658, 7
    %v2660 = vsub.s32 %v2657, %v2659
    %v2661 = vrot.slane %v2639, %v2660
    %v2663 = vunpack.c.l.s4 1966171168
    %v2664 = vunpack.c.0.s8 %v2663
    %v2665 = vlaneseq
    %v2666 = vshrl.u32 %v2665, 7
    %v2667 = vsub.s32 %v2664, %v2666
    %v2668 = vrot.slane %v2640, %v2667
    %v2669 = vcombine.high %v2647, %v2647
    %v2670 = vcombine.high %v2654, %v2654
    %v2671 = vcombine.high %v2661, %v2661
    %v2672 = vcombine.high %v2668, %v2668
    %v2673 = vcombine.high %v2621, %v2621
    %v2675 = vunpack.c.l.s4 1966171168
    %v2676 = vunpack.c.0.s8 %v2675
    %v2677 = vlaneseq
    %v2678 = vshrl.u32 %v2677, 7
    %v2679 = vsub.s32 %v2676, %v2678
    %v2680 = vrot.slane %v2621, %v2679
    %v2682 = vunpack.c.l.s4 1966171168
    %v2683 = vunpack.c.0.s8 %v2682
    %v2684 = vlaneseq
    %v2685 = vshrl.u32 %v2684, 7
    %v2686 = vsub.s32 %v2683, %v2685
    %v2687 = vrot.slane %v2673, %v2686
    %v2688 = vcombine.high %v2680, %v2680
    %v2689 = vcombine.high %v2687, %v2687
    %v2691 = vunpack.c.l.s4 1966171168
    %v2692 = vunpack.c.0.s8 %v2691
    %v2693 = vlaneseq
    %v2694 = vshrl.u32 %v2693, 7
    %v2695 = vsub.s32 %v2692, %v2694
    %v2696 = vrot.slane %v2680, %v2695
    %v2698 = vunpack.c.l.s4 1966171168
    %v2699 = vunpack.c.0.s8 %v2698
    %v2700 = vlaneseq
    %v2701 = vshrl.u32 %v2700, 7
    %v2702 = vsub.s32 %v2699, %v2701
    %v2703 = vrot.slane %v2687, %v2702
    %v2705 = vunpack.c.l.s4 1966171168
    %v2706 = vunpack.c.0.s8 %v2705
    %v2707 = vlaneseq
    %v2708 = vshrl.u32 %v2707, 7
    %v2709 = vsub.s32 %v2706, %v2708
    %v2710 = vrot.slane %v2688, %v2709
    %v2712 = vunpack.c.l.s4 1966171168
    %v2713 = vunpack.c.0.s8 %v2712
    %v2714 = vlaneseq
    %v2715 = vshrl.u32 %v2714, 7
    %v2716 = vsub.s32 %v2713, %v2715
    %v2717 = vrot.slane %v2689, %v2716
    %v2718 = vcombine.high %v2696, %v2696
    %v2719 = vcombine.high %v2703, %v2703
    %v2720 = vcombine.high %v2710, %v2710
    %v2721 = vcombine.high %v2717, %v2717
    %2738 = vst [vmem:[%s5 + $0x8] sm:$0x1] %v2647
    %2739 = vst [vmem:[%s5 + $0x18] sm:$0x1] %v2661
    %2740 = vst [vmem:[%s5 + $0x28] sm:$0x1] %v2669
    %2741 = vst [vmem:[%s5 + $0x38] sm:$0x1] %v2671
    %2742 = vst [vmem:[%s5 + $0x48] sm:$0x1] %v2654
    %2743 = vst [vmem:[%s5 + $0x58] sm:$0x1] %v2668
    %2744 = vst [vmem:[%s5 + $0x68] sm:$0x1] %v2670
    %2745 = vst [vmem:[%s5 + $0x78] sm:$0x1] %v2672
    %2746 = vst [vmem:[%s5 + $0x88] sm:$0x1] %v2696
    %2747 = vst [vmem:[%s5 + $0x98] sm:$0x1] %v2710
    %2748 = vst [vmem:[%s5 + $0xa8] sm:$0x1] %v2718
    %2749 = vst [vmem:[%s5 + $0xb8] sm:$0x1] %v2720
    %2750 = vst [vmem:[%s5 + $0xc8] sm:$0x1] %v2703
    %2751 = vst [vmem:[%s5 + $0xd8] sm:$0x1] %v2717
    %2752 = vst [vmem:[%s5 + $0xe8] sm:$0x1] %v2719
    %2753 = vst [vmem:[%s5 + $0xf8] sm:$0x1] %v2721
    %v2754 = vsel %vm2618, %v2604, %v2470
    %v2755 = vsel %vm2619, %v2605, %v2471
    %s2756 = scalar_lea.vmem %s1, 216
    %v2757 = vld [vmem:[%s2756] sm:$0xff]
    %v2758 = vld [vmem:[%s2756 + $0x8] sm:$0xf]
    %v2759 = vld [vmem:[%s2756 + $0xc] sm:$0xff]
    %v2760 = vld [vmem:[%s2756 + $0x14] sm:$0xf]
    %v2761 = vpack.c.bf16 %v2755, %v2754
    %2762 = vmatprep.subr.bf16.mxu0 %v142
    %2763 = vmatpush1.bf16.msra.mxu0 %v141
    %2764 = vmatprep.subr.bf16.mxu0 %v140
    %2765 = vmatpush1.bf16.msra.mxu0 %v139
    %2766 = vmatprep.subr.bf16.mxu0 %v138
    %2767 = vmatpush1.bf16.msra.mxu0 %v137
    %2768 = vmatprep.subr.bf16.mxu0 %v136
    %2769 = vmatpush1.bf16.msra.mxu0 %v135
    %2770 = vmatprep.subr.bf16.mxu0 %v134
    %2771 = vmatpush1.bf16.msra.mxu0 %v133
    %2772 = vmatprep.subr.bf16.mxu0 %v132
    %2773 = vmatpush1.bf16.msra.mxu0 %v131
    %2774 = vmatprep.subr.bf16.mxu0 %v130
    %2775 = vmatpush1.bf16.msra.mxu0 %v129
    %2776 = vmatprep.subr.bf16.mxu0 %v128
    %2777 = vmatpush1.bf16.msra.mxu0 %v127
    %2778 = vmatprep.subr.bf16.mxu0 0
    %2779 = vmatpush2.bf16.msra.mxu0 0
    %2780 = vmatprep.subr.bf16.mxu0 0
    %2781 = vmatpush2.bf16.msra.mxu0 0
    %2782 = vmatprep.subr.bf16.mxu0 0
    %2783 = vmatpush2.bf16.msra.mxu0 0
    %2784 = vmatprep.subr.bf16.mxu0 0
    %2785 = vmatpush2.bf16.msra.mxu0 0
    %2786 = vmatprep.subr.bf16.mxu0 0
    %2787 = vmatpush2.bf16.msra.mxu0 0
    %2788 = vmatprep.subr.bf16.mxu0 0
    %2789 = vmatpush2.bf16.msra.mxu0 0
    %2790 = vmatprep.subr.bf16.mxu0 0
    %2791 = vmatpush2.bf16.msra.mxu0 0
    %2792 = vmatprep.subr.bf16.mxu0 0
    %2793 = vmatpush2.bf16.msra.mxu0 0
    %2794 = vmatprep.mubr.bf16.mxu0 0
    %2795 = vmatmul.mubr.bf16.gmra.mxu0 %v2761
    %v2796 = vpop.f32.mrf.mxu0
    %v2797 = vadd.f32 0.0, %v2796
    %v2798 = vpop.f32.mrf.mxu0
    %v2799 = vadd.f32 0.0, %v2798
    %v2800 = vpop.f32.mrf.mxu0
    %v2801 = vadd.f32 0.0, %v2800
    %v2802 = vpop.f32.mrf.mxu0
    %v2803 = vadd.f32 0.0, %v2802
    %2804 = vdwg.mxu0
    %v2805 = vunpack.c.l.bf16 %v2757
    %v2806 = vunpack.c.l.bf16 %v2759
    %v2807 = vadd.f32 %v2805, %v2797
    %v2808 = vadd.f32 %v2806, %v2801
    %v2809 = vmul.f32 %v2807, 0.5
    %v2810 = vmul.f32 %v2808, 0.5
    %v2811 = vtanh.pop %v2809
    %v2812 = vtanh.pop %v2810
    %v2813 = vmul.f32 %v2811, 0.5
    %v2814 = vmul.f32 %v2812, 0.5
    %v2815 = vadd.f32 %v2813, 0.5
    %v2816 = vadd.f32 %v2814, 0.5
    %v2819 = vrot.slane %v2757, 4
    %v2820 = vrot.slane %v2759, 4
    %v2823 = vunpack.c.l.bf16 %v2819
    %v2824 = vunpack.c.l.bf16 %v2820
    %v2825 = vadd.f32 %v2823, %v2799
    %v2826 = vadd.f32 %v2824, %v2803
    %v2827 = vmul.f32 %v2825, 0.5
    %v2828 = vmul.f32 %v2826, 0.5
    %v2829 = vtanh.pop %v2827
    %v2830 = vtanh.pop %v2828
    %v2831 = vmul.f32 %v2829, 0.5
    %v2832 = vmul.f32 %v2830, 0.5
    %v2833 = vadd.f32 %v2831, 0.5
    %v2834 = vadd.f32 %v2832, 0.5
    %v2835 = vunpack.c.l.bf16 %v2758
    %v2836 = vunpack.c.l.bf16 %v2760
    %2837 = vmatprep.subr.bf16.mxu0 0
    %2838 = vmatpush1.bf16.msra.mxu0 %v273
    %2839 = vmatprep.subr.bf16.mxu0 0
    %2840 = vmatpush1.bf16.msra.mxu0 %v272
    %2841 = vmatprep.subr.bf16.mxu0 0
    %2842 = vmatpush1.bf16.msra.mxu0 %v271
    %2843 = vmatprep.subr.bf16.mxu0 0
    %2844 = vmatpush1.bf16.msra.mxu0 %v270
    %2845 = vmatprep.subr.bf16.mxu0 0
    %2846 = vmatpush1.bf16.msra.mxu0 %v269
    %2847 = vmatprep.subr.bf16.mxu0 0
    %2848 = vmatpush1.bf16.msra.mxu0 %v268
    %2849 = vmatprep.subr.bf16.mxu0 0
    %2850 = vmatpush1.bf16.msra.mxu0 %v267
    %2851 = vmatprep.subr.bf16.mxu0 0
    %2852 = vmatpush1.bf16.msra.mxu0 %v266
    %2853 = vmatprep.subr.bf16.mxu0 0
    %2854 = vmatpush2.bf16.msra.mxu0 0
    %2855 = vmatprep.subr.bf16.mxu0 0
    %2856 = vmatpush2.bf16.msra.mxu0 0
    %2857 = vmatprep.subr.bf16.mxu0 0
    %2858 = vmatpush2.bf16.msra.mxu0 0
    %2859 = vmatprep.subr.bf16.mxu0 0
    %2860 = vmatpush2.bf16.msra.mxu0 0
    %2861 = vmatprep.subr.bf16.mxu0 0
    %2862 = vmatpush2.bf16.msra.mxu0 0
    %2863 = vmatprep.subr.bf16.mxu0 0
    %2864 = vmatpush2.bf16.msra.mxu0 0
    %2865 = vmatprep.subr.bf16.mxu0 0
    %2866 = vmatpush2.bf16.msra.mxu0 0
    %2867 = vmatprep.subr.bf16.mxu0 0
    %2868 = vmatpush2.bf16.msra.mxu0 0
    %2869 = vmatprep.mubr.bf16.mxu0 0
    %2870 = vmatmul.mubr.bf16.gmra.mxu0 %v2761
    %v2871 = vpop.f32.mrf.mxu0
    %v2872 = vadd.f32 %v70, %v2871
    %v2873 = vpop.f32.mrf.mxu0
    %v2874 = vpop.f32.mrf.mxu0
    %v2875 = vadd.f32 %v70, %v2874
    %v2876 = vpop.f32.mrf.mxu0
    %2877 = vdwg.mxu0
    %v2878 = vmul.f32 %v2815, %v2872
    %v2879 = vmul.f32 %v2816, %v2875
    %v2880 = vadd.f32 %v2835, %v2878
    %v2881 = vadd.f32 %v2836, %v2879
    %v2882 = vtanh.pop %v2880
    %v2883 = vtanh.pop %v2881
    %v2884 = vsub.f32 %v2754, %v2882
    %v2885 = vsub.f32 %v2755, %v2883
    %v2886 = vmul.f32 %v2833, %v2884
    %v2887 = vmul.f32 %v2834, %v2885
    %v2888 = vadd.f32 %v2882, %v2886
    %v2889 = vadd.f32 %v2883, %v2887
    %s2890 = sadd.s32 %s64, 9
    %v2891 = vstv %s2890
    %vm2892 = vcmp.lt.s32.totalorder %v2891, %v62
    %vm2893 = vcmp.lt.s32.totalorder %v2891, %v63
    %v2894 = vsel %vm2892, 1, 0
    %v2895 = vsel %vm2893, 1, 0
    %2896 = vset.pattern.permute.xlu0 0
    %2897 = vperm.xlu0 %2896, %v2894
    %v2898 = vpop.permute.xlu0 %2897
    %2899 = vset.pattern.permute.xlu0 0
    %2900 = vperm.xlu0 %2899, %v2895
    %v2901 = vpop.permute.xlu0 %2900
    %vm2902 = vcmp.eq.s32.totalorder %v2898, 1
    %vm2903 = vcmp.eq.s32.totalorder %v2901, 1
    %v2904 = vsel %vm2902, %v2888, 0.0
    %v2905 = vsel %vm2903, %v2889, 0.0
    %v2908 = vcombine.high %v2904, %v2904
    %v2910 = vunpack.c.l.s4 1966171168
    %v2911 = vunpack.c.0.s8 %v2910
    %v2912 = vlaneseq
    %v2913 = vshrl.u32 %v2912, 7
    %v2914 = vsub.s32 %v2911, %v2913
    %v2915 = vrot.slane %v2904, %v2914
    %v2917 = vunpack.c.l.s4 1966171168
    %v2918 = vunpack.c.0.s8 %v2917
    %v2919 = vlaneseq
    %v2920 = vshrl.u32 %v2919, 7
    %v2921 = vsub.s32 %v2918, %v2920
    %v2922 = vrot.slane %v2908, %v2921
    %v2923 = vcombine.high %v2915, %v2915
    %v2924 = vcombine.high %v2922, %v2922
    %v2926 = vunpack.c.l.s4 1966171168
    %v2927 = vunpack.c.0.s8 %v2926
    %v2928 = vlaneseq
    %v2929 = vshrl.u32 %v2928, 7
    %v2930 = vsub.s32 %v2927, %v2929
    %v2931 = vrot.slane %v2915, %v2930
    %v2933 = vunpack.c.l.s4 1966171168
    %v2934 = vunpack.c.0.s8 %v2933
    %v2935 = vlaneseq
    %v2936 = vshrl.u32 %v2935, 7
    %v2937 = vsub.s32 %v2934, %v2936
    %v2938 = vrot.slane %v2922, %v2937
    %v2940 = vunpack.c.l.s4 1966171168
    %v2941 = vunpack.c.0.s8 %v2940
    %v2942 = vlaneseq
    %v2943 = vshrl.u32 %v2942, 7
    %v2944 = vsub.s32 %v2941, %v2943
    %v2945 = vrot.slane %v2923, %v2944
    %v2947 = vunpack.c.l.s4 1966171168
    %v2948 = vunpack.c.0.s8 %v2947
    %v2949 = vlaneseq
    %v2950 = vshrl.u32 %v2949, 7
    %v2951 = vsub.s32 %v2948, %v2950
    %v2952 = vrot.slane %v2924, %v2951
    %v2953 = vcombine.high %v2931, %v2931
    %v2954 = vcombine.high %v2938, %v2938
    %v2955 = vcombine.high %v2945, %v2945
    %v2956 = vcombine.high %v2952, %v2952
    %v2957 = vcombine.high %v2905, %v2905
    %v2959 = vunpack.c.l.s4 1966171168
    %v2960 = vunpack.c.0.s8 %v2959
    %v2961 = vlaneseq
    %v2962 = vshrl.u32 %v2961, 7
    %v2963 = vsub.s32 %v2960, %v2962
    %v2964 = vrot.slane %v2905, %v2963
    %v2966 = vunpack.c.l.s4 1966171168
    %v2967 = vunpack.c.0.s8 %v2966
    %v2968 = vlaneseq
    %v2969 = vshrl.u32 %v2968, 7
    %v2970 = vsub.s32 %v2967, %v2969
    %v2971 = vrot.slane %v2957, %v2970
    %v2972 = vcombine.high %v2964, %v2964
    %v2973 = vcombine.high %v2971, %v2971
    %v2975 = vunpack.c.l.s4 1966171168
    %v2976 = vunpack.c.0.s8 %v2975
    %v2977 = vlaneseq
    %v2978 = vshrl.u32 %v2977, 7
    %v2979 = vsub.s32 %v2976, %v2978
    %v2980 = vrot.slane %v2964, %v2979
    %v2982 = vunpack.c.l.s4 1966171168
    %v2983 = vunpack.c.0.s8 %v2982
    %v2984 = vlaneseq
    %v2985 = vshrl.u32 %v2984, 7
    %v2986 = vsub.s32 %v2983, %v2985
    %v2987 = vrot.slane %v2971, %v2986
    %v2989 = vunpack.c.l.s4 1966171168
    %v2990 = vunpack.c.0.s8 %v2989
    %v2991 = vlaneseq
    %v2992 = vshrl.u32 %v2991, 7
    %v2993 = vsub.s32 %v2990, %v2992
    %v2994 = vrot.slane %v2972, %v2993
    %v2996 = vunpack.c.l.s4 1966171168
    %v2997 = vunpack.c.0.s8 %v2996
    %v2998 = vlaneseq
    %v2999 = vshrl.u32 %v2998, 7
    %v3000 = vsub.s32 %v2997, %v2999
    %v3001 = vrot.slane %v2973, %v3000
    %v3002 = vcombine.high %v2980, %v2980
    %v3003 = vcombine.high %v2987, %v2987
    %v3004 = vcombine.high %v2994, %v2994
    %v3005 = vcombine.high %v3001, %v3001
    %3022 = vst [vmem:[%s5 + $0x9] sm:$0x1] %v2931
    %3023 = vst [vmem:[%s5 + $0x19] sm:$0x1] %v2945
    %3024 = vst [vmem:[%s5 + $0x29] sm:$0x1] %v2953
    %3025 = vst [vmem:[%s5 + $0x39] sm:$0x1] %v2955
    %3026 = vst [vmem:[%s5 + $0x49] sm:$0x1] %v2938
    %3027 = vst [vmem:[%s5 + $0x59] sm:$0x1] %v2952
    %3028 = vst [vmem:[%s5 + $0x69] sm:$0x1] %v2954
    %3029 = vst [vmem:[%s5 + $0x79] sm:$0x1] %v2956
    %3030 = vst [vmem:[%s5 + $0x89] sm:$0x1] %v2980
    %3031 = vst [vmem:[%s5 + $0x99] sm:$0x1] %v2994
    %3032 = vst [vmem:[%s5 + $0xa9] sm:$0x1] %v3002
    %3033 = vst [vmem:[%s5 + $0xb9] sm:$0x1] %v3004
    %3034 = vst [vmem:[%s5 + $0xc9] sm:$0x1] %v2987
    %3035 = vst [vmem:[%s5 + $0xd9] sm:$0x1] %v3001
    %3036 = vst [vmem:[%s5 + $0xe9] sm:$0x1] %v3003
    %3037 = vst [vmem:[%s5 + $0xf9] sm:$0x1] %v3005
    %v3038 = vsel %vm2902, %v2888, %v2754
    %v3039 = vsel %vm2903, %v2889, %v2755
    %s3040 = scalar_lea.vmem %s1, 240
    %v3041 = vld [vmem:[%s3040] sm:$0xff]
    %v3042 = vld [vmem:[%s3040 + $0x8] sm:$0xf]
    %v3043 = vld [vmem:[%s3040 + $0xc] sm:$0xff]
    %v3044 = vld [vmem:[%s3040 + $0x14] sm:$0xf]
    %v3045 = vpack.c.bf16 %v3039, %v3038
    %3046 = vmatprep.subr.bf16.mxu0 %v142
    %3047 = vmatpush1.bf16.msra.mxu0 %v141
    %3048 = vmatprep.subr.bf16.mxu0 %v140
    %3049 = vmatpush1.bf16.msra.mxu0 %v139
    %3050 = vmatprep.subr.bf16.mxu0 %v138
    %3051 = vmatpush1.bf16.msra.mxu0 %v137
    %3052 = vmatprep.subr.bf16.mxu0 %v136
    %3053 = vmatpush1.bf16.msra.mxu0 %v135
    %3054 = vmatprep.subr.bf16.mxu0 %v134
    %3055 = vmatpush1.bf16.msra.mxu0 %v133
    %3056 = vmatprep.subr.bf16.mxu0 %v132
    %3057 = vmatpush1.bf16.msra.mxu0 %v131
    %3058 = vmatprep.subr.bf16.mxu0 %v130
    %3059 = vmatpush1.bf16.msra.mxu0 %v129
    %3060 = vmatprep.subr.bf16.mxu0 %v128
    %3061 = vmatpush1.bf16.msra.mxu0 %v127
    %3062 = vmatprep.subr.bf16.mxu0 0
    %3063 = vmatpush2.bf16.msra.mxu0 0
    %3064 = vmatprep.subr.bf16.mxu0 0
    %3065 = vmatpush2.bf16.msra.mxu0 0
    %3066 = vmatprep.subr.bf16.mxu0 0
    %3067 = vmatpush2.bf16.msra.mxu0 0
    %3068 = vmatprep.subr.bf16.mxu0 0
    %3069 = vmatpush2.bf16.msra.mxu0 0
    %3070 = vmatprep.subr.bf16.mxu0 0
    %3071 = vmatpush2.bf16.msra.mxu0 0
    %3072 = vmatprep.subr.bf16.mxu0 0
    %3073 = vmatpush2.bf16.msra.mxu0 0
    %3074 = vmatprep.subr.bf16.mxu0 0
    %3075 = vmatpush2.bf16.msra.mxu0 0
    %3076 = vmatprep.subr.bf16.mxu0 0
    %3077 = vmatpush2.bf16.msra.mxu0 0
    %3078 = vmatprep.mubr.bf16.mxu0 0
    %3079 = vmatmul.mubr.bf16.gmra.mxu0 %v3045
    %v3080 = vpop.f32.mrf.mxu0
    %v3081 = vadd.f32 0.0, %v3080
    %v3082 = vpop.f32.mrf.mxu0
    %v3083 = vadd.f32 0.0, %v3082
    %v3084 = vpop.f32.mrf.mxu0
    %v3085 = vadd.f32 0.0, %v3084
    %v3086 = vpop.f32.mrf.mxu0
    %v3087 = vadd.f32 0.0, %v3086
    %3088 = vdwg.mxu0
    %v3089 = vunpack.c.l.bf16 %v3041
    %v3090 = vunpack.c.l.bf16 %v3043
    %v3091 = vadd.f32 %v3089, %v3081
    %v3092 = vadd.f32 %v3090, %v3085
    %v3093 = vmul.f32 %v3091, 0.5
    %v3094 = vmul.f32 %v3092, 0.5
    %v3095 = vtanh.pop %v3093
    %v3096 = vtanh.pop %v3094
    %v3097 = vmul.f32 %v3095, 0.5
    %v3098 = vmul.f32 %v3096, 0.5
    %v3099 = vadd.f32 %v3097, 0.5
    %v3100 = vadd.f32 %v3098, 0.5
    %v3103 = vrot.slane %v3041, 4
    %v3104 = vrot.slane %v3043, 4
    %v3107 = vunpack.c.l.bf16 %v3103
    %v3108 = vunpack.c.l.bf16 %v3104
    %v3109 = vadd.f32 %v3107, %v3083
    %v3110 = vadd.f32 %v3108, %v3087
    %v3111 = vmul.f32 %v3109, 0.5
    %v3112 = vmul.f32 %v3110, 0.5
    %v3113 = vtanh.pop %v3111
    %v3114 = vtanh.pop %v3112
    %v3115 = vmul.f32 %v3113, 0.5
    %v3116 = vmul.f32 %v3114, 0.5
    %v3117 = vadd.f32 %v3115, 0.5
    %v3118 = vadd.f32 %v3116, 0.5
    %v3119 = vunpack.c.l.bf16 %v3042
    %v3120 = vunpack.c.l.bf16 %v3044
    %3121 = vmatprep.subr.bf16.mxu0 0
    %3122 = vmatpush1.bf16.msra.mxu0 %v273
    %3123 = vmatprep.subr.bf16.mxu0 0
    %3124 = vmatpush1.bf16.msra.mxu0 %v272
    %3125 = vmatprep.subr.bf16.mxu0 0
    %3126 = vmatpush1.bf16.msra.mxu0 %v271
    %3127 = vmatprep.subr.bf16.mxu0 0
    %3128 = vmatpush1.bf16.msra.mxu0 %v270
    %3129 = vmatprep.subr.bf16.mxu0 0
    %3130 = vmatpush1.bf16.msra.mxu0 %v269
    %3131 = vmatprep.subr.bf16.mxu0 0
    %3132 = vmatpush1.bf16.msra.mxu0 %v268
    %3133 = vmatprep.subr.bf16.mxu0 0
    %3134 = vmatpush1.bf16.msra.mxu0 %v267
    %3135 = vmatprep.subr.bf16.mxu0 0
    %3136 = vmatpush1.bf16.msra.mxu0 %v266
    %3137 = vmatprep.subr.bf16.mxu0 0
    %3138 = vmatpush2.bf16.msra.mxu0 0
    %3139 = vmatprep.subr.bf16.mxu0 0
    %3140 = vmatpush2.bf16.msra.mxu0 0
    %3141 = vmatprep.subr.bf16.mxu0 0
    %3142 = vmatpush2.bf16.msra.mxu0 0
    %3143 = vmatprep.subr.bf16.mxu0 0
    %3144 = vmatpush2.bf16.msra.mxu0 0
    %3145 = vmatprep.subr.bf16.mxu0 0
    %3146 = vmatpush2.bf16.msra.mxu0 0
    %3147 = vmatprep.subr.bf16.mxu0 0
    %3148 = vmatpush2.bf16.msra.mxu0 0
    %3149 = vmatprep.subr.bf16.mxu0 0
    %3150 = vmatpush2.bf16.msra.mxu0 0
    %3151 = vmatprep.subr.bf16.mxu0 0
    %3152 = vmatpush2.bf16.msra.mxu0 0
    %3153 = vmatprep.mubr.bf16.mxu0 0
    %3154 = vmatmul.mubr.bf16.gmra.mxu0 %v3045
    %v3155 = vpop.f32.mrf.mxu0
    %v3156 = vadd.f32 %v70, %v3155
    %v3157 = vpop.f32.mrf.mxu0
    %v3158 = vpop.f32.mrf.mxu0
    %v3159 = vadd.f32 %v70, %v3158
    %v3160 = vpop.f32.mrf.mxu0
    %3161 = vdwg.mxu0
    %v3162 = vmul.f32 %v3099, %v3156
    %v3163 = vmul.f32 %v3100, %v3159
    %v3164 = vadd.f32 %v3119, %v3162
    %v3165 = vadd.f32 %v3120, %v3163
    %v3166 = vtanh.pop %v3164
    %v3167 = vtanh.pop %v3165
    %v3168 = vsub.f32 %v3038, %v3166
    %v3169 = vsub.f32 %v3039, %v3167
    %v3170 = vmul.f32 %v3117, %v3168
    %v3171 = vmul.f32 %v3118, %v3169
    %v3172 = vadd.f32 %v3166, %v3170
    %v3173 = vadd.f32 %v3167, %v3171
    %s3174 = sadd.s32 %s64, 10
    %v3175 = vstv %s3174
    %vm3176 = vcmp.lt.s32.totalorder %v3175, %v62
    %vm3177 = vcmp.lt.s32.totalorder %v3175, %v63
    %v3178 = vsel %vm3176, 1, 0
    %v3179 = vsel %vm3177, 1, 0
    %3180 = vset.pattern.permute.xlu0 0
    %3181 = vperm.xlu0 %3180, %v3178
    %v3182 = vpop.permute.xlu0 %3181
    %3183 = vset.pattern.permute.xlu0 0
    %3184 = vperm.xlu0 %3183, %v3179
    %v3185 = vpop.permute.xlu0 %3184
    %vm3186 = vcmp.eq.s32.totalorder %v3182, 1
    %vm3187 = vcmp.eq.s32.totalorder %v3185, 1
    %v3188 = vsel %vm3186, %v3172, 0.0
    %v3189 = vsel %vm3187, %v3173, 0.0
    %v3192 = vcombine.high %v3188, %v3188
    %v3194 = vunpack.c.l.s4 1966171168
    %v3195 = vunpack.c.0.s8 %v3194
    %v3196 = vlaneseq
    %v3197 = vshrl.u32 %v3196, 7
    %v3198 = vsub.s32 %v3195, %v3197
    %v3199 = vrot.slane %v3188, %v3198
    %v3201 = vunpack.c.l.s4 1966171168
    %v3202 = vunpack.c.0.s8 %v3201
    %v3203 = vlaneseq
    %v3204 = vshrl.u32 %v3203, 7
    %v3205 = vsub.s32 %v3202, %v3204
    %v3206 = vrot.slane %v3192, %v3205
    %v3207 = vcombine.high %v3199, %v3199
    %v3208 = vcombine.high %v3206, %v3206
    %v3210 = vunpack.c.l.s4 1966171168
    %v3211 = vunpack.c.0.s8 %v3210
    %v3212 = vlaneseq
    %v3213 = vshrl.u32 %v3212, 7
    %v3214 = vsub.s32 %v3211, %v3213
    %v3215 = vrot.slane %v3199, %v3214
    %v3217 = vunpack.c.l.s4 1966171168
    %v3218 = vunpack.c.0.s8 %v3217
    %v3219 = vlaneseq
    %v3220 = vshrl.u32 %v3219, 7
    %v3221 = vsub.s32 %v3218, %v3220
    %v3222 = vrot.slane %v3206, %v3221
    %v3224 = vunpack.c.l.s4 1966171168
    %v3225 = vunpack.c.0.s8 %v3224
    %v3226 = vlaneseq
    %v3227 = vshrl.u32 %v3226, 7
    %v3228 = vsub.s32 %v3225, %v3227
    %v3229 = vrot.slane %v3207, %v3228
    %v3231 = vunpack.c.l.s4 1966171168
    %v3232 = vunpack.c.0.s8 %v3231
    %v3233 = vlaneseq
    %v3234 = vshrl.u32 %v3233, 7
    %v3235 = vsub.s32 %v3232, %v3234
    %v3236 = vrot.slane %v3208, %v3235
    %v3237 = vcombine.high %v3215, %v3215
    %v3238 = vcombine.high %v3222, %v3222
    %v3239 = vcombine.high %v3229, %v3229
    %v3240 = vcombine.high %v3236, %v3236
    %v3241 = vcombine.high %v3189, %v3189
    %v3243 = vunpack.c.l.s4 1966171168
    %v3244 = vunpack.c.0.s8 %v3243
    %v3245 = vlaneseq
    %v3246 = vshrl.u32 %v3245, 7
    %v3247 = vsub.s32 %v3244, %v3246
    %v3248 = vrot.slane %v3189, %v3247
    %v3250 = vunpack.c.l.s4 1966171168
    %v3251 = vunpack.c.0.s8 %v3250
    %v3252 = vlaneseq
    %v3253 = vshrl.u32 %v3252, 7
    %v3254 = vsub.s32 %v3251, %v3253
    %v3255 = vrot.slane %v3241, %v3254
    %v3256 = vcombine.high %v3248, %v3248
    %v3257 = vcombine.high %v3255, %v3255
    %v3259 = vunpack.c.l.s4 1966171168
    %v3260 = vunpack.c.0.s8 %v3259
    %v3261 = vlaneseq
    %v3262 = vshrl.u32 %v3261, 7
    %v3263 = vsub.s32 %v3260, %v3262
    %v3264 = vrot.slane %v3248, %v3263
    %v3266 = vunpack.c.l.s4 1966171168
    %v3267 = vunpack.c.0.s8 %v3266
    %v3268 = vlaneseq
    %v3269 = vshrl.u32 %v3268, 7
    %v3270 = vsub.s32 %v3267, %v3269
    %v3271 = vrot.slane %v3255, %v3270
    %v3273 = vunpack.c.l.s4 1966171168
    %v3274 = vunpack.c.0.s8 %v3273
    %v3275 = vlaneseq
    %v3276 = vshrl.u32 %v3275, 7
    %v3277 = vsub.s32 %v3274, %v3276
    %v3278 = vrot.slane %v3256, %v3277
    %v3280 = vunpack.c.l.s4 1966171168
    %v3281 = vunpack.c.0.s8 %v3280
    %v3282 = vlaneseq
    %v3283 = vshrl.u32 %v3282, 7
    %v3284 = vsub.s32 %v3281, %v3283
    %v3285 = vrot.slane %v3257, %v3284
    %v3286 = vcombine.high %v3264, %v3264
    %v3287 = vcombine.high %v3271, %v3271
    %v3288 = vcombine.high %v3278, %v3278
    %v3289 = vcombine.high %v3285, %v3285
    %3306 = vst [vmem:[%s5 + $0xa] sm:$0x1] %v3215
    %3307 = vst [vmem:[%s5 + $0x1a] sm:$0x1] %v3229
    %3308 = vst [vmem:[%s5 + $0x2a] sm:$0x1] %v3237
    %3309 = vst [vmem:[%s5 + $0x3a] sm:$0x1] %v3239
    %3310 = vst [vmem:[%s5 + $0x4a] sm:$0x1] %v3222
    %3311 = vst [vmem:[%s5 + $0x5a] sm:$0x1] %v3236
    %3312 = vst [vmem:[%s5 + $0x6a] sm:$0x1] %v3238
    %3313 = vst [vmem:[%s5 + $0x7a] sm:$0x1] %v3240
    %3314 = vst [vmem:[%s5 + $0x8a] sm:$0x1] %v3264
    %3315 = vst [vmem:[%s5 + $0x9a] sm:$0x1] %v3278
    %3316 = vst [vmem:[%s5 + $0xaa] sm:$0x1] %v3286
    %3317 = vst [vmem:[%s5 + $0xba] sm:$0x1] %v3288
    %3318 = vst [vmem:[%s5 + $0xca] sm:$0x1] %v3271
    %3319 = vst [vmem:[%s5 + $0xda] sm:$0x1] %v3285
    %3320 = vst [vmem:[%s5 + $0xea] sm:$0x1] %v3287
    %3321 = vst [vmem:[%s5 + $0xfa] sm:$0x1] %v3289
    %v3322 = vsel %vm3186, %v3172, %v3038
    %v3323 = vsel %vm3187, %v3173, %v3039
    %s3324 = scalar_lea.vmem %s1, 264
    %v3325 = vld [vmem:[%s3324] sm:$0xff]
    %v3326 = vld [vmem:[%s3324 + $0x8] sm:$0xf]
    %v3327 = vld [vmem:[%s3324 + $0xc] sm:$0xff]
    %v3328 = vld [vmem:[%s3324 + $0x14] sm:$0xf]
    %v3329 = vpack.c.bf16 %v3323, %v3322
    %3330 = vmatprep.subr.bf16.mxu0 %v142
    %3331 = vmatpush1.bf16.msra.mxu0 %v141
    %3332 = vmatprep.subr.bf16.mxu0 %v140
    %3333 = vmatpush1.bf16.msra.mxu0 %v139
    %3334 = vmatprep.subr.bf16.mxu0 %v138
    %3335 = vmatpush1.bf16.msra.mxu0 %v137
    %3336 = vmatprep.subr.bf16.mxu0 %v136
    %3337 = vmatpush1.bf16.msra.mxu0 %v135
    %3338 = vmatprep.subr.bf16.mxu0 %v134
    %3339 = vmatpush1.bf16.msra.mxu0 %v133
    %3340 = vmatprep.subr.bf16.mxu0 %v132
    %3341 = vmatpush1.bf16.msra.mxu0 %v131
    %3342 = vmatprep.subr.bf16.mxu0 %v130
    %3343 = vmatpush1.bf16.msra.mxu0 %v129
    %3344 = vmatprep.subr.bf16.mxu0 %v128
    %3345 = vmatpush1.bf16.msra.mxu0 %v127
    %3346 = vmatprep.subr.bf16.mxu0 0
    %3347 = vmatpush2.bf16.msra.mxu0 0
    %3348 = vmatprep.subr.bf16.mxu0 0
    %3349 = vmatpush2.bf16.msra.mxu0 0
    %3350 = vmatprep.subr.bf16.mxu0 0
    %3351 = vmatpush2.bf16.msra.mxu0 0
    %3352 = vmatprep.subr.bf16.mxu0 0
    %3353 = vmatpush2.bf16.msra.mxu0 0
    %3354 = vmatprep.subr.bf16.mxu0 0
    %3355 = vmatpush2.bf16.msra.mxu0 0
    %3356 = vmatprep.subr.bf16.mxu0 0
    %3357 = vmatpush2.bf16.msra.mxu0 0
    %3358 = vmatprep.subr.bf16.mxu0 0
    %3359 = vmatpush2.bf16.msra.mxu0 0
    %3360 = vmatprep.subr.bf16.mxu0 0
    %3361 = vmatpush2.bf16.msra.mxu0 0
    %3362 = vmatprep.mubr.bf16.mxu0 0
    %3363 = vmatmul.mubr.bf16.gmra.mxu0 %v3329
    %v3364 = vpop.f32.mrf.mxu0
    %v3365 = vadd.f32 0.0, %v3364
    %v3366 = vpop.f32.mrf.mxu0
    %v3367 = vadd.f32 0.0, %v3366
    %v3368 = vpop.f32.mrf.mxu0
    %v3369 = vadd.f32 0.0, %v3368
    %v3370 = vpop.f32.mrf.mxu0
    %v3371 = vadd.f32 0.0, %v3370
    %3372 = vdwg.mxu0
    %v3373 = vunpack.c.l.bf16 %v3325
    %v3374 = vunpack.c.l.bf16 %v3327
    %v3375 = vadd.f32 %v3373, %v3365
    %v3376 = vadd.f32 %v3374, %v3369
    %v3377 = vmul.f32 %v3375, 0.5
    %v3378 = vmul.f32 %v3376, 0.5
    %v3379 = vtanh.pop %v3377
    %v3380 = vtanh.pop %v3378
    %v3381 = vmul.f32 %v3379, 0.5
    %v3382 = vmul.f32 %v3380, 0.5
    %v3383 = vadd.f32 %v3381, 0.5
    %v3384 = vadd.f32 %v3382, 0.5
    %v3387 = vrot.slane %v3325, 4
    %v3388 = vrot.slane %v3327, 4
    %v3391 = vunpack.c.l.bf16 %v3387
    %v3392 = vunpack.c.l.bf16 %v3388
    %v3393 = vadd.f32 %v3391, %v3367
    %v3394 = vadd.f32 %v3392, %v3371
    %v3395 = vmul.f32 %v3393, 0.5
    %v3396 = vmul.f32 %v3394, 0.5
    %v3397 = vtanh.pop %v3395
    %v3398 = vtanh.pop %v3396
    %v3399 = vmul.f32 %v3397, 0.5
    %v3400 = vmul.f32 %v3398, 0.5
    %v3401 = vadd.f32 %v3399, 0.5
    %v3402 = vadd.f32 %v3400, 0.5
    %v3403 = vunpack.c.l.bf16 %v3326
    %v3404 = vunpack.c.l.bf16 %v3328
    %3405 = vmatprep.subr.bf16.mxu0 0
    %3406 = vmatpush1.bf16.msra.mxu0 %v273
    %3407 = vmatprep.subr.bf16.mxu0 0
    %3408 = vmatpush1.bf16.msra.mxu0 %v272
    %3409 = vmatprep.subr.bf16.mxu0 0
    %3410 = vmatpush1.bf16.msra.mxu0 %v271
    %3411 = vmatprep.subr.bf16.mxu0 0
    %3412 = vmatpush1.bf16.msra.mxu0 %v270
    %3413 = vmatprep.subr.bf16.mxu0 0
    %3414 = vmatpush1.bf16.msra.mxu0 %v269
    %3415 = vmatprep.subr.bf16.mxu0 0
    %3416 = vmatpush1.bf16.msra.mxu0 %v268
    %3417 = vmatprep.subr.bf16.mxu0 0
    %3418 = vmatpush1.bf16.msra.mxu0 %v267
    %3419 = vmatprep.subr.bf16.mxu0 0
    %3420 = vmatpush1.bf16.msra.mxu0 %v266
    %3421 = vmatprep.subr.bf16.mxu0 0
    %3422 = vmatpush2.bf16.msra.mxu0 0
    %3423 = vmatprep.subr.bf16.mxu0 0
    %3424 = vmatpush2.bf16.msra.mxu0 0
    %3425 = vmatprep.subr.bf16.mxu0 0
    %3426 = vmatpush2.bf16.msra.mxu0 0
    %3427 = vmatprep.subr.bf16.mxu0 0
    %3428 = vmatpush2.bf16.msra.mxu0 0
    %3429 = vmatprep.subr.bf16.mxu0 0
    %3430 = vmatpush2.bf16.msra.mxu0 0
    %3431 = vmatprep.subr.bf16.mxu0 0
    %3432 = vmatpush2.bf16.msra.mxu0 0
    %3433 = vmatprep.subr.bf16.mxu0 0
    %3434 = vmatpush2.bf16.msra.mxu0 0
    %3435 = vmatprep.subr.bf16.mxu0 0
    %3436 = vmatpush2.bf16.msra.mxu0 0
    %3437 = vmatprep.mubr.bf16.mxu0 0
    %3438 = vmatmul.mubr.bf16.gmra.mxu0 %v3329
    %v3439 = vpop.f32.mrf.mxu0
    %v3440 = vadd.f32 %v70, %v3439
    %v3441 = vpop.f32.mrf.mxu0
    %v3442 = vpop.f32.mrf.mxu0
    %v3443 = vadd.f32 %v70, %v3442
    %v3444 = vpop.f32.mrf.mxu0
    %3445 = vdwg.mxu0
    %v3446 = vmul.f32 %v3383, %v3440
    %v3447 = vmul.f32 %v3384, %v3443
    %v3448 = vadd.f32 %v3403, %v3446
    %v3449 = vadd.f32 %v3404, %v3447
    %v3450 = vtanh.pop %v3448
    %v3451 = vtanh.pop %v3449
    %v3452 = vsub.f32 %v3322, %v3450
    %v3453 = vsub.f32 %v3323, %v3451
    %v3454 = vmul.f32 %v3401, %v3452
    %v3455 = vmul.f32 %v3402, %v3453
    %v3456 = vadd.f32 %v3450, %v3454
    %v3457 = vadd.f32 %v3451, %v3455
    %s3458 = sadd.s32 %s64, 11
    %v3459 = vstv %s3458
    %vm3460 = vcmp.lt.s32.totalorder %v3459, %v62
    %vm3461 = vcmp.lt.s32.totalorder %v3459, %v63
    %v3462 = vsel %vm3460, 1, 0
    %v3463 = vsel %vm3461, 1, 0
    %3464 = vset.pattern.permute.xlu0 0
    %3465 = vperm.xlu0 %3464, %v3462
    %v3466 = vpop.permute.xlu0 %3465
    %3467 = vset.pattern.permute.xlu0 0
    %3468 = vperm.xlu0 %3467, %v3463
    %v3469 = vpop.permute.xlu0 %3468
    %vm3470 = vcmp.eq.s32.totalorder %v3466, 1
    %vm3471 = vcmp.eq.s32.totalorder %v3469, 1
    %v3472 = vsel %vm3470, %v3456, 0.0
    %v3473 = vsel %vm3471, %v3457, 0.0
    %v3476 = vcombine.high %v3472, %v3472
    %v3478 = vunpack.c.l.s4 1966171168
    %v3479 = vunpack.c.0.s8 %v3478
    %v3480 = vlaneseq
    %v3481 = vshrl.u32 %v3480, 7
    %v3482 = vsub.s32 %v3479, %v3481
    %v3483 = vrot.slane %v3472, %v3482
    %v3485 = vunpack.c.l.s4 1966171168
    %v3486 = vunpack.c.0.s8 %v3485
    %v3487 = vlaneseq
    %v3488 = vshrl.u32 %v3487, 7
    %v3489 = vsub.s32 %v3486, %v3488
    %v3490 = vrot.slane %v3476, %v3489
    %v3491 = vcombine.high %v3483, %v3483
    %v3492 = vcombine.high %v3490, %v3490
    %v3494 = vunpack.c.l.s4 1966171168
    %v3495 = vunpack.c.0.s8 %v3494
    %v3496 = vlaneseq
    %v3497 = vshrl.u32 %v3496, 7
    %v3498 = vsub.s32 %v3495, %v3497
    %v3499 = vrot.slane %v3483, %v3498
    %v3501 = vunpack.c.l.s4 1966171168
    %v3502 = vunpack.c.0.s8 %v3501
    %v3503 = vlaneseq
    %v3504 = vshrl.u32 %v3503, 7
    %v3505 = vsub.s32 %v3502, %v3504
    %v3506 = vrot.slane %v3490, %v3505
    %v3508 = vunpack.c.l.s4 1966171168
    %v3509 = vunpack.c.0.s8 %v3508
    %v3510 = vlaneseq
    %v3511 = vshrl.u32 %v3510, 7
    %v3512 = vsub.s32 %v3509, %v3511
    %v3513 = vrot.slane %v3491, %v3512
    %v3515 = vunpack.c.l.s4 1966171168
    %v3516 = vunpack.c.0.s8 %v3515
    %v3517 = vlaneseq
    %v3518 = vshrl.u32 %v3517, 7
    %v3519 = vsub.s32 %v3516, %v3518
    %v3520 = vrot.slane %v3492, %v3519
    %v3521 = vcombine.high %v3499, %v3499
    %v3522 = vcombine.high %v3506, %v3506
    %v3523 = vcombine.high %v3513, %v3513
    %v3524 = vcombine.high %v3520, %v3520
    %v3525 = vcombine.high %v3473, %v3473
    %v3527 = vunpack.c.l.s4 1966171168
    %v3528 = vunpack.c.0.s8 %v3527
    %v3529 = vlaneseq
    %v3530 = vshrl.u32 %v3529, 7
    %v3531 = vsub.s32 %v3528, %v3530
    %v3532 = vrot.slane %v3473, %v3531
    %v3534 = vunpack.c.l.s4 1966171168
    %v3535 = vunpack.c.0.s8 %v3534
    %v3536 = vlaneseq
    %v3537 = vshrl.u32 %v3536, 7
    %v3538 = vsub.s32 %v3535, %v3537
    %v3539 = vrot.slane %v3525, %v3538
    %v3540 = vcombine.high %v3532, %v3532
    %v3541 = vcombine.high %v3539, %v3539
    %v3543 = vunpack.c.l.s4 1966171168
    %v3544 = vunpack.c.0.s8 %v3543
    %v3545 = vlaneseq
    %v3546 = vshrl.u32 %v3545, 7
    %v3547 = vsub.s32 %v3544, %v3546
    %v3548 = vrot.slane %v3532, %v3547
    %v3550 = vunpack.c.l.s4 1966171168
    %v3551 = vunpack.c.0.s8 %v3550
    %v3552 = vlaneseq
    %v3553 = vshrl.u32 %v3552, 7
    %v3554 = vsub.s32 %v3551, %v3553
    %v3555 = vrot.slane %v3539, %v3554
    %v3557 = vunpack.c.l.s4 1966171168
    %v3558 = vunpack.c.0.s8 %v3557
    %v3559 = vlaneseq
    %v3560 = vshrl.u32 %v3559, 7
    %v3561 = vsub.s32 %v3558, %v3560
    %v3562 = vrot.slane %v3540, %v3561
    %v3564 = vunpack.c.l.s4 1966171168
    %v3565 = vunpack.c.0.s8 %v3564
    %v3566 = vlaneseq
    %v3567 = vshrl.u32 %v3566, 7
    %v3568 = vsub.s32 %v3565, %v3567
    %v3569 = vrot.slane %v3541, %v3568
    %v3570 = vcombine.high %v3548, %v3548
    %v3571 = vcombine.high %v3555, %v3555
    %v3572 = vcombine.high %v3562, %v3562
    %v3573 = vcombine.high %v3569, %v3569
    %3590 = vst [vmem:[%s5 + $0xb] sm:$0x1] %v3499
    %3591 = vst [vmem:[%s5 + $0x1b] sm:$0x1] %v3513
    %3592 = vst [vmem:[%s5 + $0x2b] sm:$0x1] %v3521
    %3593 = vst [vmem:[%s5 + $0x3b] sm:$0x1] %v3523
    %3594 = vst [vmem:[%s5 + $0x4b] sm:$0x1] %v3506
    %3595 = vst [vmem:[%s5 + $0x5b] sm:$0x1] %v3520
    %3596 = vst [vmem:[%s5 + $0x6b] sm:$0x1] %v3522
    %3597 = vst [vmem:[%s5 + $0x7b] sm:$0x1] %v3524
    %3598 = vst [vmem:[%s5 + $0x8b] sm:$0x1] %v3548
    %3599 = vst [vmem:[%s5 + $0x9b] sm:$0x1] %v3562
    %3600 = vst [vmem:[%s5 + $0xab] sm:$0x1] %v3570
    %3601 = vst [vmem:[%s5 + $0xbb] sm:$0x1] %v3572
    %3602 = vst [vmem:[%s5 + $0xcb] sm:$0x1] %v3555
    %3603 = vst [vmem:[%s5 + $0xdb] sm:$0x1] %v3569
    %3604 = vst [vmem:[%s5 + $0xeb] sm:$0x1] %v3571
    %3605 = vst [vmem:[%s5 + $0xfb] sm:$0x1] %v3573
    %v3606 = vsel %vm3470, %v3456, %v3322
    %v3607 = vsel %vm3471, %v3457, %v3323
    %3608 = vst [vmem:[#allocation2] sm:$0xff] %v3606
    %3609 = vst [vmem:[#allocation2 + $0x8] sm:$0xff] %v3607
    // Predicated region
    $region26: #{_lambda_.2} parent=1 // pred_check
      %p3610 = pneg %p24
    $region27: #{_lambda_.2} parent=1 // pred_check_branch
      %3612 = sbr.rel (%p3610) target = $region29
    $region28: #{_lambda_.2} parent=1 // pred_region
      %v3613 = vld [vmem:[#allocation2] sm:$0xff]
      %v3614 = vld [vmem:[#allocation2 + $0x8] sm:$0xff]
      %3615 = vst [vmem:[#allocation3] sm:$0xff] %v3613
      %3616 = vst [vmem:[#allocation3 + $0x8] sm:$0xff] %v3614
    $region29: #{_lambda_.2} parent=1 // pred_fallthru
      _
    // Predicated region
    $region30: #{_lambda_.2} parent=1 // pred_check
      _
    $region31: #{_lambda_.2} parent=1 // pred_check_branch
      %3618 = sbr.rel (0) target = $region33
    $region32: #{_lambda_.2} parent=1 // pred_region
      _
    $region33: #{_lambda_.2} parent=1 // pred_fallthru
      _
    // Predicated region
    $region34: #{_lambda_.2} parent=1 // pred_check
      _
    $region35: #{_lambda_.2} parent=1 // pred_check_branch
      %3620 = sbr.rel (0) target = $region37
    $region36: #{_lambda_.2} parent=1 // pred_region
      %s3622 = ssub.s32 256, 256
      %3623 = vsyncadd [#allocation4], %s3622
      %s3624 = sshll.u32 [#allocation3], 4
      %s3625 = int_to_ptr.vmem [resolvable:$true] %s3624
      %3630 = dma.vmem_to_hbm [thread:$0]  %s3625, 256, %s6, [#allocation4], 128, 128, 8
    $region37: #{_lambda_.2} parent=1 // pred_fallthru
      _
    // Predicated region
    $region38: #{_lambda_.2} parent=1 // pred_check
      _
    $region39: #{_lambda_.2} parent=1 // pred_check_branch
      %3632 = sbr.rel (0) target = $region41
    $region40: #{_lambda_.2} parent=1 // pred_region
      _
    $region41: #{_lambda_.2} parent=1 // pred_fallthru
      _
    // Predicated region
    $region42: #{_lambda_.2} parent=1 // pred_check
      _
    $region43: #{_lambda_.2} parent=1 // pred_check_branch
      %3634 = sbr.rel (0) target = $region45
    $region44: #{_lambda_.2} parent=1 // pred_region
      %3635 = dma.done [#allocation4], 256
    $region45: #{_lambda_.2} parent=1 // pred_fallthru
      _
    %3636 = vsyncpa [#allocation4], 1

</llo_original>
